<compile_context>
chip_gen: v5e
topology: v5e:2x2
jax: 0.10.0
libtpu: 0.0.40
codegen_flags: <defaults>
</compile_context>

<pallas_src>
import functools

import jax
import jax.numpy as jnp
from jax import lax
from jax.experimental import pallas as pl
from jax.experimental.pallas import tpu as pltpu

EPS = 1e-5           # nn.BatchNorm1d default
NEG_SLOPE = 0.01     # nn.LeakyReLU default
MXU_DTYPE = jnp.bfloat16   # MXU operand dtype; accumulation stays float32
LANE = 128           # lane-pad target (256 would further help v6e/v7x MXU fill)
SUBLANE = 8


def _round_up(x, m):
    return ((x + m - 1) // m) * m


def _pose_encoder_kernel(b_real,
                         x_ref, w1_ref, b1_ref, ng_ref, nb_ref,
                         wih1_ref, whh1_ref, bs1_ref,
                         wih2_ref, whh2_ref, bs2_ref,
                         w2_ref, b2_ref,
                         out_ref, gx_ref, seq_ref):
    T, Bp, Dinp = x_ref.shape
    Hp = w1_ref.shape[1]
    inv_count = 1.0 / float(b_real * T)

    # Rows >= b_real are batch padding; exclude them from BatchNorm statistics.
    mask = (lax.broadcasted_iota(jnp.int32, (1, Bp, Hp), 1) < b_real
            ).astype(jnp.float32)

    def bn_scale_shift(z, idx):
        # One-pass training-mode BatchNorm1d stats (sum / sum-of-squares) over
        # the (T, b_real) elements of each channel; returns fused (scale, shift)
        # so the apply step is a single multiply-add.
        zm = z * mask
        s = jnp.sum(zm, axis=(0, 1), keepdims=True)
        ss = jnp.sum(zm * zm, axis=(0, 1), keepdims=True)
        mean = s * inv_count
        var = ss * inv_count - mean * mean
        gamma = ng_ref[idx:idx + 1, :].reshape(1, 1, Hp)
        beta = nb_ref[idx:idx + 1, :].reshape(1, 1, Hp)
        scale = gamma * lax.rsqrt(var + EPS)
        shift = beta - mean * scale
        return scale, shift

    def lstm(whh_ref, h0, c0):
        # gx_ref already holds x_t @ W_ih + (b_ih + b_hh) for every timestep,
        # so the serial recurrence only runs the (Bp, Hp) x (Hp, 4Hp) h-matmul.
        whh = whh_ref[...]                       # hoisted bf16 weight load

        def step(t, carry):
            h_t, c_t = carry
            gates = gx_ref[t] + jnp.dot(h_t.astype(MXU_DTYPE), whh,
                                        preferred_element_type=jnp.float32)
            # 128-lane aligned gate slabs (PyTorch order i, f, g, o)
            i_g = jax.nn.sigmoid(gates[:, 0 * Hp:1 * Hp])
            f_g = jax.nn.sigmoid(gates[:, 1 * Hp:2 * Hp])
            g_g = jnp.tanh(gates[:, 2 * Hp:3 * Hp])
            o_g = jax.nn.sigmoid(gates[:, 3 * Hp:4 * Hp])
            c_n = f_g * c_t + i_g * g_g
            h_n = o_g * jnp.tanh(c_n)
            seq_ref[t] = h_n
            return h_n, c_n

        return lax.fori_loop(0, T, step, (h0, c0), unroll=True)

    # ---- dense1 : (T*Bp, Dinp) @ (Dinp, Hp) ---------------------------------
    h = (jnp.dot(x_ref[...].reshape(T * Bp, Dinp), w1_ref[...],
                 preferred_element_type=jnp.float32)
         + b1_ref[...]).reshape(T, Bp, Hp)

    # ---- norm1 + LeakyReLU --------------------------------------------------
    sc, sh = bn_scale_shift(h, 0)
    h = h * sc + sh
    h = jnp.where(h >= 0, h, NEG_SLOPE * h)

    # ---- rnn1: hoisted input projection + recurrence ------------------------
    gx_ref[...] = (jnp.dot(h.reshape(T * Bp, Hp).astype(MXU_DTYPE), wih1_ref[...],
                           preferred_element_type=jnp.float32)
                   + bs1_ref[...]).reshape(T, Bp, 4 * Hp)
    zeros = jnp.zeros((Bp, Hp), jnp.float32)
    h1, c1 = lstm(whh1_ref, zeros, zeros)

    # ---- norm2 --------------------------------------------------------------
    seq1 = seq_ref[...]
    sc, sh = bn_scale_shift(seq1, 1)
    seq1 = seq1 * sc + sh

    # ---- rnn2 (initial state = rnn1 final state); seq_ref / gx_ref reused ---
    gx_ref[...] = (jnp.dot(seq1.reshape(T * Bp, Hp).astype(MXU_DTYPE), wih2_ref[...],
                           preferred_element_type=jnp.float32)
                   + bs2_ref[...]).reshape(T, Bp, 4 * Hp)
    lstm(whh2_ref, h1, c1)

    # ---- norm3 (stats over the full sequence, applied to last step only) ----
    seq2 = seq_ref[...]
    sc, sh = bn_scale_shift(seq2, 2)
    last = seq2[T - 1] * sc[0] + sh[0]

    # ---- dense2 --------------------------------------------------------------
    out_ref[...] = (jnp.dot(last.astype(MXU_DTYPE), w2_ref[...],
                            preferred_element_type=jnp.float32)
                    + b2_ref[...]).astype(out_ref.dtype)


def pose_encoder_forward(x, params):
    B, T, Din = x.shape
    H = params["w1"].shape[1]
    Dout = params["w2"].shape[1]

    Bp = _round_up(max(B, SUBLANE), SUBLANE)
    Dinp = _round_up(Din, LANE)
    Hp = _round_up(H, LANE)
    Doutp = _round_up(Dout, LANE)

    def pad_to(a, shape):
        return jnp.pad(a, [(0, s - d) for s, d in zip(shape, a.shape)])

    # (B, T, Din) -> (T, Bp, Dinp): time-major so the recurrence indexes the
    # cheap leading axis; batch zero-padded to a full 8-sublane tile.
    xt = pad_to(jnp.transpose(x, (1, 0, 2)), (T, Bp, Dinp)).astype(MXU_DTYPE)

    w1 = pad_to(params["w1"], (Dinp, Hp)).astype(MXU_DTYPE)
    b1 = pad_to(params["b1"], (1, Hp))
    w2 = pad_to(params["w2"], (Hp, Doutp)).astype(MXU_DTYPE)
    b2 = pad_to(params["b2"], (1, Doutp))

    def pad_lstm(wih, whh, bsum):
        # PyTorch gate order [i|f|g|o]; pad each gate block to Hp columns so
        # gate slices inside the kernel land on 128-lane boundaries.
        def pad_gate_cols(w):
            w4 = w.reshape(w.shape[0], 4, H)
            w4 = jnp.pad(w4, ((0, Hp - w.shape[0]), (0, 0), (0, Hp - H)))
            return w4.reshape(Hp, 4 * Hp)
        wih_p = pad_gate_cols(wih).astype(MXU_DTYPE)
        whh_p = pad_gate_cols(whh).astype(MXU_DTYPE)
        b4 = jnp.pad(bsum.reshape(1, 4, H), ((0, 0), (0, 0), (0, Hp - H)))
        return wih_p, whh_p, b4.reshape(1, 4 * Hp)

    wih1, whh1, bs1 = pad_lstm(params["wih1"], params["whh1"], params["bsum1"])
    wih2, whh2, bs2 = pad_lstm(params["wih2"], params["whh2"], params["bsum2"])

    ng = pad_to(params["norm_gamma"], (3, Hp))
    nb = pad_to(params["norm_beta"], (3, Hp))

    args = (xt, w1, b1, ng, nb, wih1, whh1, bs1, wih2, whh2, bs2, w2, b2)

    # Explicit VMEM budget: inputs + output + scratch + activation working set.
    arg_bytes = sum(int(a.size) * a.dtype.itemsize for a in args)
    scratch_bytes = (T * Bp * 4 * Hp + T * Bp * Hp) * 4
    act_bytes = 6 * T * Bp * Hp * 4
    vmem_limit = min(2 * (arg_bytes + scratch_bytes + act_bytes) + (16 << 20),
                     48 << 20)

    out = pl.pallas_call(
        functools.partial(_pose_encoder_kernel, B),
        out_shape=jax.ShapeDtypeStruct((Bp, Doutp), jnp.float32),
        in_specs=[pl.BlockSpec(memory_space=pltpu.MemorySpace.VMEM)] * len(args),
        out_specs=pl.BlockSpec(memory_space=pltpu.MemorySpace.VMEM),
        scratch_shapes=[
            pltpu.VMEM((T, Bp, 4 * Hp), jnp.float32),   # hoisted gate pre-acts
            pltpu.VMEM((T, Bp, Hp), jnp.float32),       # per-step hidden states
        ],
        compiler_params=pltpu.CompilerParams(vmem_limit_bytes=int(vmem_limit)),
    )(*args)
    return out[:B, :Dout]


# ----------------------------- pure-JAX reference -----------------------------
def pose_encoder_ref(x, params):
    """PyTorch-faithful math (two-pass BN, per-step LSTM); matmul operands are
    cast to bfloat16 with f32 accumulation to match the kernel's MXU precision."""
    B, T, Din = x.shape
    H = params["w1"].shape[1]

    def mm(a, b):
        return jnp.dot(a.astype(MXU_DTYPE), b.astype(MXU_DTYPE),
                       preferred_element_type=jnp.float32)

    def bn(z, i):
        mean = jnp.mean(z, axis=(0, 1), keepdims=True)
        var = jnp.mean((z - mean) ** 2, axis=(0, 1), keepdims=True)
        zn = (z - mean) / jnp.sqrt(var + EPS)
        return zn * params["norm_gamma"][i] + params["norm_beta"][i]

    def lstm(seq, wih, whh, bias, h0, c0):
        hs = []
        h_t, c_t = h0, c0
        for t in range(T):
            g = mm(seq[:, t, :], wih) + mm(h_t, whh) + bias
            i_g = jax.nn.sigmoid(g[:, :H])
            f_g = jax.nn.sigmoid(g[:, H:2 * H])
            g_g = jnp.tanh(g[:, 2 * H:3 * H])
            o_g = jax.nn.sigmoid(g[:, 3 * H:])
            c_t = f_g * c_t + i_g * g_g
            h_t = o_g * jnp.tanh(c_t)
            hs.append(h_t)
        return jnp.stack(hs, axis=1), h_t, c_t

    h = (mm(x.reshape(B * T, Din), params["w1"]) + params["b1"]).reshape(B, T, H)
    h = bn(h, 0)
    h = jnp.where(h >= 0, h, NEG_SLOPE * h)
    zeros = jnp.zeros((B, H), jnp.float32)
    seq1, h1, c1 = lstm(h, params["wih1"], params["whh1"], params["bsum1"], zeros, zeros)
    seq1 = bn(seq1, 1)
    seq2, _, _ = lstm(seq1, params["wih2"], params["whh2"], params["bsum2"], h1, c1)
    seq2 = bn(seq2, 2)
    return mm(seq2[:, -1, :], params["w2"]) + params["b2"]


def init_params(key, d_input, d_hidden, d_output):
    ks = jax.random.split(key, 10)

    def rnd(k, shape, scale=0.1):
        return scale * jax.random.normal(k, shape, jnp.float32)

    return dict(
        w1=rnd(ks[0], (d_input, d_hidden)),
        b1=rnd(ks[1], (1, d_hidden)),
        # LSTM1: weight_ih / weight_hh transposed; bsum = bias_ih + bias_hh
        wih1=rnd(ks[2], (d_hidden, 4 * d_hidden)),
        whh1=rnd(ks[3], (d_hidden, 4 * d_hidden)),
        bsum1=rnd(ks[4], (1, 4 * d_hidden)),
        # LSTM2
        wih2=rnd(ks[5], (d_hidden, 4 * d_hidden)),
        whh2=rnd(ks[6], (d_hidden, 4 * d_hidden)),
        bsum2=rnd(ks[7], (1, 4 * d_hidden)),
        w2=rnd(ks[8], (d_hidden, d_output)),
        b2=rnd(ks[9], (1, d_output)),
        # BatchNorm1d default affine init: gamma=1, beta=0 (norm1/2/3)
        norm_gamma=jnp.ones((3, d_hidden), jnp.float32),
        norm_beta=jnp.zeros((3, d_hidden), jnp.float32),
    )


if __name__ == "__main__":
    B, T = 2, 8
    d_input, d_hidden, d_output = 16, 32, 8

    key = jax.random.PRNGKey(0)
    k_x, k_p = jax.random.split(key)
    x = jax.random.normal(k_x, (B, T, d_input), jnp.float32)
    params = init_params(k_p, d_input, d_hidden, d_output)

    out = jax.block_until_ready(pose_encoder_forward(x, params))
    ref = jax.block_until_ready(pose_encoder_ref(x, params))

    assert out.shape == (B, d_output)
    assert jnp.allclose(out, ref, atol=5e-3, rtol=5e-3), (out, ref)

    print("KERNEL_OK")
</pallas_src>

<mosaic_0001>
module attributes {stable_mosaic.version = 11 : i64} {
  func.func @_pose_encoder_kernel(%arg0: memref<8x8x128xbf16, #tpu.memory_space<vmem>>, %arg1: memref<128x128xbf16, #tpu.memory_space<vmem>>, %arg2: memref<1x128xf32, #tpu.memory_space<vmem>>, %arg3: memref<3x128xf32, #tpu.memory_space<vmem>>, %arg4: memref<3x128xf32, #tpu.memory_space<vmem>>, %arg5: memref<128x512xbf16, #tpu.memory_space<vmem>>, %arg6: memref<128x512xbf16, #tpu.memory_space<vmem>>, %arg7: memref<1x512xf32, #tpu.memory_space<vmem>>, %arg8: memref<128x512xbf16, #tpu.memory_space<vmem>>, %arg9: memref<128x512xbf16, #tpu.memory_space<vmem>>, %arg10: memref<1x512xf32, #tpu.memory_space<vmem>>, %arg11: memref<128x128xbf16, #tpu.memory_space<vmem>>, %arg12: memref<1x128xf32, #tpu.memory_space<vmem>>, %arg13: memref<8x128xf32, #tpu.memory_space<vmem>>, %arg14: memref<8x8x512xf32, #tpu.memory_space<vmem>>, %arg15: memref<8x8x128xf32, #tpu.memory_space<vmem>>) attributes {dimension_semantics = [], scalar_prefetch = 0 : i64, scratch_operands = 2 : i64, tpu.core_type = #tpu.core_type<tc>} {
    %0 = tpu.iota {dimensions = array<i32: 1>} : vector<1x8x128xi32>
    %c2_i32 = arith.constant 2 : i32
    %1 = vector.broadcast %c2_i32 : i32 to vector<1x8x128xi32>
    %2 = arith.cmpi slt, %0, %1 : vector<1x8x128xi32>
    %3 = arith.extui %2 : vector<1x8x128xi1> to vector<1x8x128xi32>
    %4 = arith.sitofp %3 : vector<1x8x128xi32> to vector<1x8x128xf32>
    %c0 = arith.constant 0 : index
    %c0_0 = arith.constant 0 : index
    %c0_1 = arith.constant 0 : index
    %5 = vector.load %arg0[%c0, %c0_0, %c0_1] : memref<8x8x128xbf16, #tpu.memory_space<vmem>>, vector<8x8x128xbf16>
    %6 = vector.shape_cast %5 : vector<8x8x128xbf16> to vector<64x128xbf16>
    %c0_2 = arith.constant 0 : index
    %c0_3 = arith.constant 0 : index
    %7 = vector.load %arg1[%c0_2, %c0_3] : memref<128x128xbf16, #tpu.memory_space<vmem>>, vector<128x128xbf16>
    %cst = arith.constant dense<0.000000e+00> : vector<64x128xf32>
    %8 = tpu.matmul %6, %7, %cst {dimension_numbers = #tpu.dot_dimension_numbers<[1], [0], [0], [1], [0, 0, 1, 1], [], []>} : vector<64x128xbf16>, vector<128x128xbf16>, vector<64x128xf32> -> vector<64x128xf32>
    %c0_4 = arith.constant 0 : index
    %c0_5 = arith.constant 0 : index
    %9 = vector.load %arg2[%c0_4, %c0_5] : memref<1x128xf32, #tpu.memory_space<vmem>>, vector<1x128xf32>
    %10 = vector.broadcast %9 : vector<1x128xf32> to vector<64x128xf32>
    %11 = arith.addf %8, %10 : vector<64x128xf32>
    %12 = vector.shape_cast %11 : vector<64x128xf32> to vector<8x8x128xf32>
    %13 = vector.broadcast %4 : vector<1x8x128xf32> to vector<8x8x128xf32>
    %14 = arith.mulf %12, %13 : vector<8x8x128xf32>
    %cst_6 = arith.constant dense<0.000000e+00> : vector<128xf32>
    %15 = vector.multi_reduction <add>, %14, %cst_6 [0, 1] : vector<8x8x128xf32> to vector<128xf32>
    %16 = vector.shape_cast %15 : vector<128xf32> to vector<1x1x128xf32>
    %17 = arith.mulf %14, %14 : vector<8x8x128xf32>
    %cst_7 = arith.constant dense<0.000000e+00> : vector<128xf32>
    %18 = vector.multi_reduction <add>, %17, %cst_7 [0, 1] : vector<8x8x128xf32> to vector<128xf32>
    %19 = vector.shape_cast %18 : vector<128xf32> to vector<1x1x128xf32>
    %cst_8 = arith.constant 6.250000e-02 : f32
    %20 = vector.broadcast %cst_8 : f32 to vector<1x1x128xf32>
    %21 = arith.mulf %16, %20 : vector<1x1x128xf32>
    %cst_9 = arith.constant 6.250000e-02 : f32
    %22 = vector.broadcast %cst_9 : f32 to vector<1x1x128xf32>
    %23 = arith.mulf %19, %22 : vector<1x1x128xf32>
    %24 = arith.mulf %21, %21 : vector<1x1x128xf32>
    %25 = arith.subf %23, %24 : vector<1x1x128xf32>
    %c0_10 = arith.constant 0 : index
    %c0_11 = arith.constant 0 : index
    %26 = vector.load %arg3[%c0_10, %c0_11] : memref<3x128xf32, #tpu.memory_space<vmem>>, vector<1x128xf32>
    %27 = vector.shape_cast %26 : vector<1x128xf32> to vector<1x1x128xf32>
    %c0_12 = arith.constant 0 : index
    %c0_13 = arith.constant 0 : index
    %28 = vector.load %arg4[%c0_12, %c0_13] : memref<3x128xf32, #tpu.memory_space<vmem>>, vector<1x128xf32>
    %29 = vector.shape_cast %28 : vector<1x128xf32> to vector<1x1x128xf32>
    %cst_14 = arith.constant 9.99999974E-6 : f32
    %30 = vector.broadcast %cst_14 : f32 to vector<1x1x128xf32>
    %31 = arith.addf %25, %30 : vector<1x1x128xf32>
    %32 = math.rsqrt %31 : vector<1x1x128xf32>
    %33 = arith.mulf %27, %32 : vector<1x1x128xf32>
    %34 = arith.mulf %21, %33 : vector<1x1x128xf32>
    %35 = arith.subf %29, %34 : vector<1x1x128xf32>
    %36 = vector.broadcast %33 : vector<1x1x128xf32> to vector<8x8x128xf32>
    %37 = arith.mulf %12, %36 : vector<8x8x128xf32>
    %38 = vector.broadcast %35 : vector<1x1x128xf32> to vector<8x8x128xf32>
    %39 = arith.addf %37, %38 : vector<8x8x128xf32>
    %cst_15 = arith.constant 0.000000e+00 : f32
    %40 = vector.broadcast %cst_15 : f32 to vector<8x8x128xf32>
    %41 = arith.cmpf oge, %39, %40 : vector<8x8x128xf32>
    %cst_16 = arith.constant 0.00999999977 : f32
    %42 = vector.broadcast %cst_16 : f32 to vector<8x8x128xf32>
    %43 = arith.mulf %42, %39 : vector<8x8x128xf32>
    %44 = arith.select %41, %39, %43 : vector<8x8x128xi1>, vector<8x8x128xf32>
    %45 = vector.shape_cast %44 : vector<8x8x128xf32> to vector<64x128xf32>
    %46 = arith.truncf %45 : vector<64x128xf32> to vector<64x128xbf16>
    %c0_17 = arith.constant 0 : index
    %c0_18 = arith.constant 0 : index
    %47 = vector.load %arg5[%c0_17, %c0_18] : memref<128x512xbf16, #tpu.memory_space<vmem>>, vector<128x512xbf16>
    %cst_19 = arith.constant dense<0.000000e+00> : vector<64x512xf32>
    %48 = tpu.matmul %46, %47, %cst_19 {dimension_numbers = #tpu.dot_dimension_numbers<[1], [0], [0], [1], [0, 0, 1, 1], [], []>} : vector<64x128xbf16>, vector<128x512xbf16>, vector<64x512xf32> -> vector<64x512xf32>
    %c0_20 = arith.constant 0 : index
    %c0_21 = arith.constant 0 : index
    %49 = vector.load %arg7[%c0_20, %c0_21] : memref<1x512xf32, #tpu.memory_space<vmem>>, vector<1x512xf32>
    %50 = vector.broadcast %49 : vector<1x512xf32> to vector<64x512xf32>
    %51 = arith.addf %48, %50 : vector<64x512xf32>
    %52 = vector.shape_cast %51 : vector<64x512xf32> to vector<8x8x512xf32>
    %c0_22 = arith.constant 0 : index
    %c0_23 = arith.constant 0 : index
    %c0_24 = arith.constant 0 : index
    %53 = vector.load %arg14[%c0_22, %c0_23, %c0_24] : memref<8x8x512xf32, #tpu.memory_space<vmem>>, vector<8x8x512xf32>
    tpu.vector_store %arg14[%c0_22, %c0_23, %c0_24], %52 {strides = array<i32>} : memref<8x8x512xf32, #tpu.memory_space<vmem>>, vector<8x8x512xf32>,
    %cst_25 = arith.constant 0.000000e+00 : f32
    %54 = vector.broadcast %cst_25 : f32 to vector<8x128xf32>
    %c0_26 = arith.constant 0 : index
    %c0_27 = arith.constant 0 : index
    %55 = vector.load %arg6[%c0_26, %c0_27] : memref<128x512xbf16, #tpu.memory_space<vmem>>, vector<128x512xbf16>
    %c0_i32 = arith.constant 0 : i32
    %56 = arith.index_cast %c0_i32 : i32 to index
    %c0_28 = arith.constant 0 : index
    %c0_29 = arith.constant 0 : index
    %57 = vector.load %arg14[%56, %c0_28, %c0_29] : memref<8x8x512xf32, #tpu.memory_space<vmem>>, vector<1x8x512xf32>
    %58 = vector.shape_cast %57 : vector<1x8x512xf32> to vector<8x512xf32>
    %59 = arith.truncf %54 : vector<8x128xf32> to vector<8x128xbf16>
    %cst_30 = arith.constant dense<0.000000e+00> : vector<8x512xf32>
    %60 = tpu.matmul %59, %55, %cst_30 {dimension_numbers = #tpu.dot_dimension_numbers<[1], [0], [0], [1], [0, 0, 1, 1], [], []>} : vector<8x128xbf16>, vector<128x512xbf16>, vector<8x512xf32> -> vector<8x512xf32>
    %61 = arith.addf %58, %60 : vector<8x512xf32>
    %62 = vector.extract_strided_slice %61 {offsets = [0, 0], sizes = [8, 128], strides = [1, 1]} : vector<8x512xf32> to vector<8x128xf32>
    %63 = arith.negf %62 : vector<8x128xf32>
    %64 = math.exp %63 : vector<8x128xf32>
    %cst_31 = arith.constant 1.000000e+00 : f32
    %65 = vector.broadcast %cst_31 : f32 to vector<8x128xf32>
    %66 = arith.addf %65, %64 : vector<8x128xf32>
    %67 = arith.divf %65, %66 : vector<8x128xf32>
    %68 = vector.extract_strided_slice %61 {offsets = [0, 128], sizes = [8, 128], strides = [1, 1]} : vector<8x512xf32> to vector<8x128xf32>
    %69 = arith.negf %68 : vector<8x128xf32>
    %70 = math.exp %69 : vector<8x128xf32>
    %cst_32 = arith.constant 1.000000e+00 : f32
    %71 = vector.broadcast %cst_32 : f32 to vector<8x128xf32>
    %72 = arith.addf %71, %70 : vector<8x128xf32>
    %73 = arith.divf %71, %72 : vector<8x128xf32>
    %74 = vector.extract_strided_slice %61 {offsets = [0, 256], sizes = [8, 128], strides = [1, 1]} : vector<8x512xf32> to vector<8x128xf32>
    %75 = math.tanh %74 : vector<8x128xf32>
    %76 = vector.extract_strided_slice %61 {offsets = [0, 384], sizes = [8, 128], strides = [1, 1]} : vector<8x512xf32> to vector<8x128xf32>
    %77 = arith.negf %76 : vector<8x128xf32>
    %78 = math.exp %77 : vector<8x128xf32>
    %cst_33 = arith.constant 1.000000e+00 : f32
    %79 = vector.broadcast %cst_33 : f32 to vector<8x128xf32>
    %80 = arith.addf %79, %78 : vector<8x128xf32>
    %81 = arith.divf %79, %80 : vector<8x128xf32>
    %82 = arith.mulf %73, %54 : vector<8x128xf32>
    %83 = arith.mulf %67, %75 : vector<8x128xf32>
    %84 = arith.addf %82, %83 : vector<8x128xf32>
    %85 = math.tanh %84 : vector<8x128xf32>
    %86 = arith.mulf %81, %85 : vector<8x128xf32>
    %87 = arith.index_cast %c0_i32 : i32 to index
    %c0_34 = arith.constant 0 : index
    %c0_35 = arith.constant 0 : index
    %88 = vector.load %arg15[%87, %c0_34, %c0_35] : memref<8x8x128xf32, #tpu.memory_space<vmem>>, vector<1x8x128xf32>
    %89 = vector.shape_cast %88 : vector<1x8x128xf32> to vector<8x128xf32>
    %90 = vector.shape_cast %86 : vector<8x128xf32> to vector<1x8x128xf32>
    tpu.vector_store %arg15[%87, %c0_34, %c0_35], %90 {strides = array<i32>} : memref<8x8x128xf32, #tpu.memory_space<vmem>>, vector<1x8x128xf32>,
    %c1_i32 = arith.constant 1 : i32
    %91 = arith.index_cast %c1_i32 : i32 to index
    %c0_36 = arith.constant 0 : index
    %c0_37 = arith.constant 0 : index
    %92 = vector.load %arg14[%91, %c0_36, %c0_37] : memref<8x8x512xf32, #tpu.memory_space<vmem>>, vector<1x8x512xf32>
    %93 = vector.shape_cast %92 : vector<1x8x512xf32> to vector<8x512xf32>
    %94 = arith.truncf %86 : vector<8x128xf32> to vector<8x128xbf16>
    %cst_38 = arith.constant dense<0.000000e+00> : vector<8x512xf32>
    %95 = tpu.matmul %94, %55, %cst_38 {dimension_numbers = #tpu.dot_dimension_numbers<[1], [0], [0], [1], [0, 0, 1, 1], [], []>} : vector<8x128xbf16>, vector<128x512xbf16>, vector<8x512xf32> -> vector<8x512xf32>
    %96 = arith.addf %93, %95 : vector<8x512xf32>
    %97 = vector.extract_strided_slice %96 {offsets = [0, 0], sizes = [8, 128], strides = [1, 1]} : vector<8x512xf32> to vector<8x128xf32>
    %98 = arith.negf %97 : vector<8x128xf32>
    %99 = math.exp %98 : vector<8x128xf32>
    %cst_39 = arith.constant 1.000000e+00 : f32
    %100 = vector.broadcast %cst_39 : f32 to vector<8x128xf32>
    %101 = arith.addf %100, %99 : vector<8x128xf32>
    %102 = arith.divf %100, %101 : vector<8x128xf32>
    %103 = vector.extract_strided_slice %96 {offsets = [0, 128], sizes = [8, 128], strides = [1, 1]} : vector<8x512xf32> to vector<8x128xf32>
    %104 = arith.negf %103 : vector<8x128xf32>
    %105 = math.exp %104 : vector<8x128xf32>
    %cst_40 = arith.constant 1.000000e+00 : f32
    %106 = vector.broadcast %cst_40 : f32 to vector<8x128xf32>
    %107 = arith.addf %106, %105 : vector<8x128xf32>
    %108 = arith.divf %106, %107 : vector<8x128xf32>
    %109 = vector.extract_strided_slice %96 {offsets = [0, 256], sizes = [8, 128], strides = [1, 1]} : vector<8x512xf32> to vector<8x128xf32>
    %110 = math.tanh %109 : vector<8x128xf32>
    %111 = vector.extract_strided_slice %96 {offsets = [0, 384], sizes = [8, 128], strides = [1, 1]} : vector<8x512xf32> to vector<8x128xf32>
    %112 = arith.negf %111 : vector<8x128xf32>
    %113 = math.exp %112 : vector<8x128xf32>
    %cst_41 = arith.constant 1.000000e+00 : f32
    %114 = vector.broadcast %cst_41 : f32 to vector<8x128xf32>
    %115 = arith.addf %114, %113 : vector<8x128xf32>
    %116 = arith.divf %114, %115 : vector<8x128xf32>
    %117 = arith.mulf %108, %84 : vector<8x128xf32>
    %118 = arith.mulf %102, %110 : vector<8x128xf32>
    %119 = arith.addf %117, %118 : vector<8x128xf32>
    %120 = math.tanh %119 : vector<8x128xf32>
    %121 = arith.mulf %116, %120 : vector<8x128xf32>
    %122 = arith.index_cast %c1_i32 : i32 to index
    %c0_42 = arith.constant 0 : index
    %c0_43 = arith.constant 0 : index
    %123 = vector.load %arg15[%122, %c0_42, %c0_43] : memref<8x8x128xf32, #tpu.memory_space<vmem>>, vector<1x8x128xf32>
    %124 = vector.shape_cast %123 : vector<1x8x128xf32> to vector<8x128xf32>
    %125 = vector.shape_cast %121 : vector<8x128xf32> to vector<1x8x128xf32>
    tpu.vector_store %arg15[%122, %c0_42, %c0_43], %125 {strides = array<i32>} : memref<8x8x128xf32, #tpu.memory_space<vmem>>, vector<1x8x128xf32>,
    %c2_i32_44 = arith.constant 2 : i32
    %126 = arith.index_cast %c2_i32_44 : i32 to index
    %c0_45 = arith.constant 0 : index
    %c0_46 = arith.constant 0 : index
    %127 = vector.load %arg14[%126, %c0_45, %c0_46] : memref<8x8x512xf32, #tpu.memory_space<vmem>>, vector<1x8x512xf32>
    %128 = vector.shape_cast %127 : vector<1x8x512xf32> to vector<8x512xf32>
    %129 = arith.truncf %121 : vector<8x128xf32> to vector<8x128xbf16>
    %cst_47 = arith.constant dense<0.000000e+00> : vector<8x512xf32>
    %130 = tpu.matmul %129, %55, %cst_47 {dimension_numbers = #tpu.dot_dimension_numbers<[1], [0], [0], [1], [0, 0, 1, 1], [], []>} : vector<8x128xbf16>, vector<128x512xbf16>, vector<8x512xf32> -> vector<8x512xf32>
    %131 = arith.addf %128, %130 : vector<8x512xf32>
    %132 = vector.extract_strided_slice %131 {offsets = [0, 0], sizes = [8, 128], strides = [1, 1]} : vector<8x512xf32> to vector<8x128xf32>
    %133 = arith.negf %132 : vector<8x128xf32>
    %134 = math.exp %133 : vector<8x128xf32>
    %cst_48 = arith.constant 1.000000e+00 : f32
    %135 = vector.broadcast %cst_48 : f32 to vector<8x128xf32>
    %136 = arith.addf %135, %134 : vector<8x128xf32>
    %137 = arith.divf %135, %136 : vector<8x128xf32>
    %138 = vector.extract_strided_slice %131 {offsets = [0, 128], sizes = [8, 128], strides = [1, 1]} : vector<8x512xf32> to vector<8x128xf32>
    %139 = arith.negf %138 : vector<8x128xf32>
    %140 = math.exp %139 : vector<8x128xf32>
    %cst_49 = arith.constant 1.000000e+00 : f32
    %141 = vector.broadcast %cst_49 : f32 to vector<8x128xf32>
    %142 = arith.addf %141, %140 : vector<8x128xf32>
    %143 = arith.divf %141, %142 : vector<8x128xf32>
    %144 = vector.extract_strided_slice %131 {offsets = [0, 256], sizes = [8, 128], strides = [1, 1]} : vector<8x512xf32> to vector<8x128xf32>
    %145 = math.tanh %144 : vector<8x128xf32>
    %146 = vector.extract_strided_slice %131 {offsets = [0, 384], sizes = [8, 128], strides = [1, 1]} : vector<8x512xf32> to vector<8x128xf32>
    %147 = arith.negf %146 : vector<8x128xf32>
    %148 = math.exp %147 : vector<8x128xf32>
    %cst_50 = arith.constant 1.000000e+00 : f32
    %149 = vector.broadcast %cst_50 : f32 to vector<8x128xf32>
    %150 = arith.addf %149, %148 : vector<8x128xf32>
    %151 = arith.divf %149, %150 : vector<8x128xf32>
    %152 = arith.mulf %143, %119 : vector<8x128xf32>
    %153 = arith.mulf %137, %145 : vector<8x128xf32>
    %154 = arith.addf %152, %153 : vector<8x128xf32>
    %155 = math.tanh %154 : vector<8x128xf32>
    %156 = arith.mulf %151, %155 : vector<8x128xf32>
    %157 = arith.index_cast %c2_i32_44 : i32 to index
    %c0_51 = arith.constant 0 : index
    %c0_52 = arith.constant 0 : index
    %158 = vector.load %arg15[%157, %c0_51, %c0_52] : memref<8x8x128xf32, #tpu.memory_space<vmem>>, vector<1x8x128xf32>
    %159 = vector.shape_cast %158 : vector<1x8x128xf32> to vector<8x128xf32>
    %160 = vector.shape_cast %156 : vector<8x128xf32> to vector<1x8x128xf32>
    tpu.vector_store %arg15[%157, %c0_51, %c0_52], %160 {strides = array<i32>} : memref<8x8x128xf32, #tpu.memory_space<vmem>>, vector<1x8x128xf32>,
    %c3_i32 = arith.constant 3 : i32
    %161 = arith.index_cast %c3_i32 : i32 to index
    %c0_53 = arith.constant 0 : index
    %c0_54 = arith.constant 0 : index
    %162 = vector.load %arg14[%161, %c0_53, %c0_54] : memref<8x8x512xf32, #tpu.memory_space<vmem>>, vector<1x8x512xf32>
    %163 = vector.shape_cast %162 : vector<1x8x512xf32> to vector<8x512xf32>
    %164 = arith.truncf %156 : vector<8x128xf32> to vector<8x128xbf16>
    %cst_55 = arith.constant dense<0.000000e+00> : vector<8x512xf32>
    %165 = tpu.matmul %164, %55, %cst_55 {dimension_numbers = #tpu.dot_dimension_numbers<[1], [0], [0], [1], [0, 0, 1, 1], [], []>} : vector<8x128xbf16>, vector<128x512xbf16>, vector<8x512xf32> -> vector<8x512xf32>
    %166 = arith.addf %163, %165 : vector<8x512xf32>
    %167 = vector.extract_strided_slice %166 {offsets = [0, 0], sizes = [8, 128], strides = [1, 1]} : vector<8x512xf32> to vector<8x128xf32>
    %168 = arith.negf %167 : vector<8x128xf32>
    %169 = math.exp %168 : vector<8x128xf32>
    %cst_56 = arith.constant 1.000000e+00 : f32
    %170 = vector.broadcast %cst_56 : f32 to vector<8x128xf32>
    %171 = arith.addf %170, %169 : vector<8x128xf32>
    %172 = arith.divf %170, %171 : vector<8x128xf32>
    %173 = vector.extract_strided_slice %166 {offsets = [0, 128], sizes = [8, 128], strides = [1, 1]} : vector<8x512xf32> to vector<8x128xf32>
    %174 = arith.negf %173 : vector<8x128xf32>
    %175 = math.exp %174 : vector<8x128xf32>
    %cst_57 = arith.constant 1.000000e+00 : f32
    %176 = vector.broadcast %cst_57 : f32 to vector<8x128xf32>
    %177 = arith.addf %176, %175 : vector<8x128xf32>
    %178 = arith.divf %176, %177 : vector<8x128xf32>
    %179 = vector.extract_strided_slice %166 {offsets = [0, 256], sizes = [8, 128], strides = [1, 1]} : vector<8x512xf32> to vector<8x128xf32>
    %180 = math.tanh %179 : vector<8x128xf32>
    %181 = vector.extract_strided_slice %166 {offsets = [0, 384], sizes = [8, 128], strides = [1, 1]} : vector<8x512xf32> to vector<8x128xf32>
    %182 = arith.negf %181 : vector<8x128xf32>
    %183 = math.exp %182 : vector<8x128xf32>
    %cst_58 = arith.constant 1.000000e+00 : f32
    %184 = vector.broadcast %cst_58 : f32 to vector<8x128xf32>
    %185 = arith.addf %184, %183 : vector<8x128xf32>
    %186 = arith.divf %184, %185 : vector<8x128xf32>
    %187 = arith.mulf %178, %154 : vector<8x128xf32>
    %188 = arith.mulf %172, %180 : vector<8x128xf32>
    %189 = arith.addf %187, %188 : vector<8x128xf32>
    %190 = math.tanh %189 : vector<8x128xf32>
    %191 = arith.mulf %186, %190 : vector<8x128xf32>
    %192 = arith.index_cast %c3_i32 : i32 to index
    %c0_59 = arith.constant 0 : index
    %c0_60 = arith.constant 0 : index
    %193 = vector.load %arg15[%192, %c0_59, %c0_60] : memref<8x8x128xf32, #tpu.memory_space<vmem>>, vector<1x8x128xf32>
    %194 = vector.shape_cast %193 : vector<1x8x128xf32> to vector<8x128xf32>
    %195 = vector.shape_cast %191 : vector<8x128xf32> to vector<1x8x128xf32>
    tpu.vector_store %arg15[%192, %c0_59, %c0_60], %195 {strides = array<i32>} : memref<8x8x128xf32, #tpu.memory_space<vmem>>, vector<1x8x128xf32>,
    %c4_i32 = arith.constant 4 : i32
    %196 = arith.index_cast %c4_i32 : i32 to index
    %c0_61 = arith.constant 0 : index
    %c0_62 = arith.constant 0 : index
    %197 = vector.load %arg14[%196, %c0_61, %c0_62] : memref<8x8x512xf32, #tpu.memory_space<vmem>>, vector<1x8x512xf32>
    %198 = vector.shape_cast %197 : vector<1x8x512xf32> to vector<8x512xf32>
    %199 = arith.truncf %191 : vector<8x128xf32> to vector<8x128xbf16>
    %cst_63 = arith.constant dense<0.000000e+00> : vector<8x512xf32>
    %200 = tpu.matmul %199, %55, %cst_63 {dimension_numbers = #tpu.dot_dimension_numbers<[1], [0], [0], [1], [0, 0, 1, 1], [], []>} : vector<8x128xbf16>, vector<128x512xbf16>, vector<8x512xf32> -> vector<8x512xf32>
    %201 = arith.addf %198, %200 : vector<8x512xf32>
    %202 = vector.extract_strided_slice %201 {offsets = [0, 0], sizes = [8, 128], strides = [1, 1]} : vector<8x512xf32> to vector<8x128xf32>
    %203 = arith.negf %202 : vector<8x128xf32>
    %204 = math.exp %203 : vector<8x128xf32>
    %cst_64 = arith.constant 1.000000e+00 : f32
    %205 = vector.broadcast %cst_64 : f32 to vector<8x128xf32>
    %206 = arith.addf %205, %204 : vector<8x128xf32>
    %207 = arith.divf %205, %206 : vector<8x128xf32>
    %208 = vector.extract_strided_slice %201 {offsets = [0, 128], sizes = [8, 128], strides = [1, 1]} : vector<8x512xf32> to vector<8x128xf32>
    %209 = arith.negf %208 : vector<8x128xf32>
    %210 = math.exp %209 : vector<8x128xf32>
    %cst_65 = arith.constant 1.000000e+00 : f32
    %211 = vector.broadcast %cst_65 : f32 to vector<8x128xf32>
    %212 = arith.addf %211, %210 : vector<8x128xf32>
    %213 = arith.divf %211, %212 : vector<8x128xf32>
    %214 = vector.extract_strided_slice %201 {offsets = [0, 256], sizes = [8, 128], strides = [1, 1]} : vector<8x512xf32> to vector<8x128xf32>
    %215 = math.tanh %214 : vector<8x128xf32>
    %216 = vector.extract_strided_slice %201 {offsets = [0, 384], sizes = [8, 128], strides = [1, 1]} : vector<8x512xf32> to vector<8x128xf32>
    %217 = arith.negf %216 : vector<8x128xf32>
    %218 = math.exp %217 : vector<8x128xf32>
    %cst_66 = arith.constant 1.000000e+00 : f32
    %219 = vector.broadcast %cst_66 : f32 to vector<8x128xf32>
    %220 = arith.addf %219, %218 : vector<8x128xf32>
    %221 = arith.divf %219, %220 : vector<8x128xf32>
    %222 = arith.mulf %213, %189 : vector<8x128xf32>
    %223 = arith.mulf %207, %215 : vector<8x128xf32>
    %224 = arith.addf %222, %223 : vector<8x128xf32>
    %225 = math.tanh %224 : vector<8x128xf32>
    %226 = arith.mulf %221, %225 : vector<8x128xf32>
    %227 = arith.index_cast %c4_i32 : i32 to index
    %c0_67 = arith.constant 0 : index
    %c0_68 = arith.constant 0 : index
    %228 = vector.load %arg15[%227, %c0_67, %c0_68] : memref<8x8x128xf32, #tpu.memory_space<vmem>>, vector<1x8x128xf32>
    %229 = vector.shape_cast %228 : vector<1x8x128xf32> to vector<8x128xf32>
    %230 = vector.shape_cast %226 : vector<8x128xf32> to vector<1x8x128xf32>
    tpu.vector_store %arg15[%227, %c0_67, %c0_68], %230 {strides = array<i32>} : memref<8x8x128xf32, #tpu.memory_space<vmem>>, vector<1x8x128xf32>,
    %c5_i32 = arith.constant 5 : i32
    %231 = arith.index_cast %c5_i32 : i32 to index
    %c0_69 = arith.constant 0 : index
    %c0_70 = arith.constant 0 : index
    %232 = vector.load %arg14[%231, %c0_69, %c0_70] : memref<8x8x512xf32, #tpu.memory_space<vmem>>, vector<1x8x512xf32>
    %233 = vector.shape_cast %232 : vector<1x8x512xf32> to vector<8x512xf32>
    %234 = arith.truncf %226 : vector<8x128xf32> to vector<8x128xbf16>
    %cst_71 = arith.constant dense<0.000000e+00> : vector<8x512xf32>
    %235 = tpu.matmul %234, %55, %cst_71 {dimension_numbers = #tpu.dot_dimension_numbers<[1], [0], [0], [1], [0, 0, 1, 1], [], []>} : vector<8x128xbf16>, vector<128x512xbf16>, vector<8x512xf32> -> vector<8x512xf32>
    %236 = arith.addf %233, %235 : vector<8x512xf32>
    %237 = vector.extract_strided_slice %236 {offsets = [0, 0], sizes = [8, 128], strides = [1, 1]} : vector<8x512xf32> to vector<8x128xf32>
    %238 = arith.negf %237 : vector<8x128xf32>
    %239 = math.exp %238 : vector<8x128xf32>
    %cst_72 = arith.constant 1.000000e+00 : f32
    %240 = vector.broadcast %cst_72 : f32 to vector<8x128xf32>
    %241 = arith.addf %240, %239 : vector<8x128xf32>
    %242 = arith.divf %240, %241 : vector<8x128xf32>
    %243 = vector.extract_strided_slice %236 {offsets = [0, 128], sizes = [8, 128], strides = [1, 1]} : vector<8x512xf32> to vector<8x128xf32>
    %244 = arith.negf %243 : vector<8x128xf32>
    %245 = math.exp %244 : vector<8x128xf32>
    %cst_73 = arith.constant 1.000000e+00 : f32
    %246 = vector.broadcast %cst_73 : f32 to vector<8x128xf32>
    %247 = arith.addf %246, %245 : vector<8x128xf32>
    %248 = arith.divf %246, %247 : vector<8x128xf32>
    %249 = vector.extract_strided_slice %236 {offsets = [0, 256], sizes = [8, 128], strides = [1, 1]} : vector<8x512xf32> to vector<8x128xf32>
    %250 = math.tanh %249 : vector<8x128xf32>
    %251 = vector.extract_strided_slice %236 {offsets = [0, 384], sizes = [8, 128], strides = [1, 1]} : vector<8x512xf32> to vector<8x128xf32>
    %252 = arith.negf %251 : vector<8x128xf32>
    %253 = math.exp %252 : vector<8x128xf32>
    %cst_74 = arith.constant 1.000000e+00 : f32
    %254 = vector.broadcast %cst_74 : f32 to vector<8x128xf32>
    %255 = arith.addf %254, %253 : vector<8x128xf32>
    %256 = arith.divf %254, %255 : vector<8x128xf32>
    %257 = arith.mulf %248, %224 : vector<8x128xf32>
    %258 = arith.mulf %242, %250 : vector<8x128xf32>
    %259 = arith.addf %257, %258 : vector<8x128xf32>
    %260 = math.tanh %259 : vector<8x128xf32>
    %261 = arith.mulf %256, %260 : vector<8x128xf32>
    %262 = arith.index_cast %c5_i32 : i32 to index
    %c0_75 = arith.constant 0 : index
    %c0_76 = arith.constant 0 : index
    %263 = vector.load %arg15[%262, %c0_75, %c0_76] : memref<8x8x128xf32, #tpu.memory_space<vmem>>, vector<1x8x128xf32>
    %264 = vector.shape_cast %263 : vector<1x8x128xf32> to vector<8x128xf32>
    %265 = vector.shape_cast %261 : vector<8x128xf32> to vector<1x8x128xf32>
    tpu.vector_store %arg15[%262, %c0_75, %c0_76], %265 {strides = array<i32>} : memref<8x8x128xf32, #tpu.memory_space<vmem>>, vector<1x8x128xf32>,
    %c6_i32 = arith.constant 6 : i32
    %266 = arith.index_cast %c6_i32 : i32 to index
    %c0_77 = arith.constant 0 : index
    %c0_78 = arith.constant 0 : index
    %267 = vector.load %arg14[%266, %c0_77, %c0_78] : memref<8x8x512xf32, #tpu.memory_space<vmem>>, vector<1x8x512xf32>
    %268 = vector.shape_cast %267 : vector<1x8x512xf32> to vector<8x512xf32>
    %269 = arith.truncf %261 : vector<8x128xf32> to vector<8x128xbf16>
    %cst_79 = arith.constant dense<0.000000e+00> : vector<8x512xf32>
    %270 = tpu.matmul %269, %55, %cst_79 {dimension_numbers = #tpu.dot_dimension_numbers<[1], [0], [0], [1], [0, 0, 1, 1], [], []>} : vector<8x128xbf16>, vector<128x512xbf16>, vector<8x512xf32> -> vector<8x512xf32>
    %271 = arith.addf %268, %270 : vector<8x512xf32>
    %272 = vector.extract_strided_slice %271 {offsets = [0, 0], sizes = [8, 128], strides = [1, 1]} : vector<8x512xf32> to vector<8x128xf32>
    %273 = arith.negf %272 : vector<8x128xf32>
    %274 = math.exp %273 : vector<8x128xf32>
    %cst_80 = arith.constant 1.000000e+00 : f32
    %275 = vector.broadcast %cst_80 : f32 to vector<8x128xf32>
    %276 = arith.addf %275, %274 : vector<8x128xf32>
    %277 = arith.divf %275, %276 : vector<8x128xf32>
    %278 = vector.extract_strided_slice %271 {offsets = [0, 128], sizes = [8, 128], strides = [1, 1]} : vector<8x512xf32> to vector<8x128xf32>
    %279 = arith.negf %278 : vector<8x128xf32>
    %280 = math.exp %279 : vector<8x128xf32>
    %cst_81 = arith.constant 1.000000e+00 : f32
    %281 = vector.broadcast %cst_81 : f32 to vector<8x128xf32>
    %282 = arith.addf %281, %280 : vector<8x128xf32>
    %283 = arith.divf %281, %282 : vector<8x128xf32>
    %284 = vector.extract_strided_slice %271 {offsets = [0, 256], sizes = [8, 128], strides = [1, 1]} : vector<8x512xf32> to vector<8x128xf32>
    %285 = math.tanh %284 : vector<8x128xf32>
    %286 = vector.extract_strided_slice %271 {offsets = [0, 384], sizes = [8, 128], strides = [1, 1]} : vector<8x512xf32> to vector<8x128xf32>
    %287 = arith.negf %286 : vector<8x128xf32>
    %288 = math.exp %287 : vector<8x128xf32>
    %cst_82 = arith.constant 1.000000e+00 : f32
    %289 = vector.broadcast %cst_82 : f32 to vector<8x128xf32>
    %290 = arith.addf %289, %288 : vector<8x128xf32>
    %291 = arith.divf %289, %290 : vector<8x128xf32>
    %292 = arith.mulf %283, %259 : vector<8x128xf32>
    %293 = arith.mulf %277, %285 : vector<8x128xf32>
    %294 = arith.addf %292, %293 : vector<8x128xf32>
    %295 = math.tanh %294 : vector<8x128xf32>
    %296 = arith.mulf %291, %295 : vector<8x128xf32>
    %297 = arith.index_cast %c6_i32 : i32 to index
    %c0_83 = arith.constant 0 : index
    %c0_84 = arith.constant 0 : index
    %298 = vector.load %arg15[%297, %c0_83, %c0_84] : memref<8x8x128xf32, #tpu.memory_space<vmem>>, vector<1x8x128xf32>
    %299 = vector.shape_cast %298 : vector<1x8x128xf32> to vector<8x128xf32>
    %300 = vector.shape_cast %296 : vector<8x128xf32> to vector<1x8x128xf32>
    tpu.vector_store %arg15[%297, %c0_83, %c0_84], %300 {strides = array<i32>} : memref<8x8x128xf32, #tpu.memory_space<vmem>>, vector<1x8x128xf32>,
    %c7_i32 = arith.constant 7 : i32
    %301 = arith.index_cast %c7_i32 : i32 to index
    %c0_85 = arith.constant 0 : index
    %c0_86 = arith.constant 0 : index
    %302 = vector.load %arg14[%301, %c0_85, %c0_86] : memref<8x8x512xf32, #tpu.memory_space<vmem>>, vector<1x8x512xf32>
    %303 = vector.shape_cast %302 : vector<1x8x512xf32> to vector<8x512xf32>
    %304 = arith.truncf %296 : vector<8x128xf32> to vector<8x128xbf16>
    %cst_87 = arith.constant dense<0.000000e+00> : vector<8x512xf32>
    %305 = tpu.matmul %304, %55, %cst_87 {dimension_numbers = #tpu.dot_dimension_numbers<[1], [0], [0], [1], [0, 0, 1, 1], [], []>} : vector<8x128xbf16>, vector<128x512xbf16>, vector<8x512xf32> -> vector<8x512xf32>
    %306 = arith.addf %303, %305 : vector<8x512xf32>
    %307 = vector.extract_strided_slice %306 {offsets = [0, 0], sizes = [8, 128], strides = [1, 1]} : vector<8x512xf32> to vector<8x128xf32>
    %308 = arith.negf %307 : vector<8x128xf32>
    %309 = math.exp %308 : vector<8x128xf32>
    %cst_88 = arith.constant 1.000000e+00 : f32
    %310 = vector.broadcast %cst_88 : f32 to vector<8x128xf32>
    %311 = arith.addf %310, %309 : vector<8x128xf32>
    %312 = arith.divf %310, %311 : vector<8x128xf32>
    %313 = vector.extract_strided_slice %306 {offsets = [0, 128], sizes = [8, 128], strides = [1, 1]} : vector<8x512xf32> to vector<8x128xf32>
    %314 = arith.negf %313 : vector<8x128xf32>
    %315 = math.exp %314 : vector<8x128xf32>
    %cst_89 = arith.constant 1.000000e+00 : f32
    %316 = vector.broadcast %cst_89 : f32 to vector<8x128xf32>
    %317 = arith.addf %316, %315 : vector<8x128xf32>
    %318 = arith.divf %316, %317 : vector<8x128xf32>
    %319 = vector.extract_strided_slice %306 {offsets = [0, 256], sizes = [8, 128], strides = [1, 1]} : vector<8x512xf32> to vector<8x128xf32>
    %320 = math.tanh %319 : vector<8x128xf32>
    %321 = vector.extract_strided_slice %306 {offsets = [0, 384], sizes = [8, 128], strides = [1, 1]} : vector<8x512xf32> to vector<8x128xf32>
    %322 = arith.negf %321 : vector<8x128xf32>
    %323 = math.exp %322 : vector<8x128xf32>
    %cst_90 = arith.constant 1.000000e+00 : f32
    %324 = vector.broadcast %cst_90 : f32 to vector<8x128xf32>
    %325 = arith.addf %324, %323 : vector<8x128xf32>
    %326 = arith.divf %324, %325 : vector<8x128xf32>
    %327 = arith.mulf %318, %294 : vector<8x128xf32>
    %328 = arith.mulf %312, %320 : vector<8x128xf32>
    %329 = arith.addf %327, %328 : vector<8x128xf32>
    %330 = math.tanh %329 : vector<8x128xf32>
    %331 = arith.mulf %326, %330 : vector<8x128xf32>
    %332 = arith.index_cast %c7_i32 : i32 to index
    %c0_91 = arith.constant 0 : index
    %c0_92 = arith.constant 0 : index
    %333 = vector.load %arg15[%332, %c0_91, %c0_92] : memref<8x8x128xf32, #tpu.memory_space<vmem>>, vector<1x8x128xf32>
    %334 = vector.shape_cast %333 : vector<1x8x128xf32> to vector<8x128xf32>
    %335 = vector.shape_cast %331 : vector<8x128xf32> to vector<1x8x128xf32>
    tpu.vector_store %arg15[%332, %c0_91, %c0_92], %335 {strides = array<i32>} : memref<8x8x128xf32, #tpu.memory_space<vmem>>, vector<1x8x128xf32>,
    %c8_i32 = arith.constant 8 : i32
    %c0_93 = arith.constant 0 : index
    %c0_94 = arith.constant 0 : index
    %c0_95 = arith.constant 0 : index
    %336 = vector.load %arg15[%c0_93, %c0_94, %c0_95] : memref<8x8x128xf32, #tpu.memory_space<vmem>>, vector<8x8x128xf32>
    %337 = vector.broadcast %4 : vector<1x8x128xf32> to vector<8x8x128xf32>
    %338 = arith.mulf %336, %337 : vector<8x8x128xf32>
    %cst_96 = arith.constant dense<0.000000e+00> : vector<128xf32>
    %339 = vector.multi_reduction <add>, %338, %cst_96 [0, 1] : vector<8x8x128xf32> to vector<128xf32>
    %340 = vector.shape_cast %339 : vector<128xf32> to vector<1x1x128xf32>
    %341 = arith.mulf %338, %338 : vector<8x8x128xf32>
    %cst_97 = arith.constant dense<0.000000e+00> : vector<128xf32>
    %342 = vector.multi_reduction <add>, %341, %cst_97 [0, 1] : vector<8x8x128xf32> to vector<128xf32>
    %343 = vector.shape_cast %342 : vector<128xf32> to vector<1x1x128xf32>
    %cst_98 = arith.constant 6.250000e-02 : f32
    %344 = vector.broadcast %cst_98 : f32 to vector<1x1x128xf32>
    %345 = arith.mulf %340, %344 : vector<1x1x128xf32>
    %cst_99 = arith.constant 6.250000e-02 : f32
    %346 = vector.broadcast %cst_99 : f32 to vector<1x1x128xf32>
    %347 = arith.mulf %343, %346 : vector<1x1x128xf32>
    %348 = arith.mulf %345, %345 : vector<1x1x128xf32>
    %349 = arith.subf %347, %348 : vector<1x1x128xf32>
    %c1 = arith.constant 1 : index
    %c0_100 = arith.constant 0 : index
    %350 = vector.load %arg3[%c1, %c0_100] : memref<3x128xf32, #tpu.memory_space<vmem>>, vector<1x128xf32>
    %351 = vector.shape_cast %350 : vector<1x128xf32> to vector<1x1x128xf32>
    %c1_101 = arith.constant 1 : index
    %c0_102 = arith.constant 0 : index
    %352 = vector.load %arg4[%c1_101, %c0_102] : memref<3x128xf32, #tpu.memory_space<vmem>>, vector<1x128xf32>
    %353 = vector.shape_cast %352 : vector<1x128xf32> to vector<1x1x128xf32>
    %cst_103 = arith.constant 9.99999974E-6 : f32
    %354 = vector.broadcast %cst_103 : f32 to vector<1x1x128xf32>
    %355 = arith.addf %349, %354 : vector<1x1x128xf32>
    %356 = math.rsqrt %355 : vector<1x1x128xf32>
    %357 = arith.mulf %351, %356 : vector<1x1x128xf32>
    %358 = arith.mulf %345, %357 : vector<1x1x128xf32>
    %359 = arith.subf %353, %358 : vector<1x1x128xf32>
    %360 = vector.broadcast %357 : vector<1x1x128xf32> to vector<8x8x128xf32>
    %361 = arith.mulf %336, %360 : vector<8x8x128xf32>
    %362 = vector.broadcast %359 : vector<1x1x128xf32> to vector<8x8x128xf32>
    %363 = arith.addf %361, %362 : vector<8x8x128xf32>
    %364 = vector.shape_cast %363 : vector<8x8x128xf32> to vector<64x128xf32>
    %365 = arith.truncf %364 : vector<64x128xf32> to vector<64x128xbf16>
    %c0_104 = arith.constant 0 : index
    %c0_105 = arith.constant 0 : index
    %366 = vector.load %arg8[%c0_104, %c0_105] : memref<128x512xbf16, #tpu.memory_space<vmem>>, vector<128x512xbf16>
    %cst_106 = arith.constant dense<0.000000e+00> : vector<64x512xf32>
    %367 = tpu.matmul %365, %366, %cst_106 {dimension_numbers = #tpu.dot_dimension_numbers<[1], [0], [0], [1], [0, 0, 1, 1], [], []>} : vector<64x128xbf16>, vector<128x512xbf16>, vector<64x512xf32> -> vector<64x512xf32>
    %c0_107 = arith.constant 0 : index
    %c0_108 = arith.constant 0 : index
    %368 = vector.load %arg10[%c0_107, %c0_108] : memref<1x512xf32, #tpu.memory_space<vmem>>, vector<1x512xf32>
    %369 = vector.broadcast %368 : vector<1x512xf32> to vector<64x512xf32>
    %370 = arith.addf %367, %369 : vector<64x512xf32>
    %371 = vector.shape_cast %370 : vector<64x512xf32> to vector<8x8x512xf32>
    %c0_109 = arith.constant 0 : index
    %c0_110 = arith.constant 0 : index
    %c0_111 = arith.constant 0 : index
    %372 = vector.load %arg14[%c0_109, %c0_110, %c0_111] : memref<8x8x512xf32, #tpu.memory_space<vmem>>, vector<8x8x512xf32>
    tpu.vector_store %arg14[%c0_109, %c0_110, %c0_111], %371 {strides = array<i32>} : memref<8x8x512xf32, #tpu.memory_space<vmem>>, vector<8x8x512xf32>,
    %c0_112 = arith.constant 0 : index
    %c0_113 = arith.constant 0 : index
    %373 = vector.load %arg9[%c0_112, %c0_113] : memref<128x512xbf16, #tpu.memory_space<vmem>>, vector<128x512xbf16>
    %c0_i32_114 = arith.constant 0 : i32
    %374 = arith.index_cast %c0_i32_114 : i32 to index
    %c0_115 = arith.constant 0 : index
    %c0_116 = arith.constant 0 : index
    %375 = vector.load %arg14[%374, %c0_115, %c0_116] : memref<8x8x512xf32, #tpu.memory_space<vmem>>, vector<1x8x512xf32>
    %376 = vector.shape_cast %375 : vector<1x8x512xf32> to vector<8x512xf32>
    %377 = arith.truncf %331 : vector<8x128xf32> to vector<8x128xbf16>
    %cst_117 = arith.constant dense<0.000000e+00> : vector<8x512xf32>
    %378 = tpu.matmul %377, %373, %cst_117 {dimension_numbers = #tpu.dot_dimension_numbers<[1], [0], [0], [1], [0, 0, 1, 1], [], []>} : vector<8x128xbf16>, vector<128x512xbf16>, vector<8x512xf32> -> vector<8x512xf32>
    %379 = arith.addf %376, %378 : vector<8x512xf32>
    %380 = vector.extract_strided_slice %379 {offsets = [0, 0], sizes = [8, 128], strides = [1, 1]} : vector<8x512xf32> to vector<8x128xf32>
    %381 = arith.negf %380 : vector<8x128xf32>
    %382 = math.exp %381 : vector<8x128xf32>
    %cst_118 = arith.constant 1.000000e+00 : f32
    %383 = vector.broadcast %cst_118 : f32 to vector<8x128xf32>
    %384 = arith.addf %383, %382 : vector<8x128xf32>
    %385 = arith.divf %383, %384 : vector<8x128xf32>
    %386 = vector.extract_strided_slice %379 {offsets = [0, 128], sizes = [8, 128], strides = [1, 1]} : vector<8x512xf32> to vector<8x128xf32>
    %387 = arith.negf %386 : vector<8x128xf32>
    %388 = math.exp %387 : vector<8x128xf32>
    %cst_119 = arith.constant 1.000000e+00 : f32
    %389 = vector.broadcast %cst_119 : f32 to vector<8x128xf32>
    %390 = arith.addf %389, %388 : vector<8x128xf32>
    %391 = arith.divf %389, %390 : vector<8x128xf32>
    %392 = vector.extract_strided_slice %379 {offsets = [0, 256], sizes = [8, 128], strides = [1, 1]} : vector<8x512xf32> to vector<8x128xf32>
    %393 = math.tanh %392 : vector<8x128xf32>
    %394 = vector.extract_strided_slice %379 {offsets = [0, 384], sizes = [8, 128], strides = [1, 1]} : vector<8x512xf32> to vector<8x128xf32>
    %395 = arith.negf %394 : vector<8x128xf32>
    %396 = math.exp %395 : vector<8x128xf32>
    %cst_120 = arith.constant 1.000000e+00 : f32
    %397 = vector.broadcast %cst_120 : f32 to vector<8x128xf32>
    %398 = arith.addf %397, %396 : vector<8x128xf32>
    %399 = arith.divf %397, %398 : vector<8x128xf32>
    %400 = arith.mulf %391, %329 : vector<8x128xf32>
    %401 = arith.mulf %385, %393 : vector<8x128xf32>
    %402 = arith.addf %400, %401 : vector<8x128xf32>
    %403 = math.tanh %402 : vector<8x128xf32>
    %404 = arith.mulf %399, %403 : vector<8x128xf32>
    %405 = arith.index_cast %c0_i32_114 : i32 to index
    %c0_121 = arith.constant 0 : index
    %c0_122 = arith.constant 0 : index
    %406 = vector.load %arg15[%405, %c0_121, %c0_122] : memref<8x8x128xf32, #tpu.memory_space<vmem>>, vector<1x8x128xf32>
    %407 = vector.shape_cast %406 : vector<1x8x128xf32> to vector<8x128xf32>
    %408 = vector.shape_cast %404 : vector<8x128xf32> to vector<1x8x128xf32>
    tpu.vector_store %arg15[%405, %c0_121, %c0_122], %408 {strides = array<i32>} : memref<8x8x128xf32, #tpu.memory_space<vmem>>, vector<1x8x128xf32>,
    %c1_i32_123 = arith.constant 1 : i32
    %409 = arith.index_cast %c1_i32_123 : i32 to index
    %c0_124 = arith.constant 0 : index
    %c0_125 = arith.constant 0 : index
    %410 = vector.load %arg14[%409, %c0_124, %c0_125] : memref<8x8x512xf32, #tpu.memory_space<vmem>>, vector<1x8x512xf32>
    %411 = vector.shape_cast %410 : vector<1x8x512xf32> to vector<8x512xf32>
    %412 = arith.truncf %404 : vector<8x128xf32> to vector<8x128xbf16>
    %cst_126 = arith.constant dense<0.000000e+00> : vector<8x512xf32>
    %413 = tpu.matmul %412, %373, %cst_126 {dimension_numbers = #tpu.dot_dimension_numbers<[1], [0], [0], [1], [0, 0, 1, 1], [], []>} : vector<8x128xbf16>, vector<128x512xbf16>, vector<8x512xf32> -> vector<8x512xf32>
    %414 = arith.addf %411, %413 : vector<8x512xf32>
    %415 = vector.extract_strided_slice %414 {offsets = [0, 0], sizes = [8, 128], strides = [1, 1]} : vector<8x512xf32> to vector<8x128xf32>
    %416 = arith.negf %415 : vector<8x128xf32>
    %417 = math.exp %416 : vector<8x128xf32>
    %cst_127 = arith.constant 1.000000e+00 : f32
    %418 = vector.broadcast %cst_127 : f32 to vector<8x128xf32>
    %419 = arith.addf %418, %417 : vector<8x128xf32>
    %420 = arith.divf %418, %419 : vector<8x128xf32>
    %421 = vector.extract_strided_slice %414 {offsets = [0, 128], sizes = [8, 128], strides = [1, 1]} : vector<8x512xf32> to vector<8x128xf32>
    %422 = arith.negf %421 : vector<8x128xf32>
    %423 = math.exp %422 : vector<8x128xf32>
    %cst_128 = arith.constant 1.000000e+00 : f32
    %424 = vector.broadcast %cst_128 : f32 to vector<8x128xf32>
    %425 = arith.addf %424, %423 : vector<8x128xf32>
    %426 = arith.divf %424, %425 : vector<8x128xf32>
    %427 = vector.extract_strided_slice %414 {offsets = [0, 256], sizes = [8, 128], strides = [1, 1]} : vector<8x512xf32> to vector<8x128xf32>
    %428 = math.tanh %427 : vector<8x128xf32>
    %429 = vector.extract_strided_slice %414 {offsets = [0, 384], sizes = [8, 128], strides = [1, 1]} : vector<8x512xf32> to vector<8x128xf32>
    %430 = arith.negf %429 : vector<8x128xf32>
    %431 = math.exp %430 : vector<8x128xf32>
    %cst_129 = arith.constant 1.000000e+00 : f32
    %432 = vector.broadcast %cst_129 : f32 to vector<8x128xf32>
    %433 = arith.addf %432, %431 : vector<8x128xf32>
    %434 = arith.divf %432, %433 : vector<8x128xf32>
    %435 = arith.mulf %426, %402 : vector<8x128xf32>
    %436 = arith.mulf %420, %428 : vector<8x128xf32>
    %437 = arith.addf %435, %436 : vector<8x128xf32>
    %438 = math.tanh %437 : vector<8x128xf32>
    %439 = arith.mulf %434, %438 : vector<8x128xf32>
    %440 = arith.index_cast %c1_i32_123 : i32 to index
    %c0_130 = arith.constant 0 : index
    %c0_131 = arith.constant 0 : index
    %441 = vector.load %arg15[%440, %c0_130, %c0_131] : memref<8x8x128xf32, #tpu.memory_space<vmem>>, vector<1x8x128xf32>
    %442 = vector.shape_cast %441 : vector<1x8x128xf32> to vector<8x128xf32>
    %443 = vector.shape_cast %439 : vector<8x128xf32> to vector<1x8x128xf32>
    tpu.vector_store %arg15[%440, %c0_130, %c0_131], %443 {strides = array<i32>} : memref<8x8x128xf32, #tpu.memory_space<vmem>>, vector<1x8x128xf32>,
    %c2_i32_132 = arith.constant 2 : i32
    %444 = arith.index_cast %c2_i32_132 : i32 to index
    %c0_133 = arith.constant 0 : index
    %c0_134 = arith.constant 0 : index
    %445 = vector.load %arg14[%444, %c0_133, %c0_134] : memref<8x8x512xf32, #tpu.memory_space<vmem>>, vector<1x8x512xf32>
    %446 = vector.shape_cast %445 : vector<1x8x512xf32> to vector<8x512xf32>
    %447 = arith.truncf %439 : vector<8x128xf32> to vector<8x128xbf16>
    %cst_135 = arith.constant dense<0.000000e+00> : vector<8x512xf32>
    %448 = tpu.matmul %447, %373, %cst_135 {dimension_numbers = #tpu.dot_dimension_numbers<[1], [0], [0], [1], [0, 0, 1, 1], [], []>} : vector<8x128xbf16>, vector<128x512xbf16>, vector<8x512xf32> -> vector<8x512xf32>
    %449 = arith.addf %446, %448 : vector<8x512xf32>
    %450 = vector.extract_strided_slice %449 {offsets = [0, 0], sizes = [8, 128], strides = [1, 1]} : vector<8x512xf32> to vector<8x128xf32>
    %451 = arith.negf %450 : vector<8x128xf32>
    %452 = math.exp %451 : vector<8x128xf32>
    %cst_136 = arith.constant 1.000000e+00 : f32
    %453 = vector.broadcast %cst_136 : f32 to vector<8x128xf32>
    %454 = arith.addf %453, %452 : vector<8x128xf32>
    %455 = arith.divf %453, %454 : vector<8x128xf32>
    %456 = vector.extract_strided_slice %449 {offsets = [0, 128], sizes = [8, 128], strides = [1, 1]} : vector<8x512xf32> to vector<8x128xf32>
    %457 = arith.negf %456 : vector<8x128xf32>
    %458 = math.exp %457 : vector<8x128xf32>
    %cst_137 = arith.constant 1.000000e+00 : f32
    %459 = vector.broadcast %cst_137 : f32 to vector<8x128xf32>
    %460 = arith.addf %459, %458 : vector<8x128xf32>
    %461 = arith.divf %459, %460 : vector<8x128xf32>
    %462 = vector.extract_strided_slice %449 {offsets = [0, 256], sizes = [8, 128], strides = [1, 1]} : vector<8x512xf32> to vector<8x128xf32>
    %463 = math.tanh %462 : vector<8x128xf32>
    %464 = vector.extract_strided_slice %449 {offsets = [0, 384], sizes = [8, 128], strides = [1, 1]} : vector<8x512xf32> to vector<8x128xf32>
    %465 = arith.negf %464 : vector<8x128xf32>
    %466 = math.exp %465 : vector<8x128xf32>
    %cst_138 = arith.constant 1.000000e+00 : f32
    %467 = vector.broadcast %cst_138 : f32 to vector<8x128xf32>
    %468 = arith.addf %467, %466 : vector<8x128xf32>
    %469 = arith.divf %467, %468 : vector<8x128xf32>
    %470 = arith.mulf %461, %437 : vector<8x128xf32>
    %471 = arith.mulf %455, %463 : vector<8x128xf32>
    %472 = arith.addf %470, %471 : vector<8x128xf32>
    %473 = math.tanh %472 : vector<8x128xf32>
    %474 = arith.mulf %469, %473 : vector<8x128xf32>
    %475 = arith.index_cast %c2_i32_132 : i32 to index
    %c0_139 = arith.constant 0 : index
    %c0_140 = arith.constant 0 : index
    %476 = vector.load %arg15[%475, %c0_139, %c0_140] : memref<8x8x128xf32, #tpu.memory_space<vmem>>, vector<1x8x128xf32>
    %477 = vector.shape_cast %476 : vector<1x8x128xf32> to vector<8x128xf32>
    %478 = vector.shape_cast %474 : vector<8x128xf32> to vector<1x8x128xf32>
    tpu.vector_store %arg15[%475, %c0_139, %c0_140], %478 {strides = array<i32>} : memref<8x8x128xf32, #tpu.memory_space<vmem>>, vector<1x8x128xf32>,
    %c3_i32_141 = arith.constant 3 : i32
    %479 = arith.index_cast %c3_i32_141 : i32 to index
    %c0_142 = arith.constant 0 : index
    %c0_143 = arith.constant 0 : index
    %480 = vector.load %arg14[%479, %c0_142, %c0_143] : memref<8x8x512xf32, #tpu.memory_space<vmem>>, vector<1x8x512xf32>
    %481 = vector.shape_cast %480 : vector<1x8x512xf32> to vector<8x512xf32>
    %482 = arith.truncf %474 : vector<8x128xf32> to vector<8x128xbf16>
    %cst_144 = arith.constant dense<0.000000e+00> : vector<8x512xf32>
    %483 = tpu.matmul %482, %373, %cst_144 {dimension_numbers = #tpu.dot_dimension_numbers<[1], [0], [0], [1], [0, 0, 1, 1], [], []>} : vector<8x128xbf16>, vector<128x512xbf16>, vector<8x512xf32> -> vector<8x512xf32>
    %484 = arith.addf %481, %483 : vector<8x512xf32>
    %485 = vector.extract_strided_slice %484 {offsets = [0, 0], sizes = [8, 128], strides = [1, 1]} : vector<8x512xf32> to vector<8x128xf32>
    %486 = arith.negf %485 : vector<8x128xf32>
    %487 = math.exp %486 : vector<8x128xf32>
    %cst_145 = arith.constant 1.000000e+00 : f32
    %488 = vector.broadcast %cst_145 : f32 to vector<8x128xf32>
    %489 = arith.addf %488, %487 : vector<8x128xf32>
    %490 = arith.divf %488, %489 : vector<8x128xf32>
    %491 = vector.extract_strided_slice %484 {offsets = [0, 128], sizes = [8, 128], strides = [1, 1]} : vector<8x512xf32> to vector<8x128xf32>
    %492 = arith.negf %491 : vector<8x128xf32>
    %493 = math.exp %492 : vector<8x128xf32>
    %cst_146 = arith.constant 1.000000e+00 : f32
    %494 = vector.broadcast %cst_146 : f32 to vector<8x128xf32>
    %495 = arith.addf %494, %493 : vector<8x128xf32>
    %496 = arith.divf %494, %495 : vector<8x128xf32>
    %497 = vector.extract_strided_slice %484 {offsets = [0, 256], sizes = [8, 128], strides = [1, 1]} : vector<8x512xf32> to vector<8x128xf32>
    %498 = math.tanh %497 : vector<8x128xf32>
    %499 = vector.extract_strided_slice %484 {offsets = [0, 384], sizes = [8, 128], strides = [1, 1]} : vector<8x512xf32> to vector<8x128xf32>
    %500 = arith.negf %499 : vector<8x128xf32>
    %501 = math.exp %500 : vector<8x128xf32>
    %cst_147 = arith.constant 1.000000e+00 : f32
    %502 = vector.broadcast %cst_147 : f32 to vector<8x128xf32>
    %503 = arith.addf %502, %501 : vector<8x128xf32>
    %504 = arith.divf %502, %503 : vector<8x128xf32>
    %505 = arith.mulf %496, %472 : vector<8x128xf32>
    %506 = arith.mulf %490, %498 : vector<8x128xf32>
    %507 = arith.addf %505, %506 : vector<8x128xf32>
    %508 = math.tanh %507 : vector<8x128xf32>
    %509 = arith.mulf %504, %508 : vector<8x128xf32>
    %510 = arith.index_cast %c3_i32_141 : i32 to index
    %c0_148 = arith.constant 0 : index
    %c0_149 = arith.constant 0 : index
    %511 = vector.load %arg15[%510, %c0_148, %c0_149] : memref<8x8x128xf32, #tpu.memory_space<vmem>>, vector<1x8x128xf32>
    %512 = vector.shape_cast %511 : vector<1x8x128xf32> to vector<8x128xf32>
    %513 = vector.shape_cast %509 : vector<8x128xf32> to vector<1x8x128xf32>
    tpu.vector_store %arg15[%510, %c0_148, %c0_149], %513 {strides = array<i32>} : memref<8x8x128xf32, #tpu.memory_space<vmem>>, vector<1x8x128xf32>,
    %c4_i32_150 = arith.constant 4 : i32
    %514 = arith.index_cast %c4_i32_150 : i32 to index
    %c0_151 = arith.constant 0 : index
    %c0_152 = arith.constant 0 : index
    %515 = vector.load %arg14[%514, %c0_151, %c0_152] : memref<8x8x512xf32, #tpu.memory_space<vmem>>, vector<1x8x512xf32>
    %516 = vector.shape_cast %515 : vector<1x8x512xf32> to vector<8x512xf32>
    %517 = arith.truncf %509 : vector<8x128xf32> to vector<8x128xbf16>
    %cst_153 = arith.constant dense<0.000000e+00> : vector<8x512xf32>
    %518 = tpu.matmul %517, %373, %cst_153 {dimension_numbers = #tpu.dot_dimension_numbers<[1], [0], [0], [1], [0, 0, 1, 1], [], []>} : vector<8x128xbf16>, vector<128x512xbf16>, vector<8x512xf32> -> vector<8x512xf32>
    %519 = arith.addf %516, %518 : vector<8x512xf32>
    %520 = vector.extract_strided_slice %519 {offsets = [0, 0], sizes = [8, 128], strides = [1, 1]} : vector<8x512xf32> to vector<8x128xf32>
    %521 = arith.negf %520 : vector<8x128xf32>
    %522 = math.exp %521 : vector<8x128xf32>
    %cst_154 = arith.constant 1.000000e+00 : f32
    %523 = vector.broadcast %cst_154 : f32 to vector<8x128xf32>
    %524 = arith.addf %523, %522 : vector<8x128xf32>
    %525 = arith.divf %523, %524 : vector<8x128xf32>
    %526 = vector.extract_strided_slice %519 {offsets = [0, 128], sizes = [8, 128], strides = [1, 1]} : vector<8x512xf32> to vector<8x128xf32>
    %527 = arith.negf %526 : vector<8x128xf32>
    %528 = math.exp %527 : vector<8x128xf32>
    %cst_155 = arith.constant 1.000000e+00 : f32
    %529 = vector.broadcast %cst_155 : f32 to vector<8x128xf32>
    %530 = arith.addf %529, %528 : vector<8x128xf32>
    %531 = arith.divf %529, %530 : vector<8x128xf32>
    %532 = vector.extract_strided_slice %519 {offsets = [0, 256], sizes = [8, 128], strides = [1, 1]} : vector<8x512xf32> to vector<8x128xf32>
    %533 = math.tanh %532 : vector<8x128xf32>
    %534 = vector.extract_strided_slice %519 {offsets = [0, 384], sizes = [8, 128], strides = [1, 1]} : vector<8x512xf32> to vector<8x128xf32>
    %535 = arith.negf %534 : vector<8x128xf32>
    %536 = math.exp %535 : vector<8x128xf32>
    %cst_156 = arith.constant 1.000000e+00 : f32
    %537 = vector.broadcast %cst_156 : f32 to vector<8x128xf32>
    %538 = arith.addf %537, %536 : vector<8x128xf32>
    %539 = arith.divf %537, %538 : vector<8x128xf32>
    %540 = arith.mulf %531, %507 : vector<8x128xf32>
    %541 = arith.mulf %525, %533 : vector<8x128xf32>
    %542 = arith.addf %540, %541 : vector<8x128xf32>
    %543 = math.tanh %542 : vector<8x128xf32>
    %544 = arith.mulf %539, %543 : vector<8x128xf32>
    %545 = arith.index_cast %c4_i32_150 : i32 to index
    %c0_157 = arith.constant 0 : index
    %c0_158 = arith.constant 0 : index
    %546 = vector.load %arg15[%545, %c0_157, %c0_158] : memref<8x8x128xf32, #tpu.memory_space<vmem>>, vector<1x8x128xf32>
    %547 = vector.shape_cast %546 : vector<1x8x128xf32> to vector<8x128xf32>
    %548 = vector.shape_cast %544 : vector<8x128xf32> to vector<1x8x128xf32>
    tpu.vector_store %arg15[%545, %c0_157, %c0_158], %548 {strides = array<i32>} : memref<8x8x128xf32, #tpu.memory_space<vmem>>, vector<1x8x128xf32>,
    %c5_i32_159 = arith.constant 5 : i32
    %549 = arith.index_cast %c5_i32_159 : i32 to index
    %c0_160 = arith.constant 0 : index
    %c0_161 = arith.constant 0 : index
    %550 = vector.load %arg14[%549, %c0_160, %c0_161] : memref<8x8x512xf32, #tpu.memory_space<vmem>>, vector<1x8x512xf32>
    %551 = vector.shape_cast %550 : vector<1x8x512xf32> to vector<8x512xf32>
    %552 = arith.truncf %544 : vector<8x128xf32> to vector<8x128xbf16>
    %cst_162 = arith.constant dense<0.000000e+00> : vector<8x512xf32>
    %553 = tpu.matmul %552, %373, %cst_162 {dimension_numbers = #tpu.dot_dimension_numbers<[1], [0], [0], [1], [0, 0, 1, 1], [], []>} : vector<8x128xbf16>, vector<128x512xbf16>, vector<8x512xf32> -> vector<8x512xf32>
    %554 = arith.addf %551, %553 : vector<8x512xf32>
    %555 = vector.extract_strided_slice %554 {offsets = [0, 0], sizes = [8, 128], strides = [1, 1]} : vector<8x512xf32> to vector<8x128xf32>
    %556 = arith.negf %555 : vector<8x128xf32>
    %557 = math.exp %556 : vector<8x128xf32>
    %cst_163 = arith.constant 1.000000e+00 : f32
    %558 = vector.broadcast %cst_163 : f32 to vector<8x128xf32>
    %559 = arith.addf %558, %557 : vector<8x128xf32>
    %560 = arith.divf %558, %559 : vector<8x128xf32>
    %561 = vector.extract_strided_slice %554 {offsets = [0, 128], sizes = [8, 128], strides = [1, 1]} : vector<8x512xf32> to vector<8x128xf32>
    %562 = arith.negf %561 : vector<8x128xf32>
    %563 = math.exp %562 : vector<8x128xf32>
    %cst_164 = arith.constant 1.000000e+00 : f32
    %564 = vector.broadcast %cst_164 : f32 to vector<8x128xf32>
    %565 = arith.addf %564, %563 : vector<8x128xf32>
    %566 = arith.divf %564, %565 : vector<8x128xf32>
    %567 = vector.extract_strided_slice %554 {offsets = [0, 256], sizes = [8, 128], strides = [1, 1]} : vector<8x512xf32> to vector<8x128xf32>
    %568 = math.tanh %567 : vector<8x128xf32>
    %569 = vector.extract_strided_slice %554 {offsets = [0, 384], sizes = [8, 128], strides = [1, 1]} : vector<8x512xf32> to vector<8x128xf32>
    %570 = arith.negf %569 : vector<8x128xf32>
    %571 = math.exp %570 : vector<8x128xf32>
    %cst_165 = arith.constant 1.000000e+00 : f32
    %572 = vector.broadcast %cst_165 : f32 to vector<8x128xf32>
    %573 = arith.addf %572, %571 : vector<8x128xf32>
    %574 = arith.divf %572, %573 : vector<8x128xf32>
    %575 = arith.mulf %566, %542 : vector<8x128xf32>
    %576 = arith.mulf %560, %568 : vector<8x128xf32>
    %577 = arith.addf %575, %576 : vector<8x128xf32>
    %578 = math.tanh %577 : vector<8x128xf32>
    %579 = arith.mulf %574, %578 : vector<8x128xf32>
    %580 = arith.index_cast %c5_i32_159 : i32 to index
    %c0_166 = arith.constant 0 : index
    %c0_167 = arith.constant 0 : index
    %581 = vector.load %arg15[%580, %c0_166, %c0_167] : memref<8x8x128xf32, #tpu.memory_space<vmem>>, vector<1x8x128xf32>
    %582 = vector.shape_cast %581 : vector<1x8x128xf32> to vector<8x128xf32>
    %583 = vector.shape_cast %579 : vector<8x128xf32> to vector<1x8x128xf32>
    tpu.vector_store %arg15[%580, %c0_166, %c0_167], %583 {strides = array<i32>} : memref<8x8x128xf32, #tpu.memory_space<vmem>>, vector<1x8x128xf32>,
    %c6_i32_168 = arith.constant 6 : i32
    %584 = arith.index_cast %c6_i32_168 : i32 to index
    %c0_169 = arith.constant 0 : index
    %c0_170 = arith.constant 0 : index
    %585 = vector.load %arg14[%584, %c0_169, %c0_170] : memref<8x8x512xf32, #tpu.memory_space<vmem>>, vector<1x8x512xf32>
    %586 = vector.shape_cast %585 : vector<1x8x512xf32> to vector<8x512xf32>
    %587 = arith.truncf %579 : vector<8x128xf32> to vector<8x128xbf16>
    %cst_171 = arith.constant dense<0.000000e+00> : vector<8x512xf32>
    %588 = tpu.matmul %587, %373, %cst_171 {dimension_numbers = #tpu.dot_dimension_numbers<[1], [0], [0], [1], [0, 0, 1, 1], [], []>} : vector<8x128xbf16>, vector<128x512xbf16>, vector<8x512xf32> -> vector<8x512xf32>
    %589 = arith.addf %586, %588 : vector<8x512xf32>
    %590 = vector.extract_strided_slice %589 {offsets = [0, 0], sizes = [8, 128], strides = [1, 1]} : vector<8x512xf32> to vector<8x128xf32>
    %591 = arith.negf %590 : vector<8x128xf32>
    %592 = math.exp %591 : vector<8x128xf32>
    %cst_172 = arith.constant 1.000000e+00 : f32
    %593 = vector.broadcast %cst_172 : f32 to vector<8x128xf32>
    %594 = arith.addf %593, %592 : vector<8x128xf32>
    %595 = arith.divf %593, %594 : vector<8x128xf32>
    %596 = vector.extract_strided_slice %589 {offsets = [0, 128], sizes = [8, 128], strides = [1, 1]} : vector<8x512xf32> to vector<8x128xf32>
    %597 = arith.negf %596 : vector<8x128xf32>
    %598 = math.exp %597 : vector<8x128xf32>
    %cst_173 = arith.constant 1.000000e+00 : f32
    %599 = vector.broadcast %cst_173 : f32 to vector<8x128xf32>
    %600 = arith.addf %599, %598 : vector<8x128xf32>
    %601 = arith.divf %599, %600 : vector<8x128xf32>
    %602 = vector.extract_strided_slice %589 {offsets = [0, 256], sizes = [8, 128], strides = [1, 1]} : vector<8x512xf32> to vector<8x128xf32>
    %603 = math.tanh %602 : vector<8x128xf32>
    %604 = vector.extract_strided_slice %589 {offsets = [0, 384], sizes = [8, 128], strides = [1, 1]} : vector<8x512xf32> to vector<8x128xf32>
    %605 = arith.negf %604 : vector<8x128xf32>
    %606 = math.exp %605 : vector<8x128xf32>
    %cst_174 = arith.constant 1.000000e+00 : f32
    %607 = vector.broadcast %cst_174 : f32 to vector<8x128xf32>
    %608 = arith.addf %607, %606 : vector<8x128xf32>
    %609 = arith.divf %607, %608 : vector<8x128xf32>
    %610 = arith.mulf %601, %577 : vector<8x128xf32>
    %611 = arith.mulf %595, %603 : vector<8x128xf32>
    %612 = arith.addf %610, %611 : vector<8x128xf32>
    %613 = math.tanh %612 : vector<8x128xf32>
    %614 = arith.mulf %609, %613 : vector<8x128xf32>
    %615 = arith.index_cast %c6_i32_168 : i32 to index
    %c0_175 = arith.constant 0 : index
    %c0_176 = arith.constant 0 : index
    %616 = vector.load %arg15[%615, %c0_175, %c0_176] : memref<8x8x128xf32, #tpu.memory_space<vmem>>, vector<1x8x128xf32>
    %617 = vector.shape_cast %616 : vector<1x8x128xf32> to vector<8x128xf32>
    %618 = vector.shape_cast %614 : vector<8x128xf32> to vector<1x8x128xf32>
    tpu.vector_store %arg15[%615, %c0_175, %c0_176], %618 {strides = array<i32>} : memref<8x8x128xf32, #tpu.memory_space<vmem>>, vector<1x8x128xf32>,
    %c7_i32_177 = arith.constant 7 : i32
    %619 = arith.index_cast %c7_i32_177 : i32 to index
    %c0_178 = arith.constant 0 : index
    %c0_179 = arith.constant 0 : index
    %620 = vector.load %arg14[%619, %c0_178, %c0_179] : memref<8x8x512xf32, #tpu.memory_space<vmem>>, vector<1x8x512xf32>
    %621 = vector.shape_cast %620 : vector<1x8x512xf32> to vector<8x512xf32>
    %622 = arith.truncf %614 : vector<8x128xf32> to vector<8x128xbf16>
    %cst_180 = arith.constant dense<0.000000e+00> : vector<8x512xf32>
    %623 = tpu.matmul %622, %373, %cst_180 {dimension_numbers = #tpu.dot_dimension_numbers<[1], [0], [0], [1], [0, 0, 1, 1], [], []>} : vector<8x128xbf16>, vector<128x512xbf16>, vector<8x512xf32> -> vector<8x512xf32>
    %624 = arith.addf %621, %623 : vector<8x512xf32>
    %625 = vector.extract_strided_slice %624 {offsets = [0, 0], sizes = [8, 128], strides = [1, 1]} : vector<8x512xf32> to vector<8x128xf32>
    %626 = arith.negf %625 : vector<8x128xf32>
    %627 = math.exp %626 : vector<8x128xf32>
    %cst_181 = arith.constant 1.000000e+00 : f32
    %628 = vector.broadcast %cst_181 : f32 to vector<8x128xf32>
    %629 = arith.addf %628, %627 : vector<8x128xf32>
    %630 = arith.divf %628, %629 : vector<8x128xf32>
    %631 = vector.extract_strided_slice %624 {offsets = [0, 128], sizes = [8, 128], strides = [1, 1]} : vector<8x512xf32> to vector<8x128xf32>
    %632 = arith.negf %631 : vector<8x128xf32>
    %633 = math.exp %632 : vector<8x128xf32>
    %cst_182 = arith.constant 1.000000e+00 : f32
    %634 = vector.broadcast %cst_182 : f32 to vector<8x128xf32>
    %635 = arith.addf %634, %633 : vector<8x128xf32>
    %636 = arith.divf %634, %635 : vector<8x128xf32>
    %637 = vector.extract_strided_slice %624 {offsets = [0, 256], sizes = [8, 128], strides = [1, 1]} : vector<8x512xf32> to vector<8x128xf32>
    %638 = math.tanh %637 : vector<8x128xf32>
    %639 = vector.extract_strided_slice %624 {offsets = [0, 384], sizes = [8, 128], strides = [1, 1]} : vector<8x512xf32> to vector<8x128xf32>
    %640 = arith.negf %639 : vector<8x128xf32>
    %641 = math.exp %640 : vector<8x128xf32>
    %cst_183 = arith.constant 1.000000e+00 : f32
    %642 = vector.broadcast %cst_183 : f32 to vector<8x128xf32>
    %643 = arith.addf %642, %641 : vector<8x128xf32>
    %644 = arith.divf %642, %643 : vector<8x128xf32>
    %645 = arith.mulf %636, %612 : vector<8x128xf32>
    %646 = arith.mulf %630, %638 : vector<8x128xf32>
    %647 = arith.addf %645, %646 : vector<8x128xf32>
    %648 = math.tanh %647 : vector<8x128xf32>
    %649 = arith.mulf %644, %648 : vector<8x128xf32>
    %650 = arith.index_cast %c7_i32_177 : i32 to index
    %c0_184 = arith.constant 0 : index
    %c0_185 = arith.constant 0 : index
    %651 = vector.load %arg15[%650, %c0_184, %c0_185] : memref<8x8x128xf32, #tpu.memory_space<vmem>>, vector<1x8x128xf32>
    %652 = vector.shape_cast %651 : vector<1x8x128xf32> to vector<8x128xf32>
    %653 = vector.shape_cast %649 : vector<8x128xf32> to vector<1x8x128xf32>
    tpu.vector_store %arg15[%650, %c0_184, %c0_185], %653 {strides = array<i32>} : memref<8x8x128xf32, #tpu.memory_space<vmem>>, vector<1x8x128xf32>,
    %c8_i32_186 = arith.constant 8 : i32
    %c0_187 = arith.constant 0 : index
    %c0_188 = arith.constant 0 : index
    %c0_189 = arith.constant 0 : index
    %654 = vector.load %arg15[%c0_187, %c0_188, %c0_189] : memref<8x8x128xf32, #tpu.memory_space<vmem>>, vector<8x8x128xf32>
    %655 = vector.broadcast %4 : vector<1x8x128xf32> to vector<8x8x128xf32>
    %656 = arith.mulf %654, %655 : vector<8x8x128xf32>
    %cst_190 = arith.constant dense<0.000000e+00> : vector<128xf32>
    %657 = vector.multi_reduction <add>, %656, %cst_190 [0, 1] : vector<8x8x128xf32> to vector<128xf32>
    %658 = vector.shape_cast %657 : vector<128xf32> to vector<1x1x128xf32>
    %659 = arith.mulf %656, %656 : vector<8x8x128xf32>
    %cst_191 = arith.constant dense<0.000000e+00> : vector<128xf32>
    %660 = vector.multi_reduction <add>, %659, %cst_191 [0, 1] : vector<8x8x128xf32> to vector<128xf32>
    %661 = vector.shape_cast %660 : vector<128xf32> to vector<1x1x128xf32>
    %cst_192 = arith.constant 6.250000e-02 : f32
    %662 = vector.broadcast %cst_192 : f32 to vector<1x1x128xf32>
    %663 = arith.mulf %658, %662 : vector<1x1x128xf32>
    %cst_193 = arith.constant 6.250000e-02 : f32
    %664 = vector.broadcast %cst_193 : f32 to vector<1x1x128xf32>
    %665 = arith.mulf %661, %664 : vector<1x1x128xf32>
    %666 = arith.mulf %663, %663 : vector<1x1x128xf32>
    %667 = arith.subf %665, %666 : vector<1x1x128xf32>
    %c2 = arith.constant 2 : index
    %c0_194 = arith.constant 0 : index
    %668 = vector.load %arg3[%c2, %c0_194] : memref<3x128xf32, #tpu.memory_space<vmem>>, vector<1x128xf32>
    %669 = vector.shape_cast %668 : vector<1x128xf32> to vector<1x1x128xf32>
    %c2_195 = arith.constant 2 : index
    %c0_196 = arith.constant 0 : index
    %670 = vector.load %arg4[%c2_195, %c0_196] : memref<3x128xf32, #tpu.memory_space<vmem>>, vector<1x128xf32>
    %671 = vector.shape_cast %670 : vector<1x128xf32> to vector<1x1x128xf32>
    %cst_197 = arith.constant 9.99999974E-6 : f32
    %672 = vector.broadcast %cst_197 : f32 to vector<1x1x128xf32>
    %673 = arith.addf %667, %672 : vector<1x1x128xf32>
    %674 = math.rsqrt %673 : vector<1x1x128xf32>
    %675 = arith.mulf %669, %674 : vector<1x1x128xf32>
    %676 = arith.mulf %663, %675 : vector<1x1x128xf32>
    %677 = arith.subf %671, %676 : vector<1x1x128xf32>
    %678 = vector.extract_strided_slice %654 {offsets = [7, 0, 0], sizes = [1, 8, 128], strides = [1, 1, 1]} : vector<8x8x128xf32> to vector<1x8x128xf32>
    %679 = vector.shape_cast %678 : vector<1x8x128xf32> to vector<8x128xf32>
    %680 = vector.shape_cast %675 : vector<1x1x128xf32> to vector<1x128xf32>
    %681 = vector.broadcast %680 : vector<1x128xf32> to vector<8x128xf32>
    %682 = arith.mulf %679, %681 : vector<8x128xf32>
    %683 = vector.shape_cast %677 : vector<1x1x128xf32> to vector<1x128xf32>
    %684 = vector.broadcast %683 : vector<1x128xf32> to vector<8x128xf32>
    %685 = arith.addf %682, %684 : vector<8x128xf32>
    %686 = arith.truncf %685 : vector<8x128xf32> to vector<8x128xbf16>
    %c0_198 = arith.constant 0 : index
    %c0_199 = arith.constant 0 : index
    %687 = vector.load %arg11[%c0_198, %c0_199] : memref<128x128xbf16, #tpu.memory_space<vmem>>, vector<128x128xbf16>
    %cst_200 = arith.constant dense<0.000000e+00> : vector<8x128xf32>
    %688 = tpu.matmul %686, %687, %cst_200 {dimension_numbers = #tpu.dot_dimension_numbers<[1], [0], [0], [1], [0, 0, 1, 1], [], []>} : vector<8x128xbf16>, vector<128x128xbf16>, vector<8x128xf32> -> vector<8x128xf32>
    %c0_201 = arith.constant 0 : index
    %c0_202 = arith.constant 0 : index
    %689 = vector.load %arg12[%c0_201, %c0_202] : memref<1x128xf32, #tpu.memory_space<vmem>>, vector<1x128xf32>
    %690 = vector.broadcast %689 : vector<1x128xf32> to vector<8x128xf32>
    %691 = arith.addf %688, %690 : vector<8x128xf32>
    %c0_203 = arith.constant 0 : index
    %c0_204 = arith.constant 0 : index
    %692 = vector.load %arg13[%c0_203, %c0_204] : memref<8x128xf32, #tpu.memory_space<vmem>>, vector<8x128xf32>
    tpu.vector_store %arg13[%c0_203, %c0_204], %691 {strides = array<i32>} : memref<8x128xf32, #tpu.memory_space<vmem>>, vector<8x128xf32>,
    return
  }
}

</mosaic_0001>

<llo_original>
// kernel: tpu_custom_call.1
$region0: #{tpu_custom_call.1}
  #allocation0 [shape = 'u32[]', space=smem, size = 0x4, offset = 0x4, fixed_abs, tag = 'smem constant byte address 0x4 - core index']
  #allocation1 [shape = 'u32[72,128]{1,0:T(1,128)}', space=vmem, size = 0x9000, scoped, tag = 'internal scratch']
  #allocation2 [shape = 'f32[8,8,512]{2,1,0:T(8,128)}', space=vmem, size = 0x20000, scoped, tag = 'scratch operand']
  #allocation3 [shape = 'f32[8,8,128]{2,1,0:T(8,128)}', space=vmem, size = 0x8000, scoped, tag = 'scratch operand']
  %s0 = inlined_call_operand.hbm [shape: bf16[8,8,128], index: 0, kind: input, shape index: {}]
  %s1 = inlined_call_operand.hbm [shape: bf16[128,128], index: 1, kind: input, shape index: {}]
  %s2 = inlined_call_operand.hbm [shape: f32[1,128], index: 2, kind: input, shape index: {}]
  %s3 = inlined_call_operand.hbm [shape: f32[3,128], index: 3, kind: input, shape index: {}]
  %s4 = inlined_call_operand.hbm [shape: f32[3,128], index: 4, kind: input, shape index: {}]
  %s5 = inlined_call_operand.hbm [shape: bf16[128,512], index: 5, kind: input, shape index: {}]
  %s6 = inlined_call_operand.hbm [shape: bf16[128,512], index: 6, kind: input, shape index: {}]
  %s7 = inlined_call_operand.vmem [shape: f32[1,512], index: 7, kind: input, shape index: {}]
  %s8 = inlined_call_operand.hbm [shape: bf16[128,512], index: 8, kind: input, shape index: {}]
  %s9 = inlined_call_operand.hbm [shape: bf16[128,512], index: 9, kind: input, shape index: {}]
  %s10 = inlined_call_operand.vmem [shape: f32[1,512], index: 10, kind: input, shape index: {}]
  %s11 = inlined_call_operand.hbm [shape: bf16[128,128], index: 11, kind: input, shape index: {}]
  %s12 = inlined_call_operand.vmem [shape: f32[1,128], index: 12, kind: input, shape index: {}]
  %s13 = inlined_call_operand.hbm [shape: f32[8,128], index: 13, kind: output, shape index: {}]
  %s14 = sld [smem:[#allocation0]]
  $region102: #{tpu_custom_call.1} parent=0
    _
  %s16 = ssub.s32 1, %s14
  %s17 = scalar_select 0, %s16, %s14
  $region1: #{tpu_custom_call.1} parent=0
    #allocation4 [shape = 'u8[16384]{0}', space=vmem, size = 0x4000, scoped, tag = 'input window, operand 0, single buffered']
    #allocation5 [shape = 's32[1]{0}', space=sflag, size = 0x4, scoped, tag = 'scoped memory for tpu_custom_call.1']
    #allocation6 [shape = 's32[1]{0}', space=sflag, size = 0x4, scoped, tag = 'scoped memory for tpu_custom_call.1']
    #allocation7 [shape = 'u8[32768]{0}', space=vmem, size = 0x8000, scoped, tag = 'input window, operand 1, single buffered']
    #allocation8 [shape = 's32[1]{0}', space=sflag, size = 0x4, scoped, tag = 'scoped memory for tpu_custom_call.1']
    #allocation9 [shape = 'u8[512]{0}', space=vmem, size = 0x400, scoped, tag = 'input window, operand 2, single buffered']
    #allocation10 [shape = 'u8[2048]{0}', space=vmem, size = 0x800, scoped, tag = 'input window, operand 3, single buffered']
    #allocation11 [shape = 's32[1]{0}', space=sflag, size = 0x4, scoped, tag = 'scoped memory for tpu_custom_call.1']
    #allocation12 [shape = 'u8[2048]{0}', space=vmem, size = 0x800, scoped, tag = 'input window, operand 4, single buffered']
    #allocation13 [shape = 'u8[131072]{0}', space=vmem, size = 0x20000, scoped, tag = 'input window, operand 5, single buffered']
    #allocation14 [shape = 's32[1]{0}', space=sflag, size = 0x4, scoped, tag = 'scoped memory for tpu_custom_call.1']
    #allocation15 [shape = 'u8[131072]{0}', space=vmem, size = 0x20000, scoped, tag = 'input window, operand 6, single buffered']
    #allocation16 [shape = 'u8[131072]{0}', space=vmem, size = 0x20000, scoped, tag = 'input window, operand 8, single buffered']
    #allocation17 [shape = 's32[1]{0}', space=sflag, size = 0x4, scoped, tag = 'scoped memory for tpu_custom_call.1']
    #allocation18 [shape = 'u8[131072]{0}', space=vmem, size = 0x20000, scoped, tag = 'input window, operand 9, single buffered']
    #allocation19 [shape = 'u8[32768]{0}', space=vmem, size = 0x8000, scoped, tag = 'input window, operand 11, single buffered']
    #allocation20 [shape = 's32[1]{0}', space=sflag, size = 0x4, scoped, tag = 'scoped memory for tpu_custom_call.1']
    #allocation21 [shape = 'u8[4096]{0}', space=vmem, size = 0x1000, scoped, tag = 'output window, operand 0, single buffered']
    %18 = vsyncpa [#allocation5], 0
    %19 = vsyncpa [#allocation8], 0
    %20 = vsyncpa [#allocation11], 0
    %21 = vsyncpa [#allocation14], 0
    %22 = vsyncpa [#allocation17], 0
    %23 = vsyncpa [#allocation20], 0
    %24 = vsyncpa [#allocation6], 0
    // Predicated region
    $region2: #{tpu_custom_call.1} parent=1 // pred_check
      _
    $region3: #{tpu_custom_call.1} parent=1 // pred_check_branch
      %26 = sbr.rel (0) target = $region5
    $region4: #{tpu_custom_call.1} parent=1 // pred_region
      %28 = vsyncadd [#allocation5], 0
      %s29 = sshll.u32 %s0, 4
      %s30 = int_to_ptr.hbm [resolvable:$true] %s29
      %s31 = sshll.u32 [#allocation4], 4
      %s32 = int_to_ptr.vmem [resolvable:$true] %s31
      %37 = dma.hbm_to_vmem [thread:$0]  %s30, 512, %s32, [#allocation5], 64, 64, 4
    $region5: #{tpu_custom_call.1} parent=1 // pred_fallthru
      _
    // Predicated region
    $region6: #{tpu_custom_call.1} parent=1 // pred_check
      _
    $region7: #{tpu_custom_call.1} parent=1 // pred_check_branch
      %39 = sbr.rel (0) target = $region9
    $region8: #{tpu_custom_call.1} parent=1 // pred_region
      %41 = vsyncadd [#allocation8], 0
      %s42 = sshll.u32 %s1, 4
      %s43 = int_to_ptr.hbm [resolvable:$true] %s42
      %s44 = sshll.u32 [#allocation7], 4
      %s45 = int_to_ptr.vmem [resolvable:$true] %s44
      %50 = dma.hbm_to_vmem [thread:$0]  %s43, 1024, %s45, [#allocation8], 64, 64, 4
    $region9: #{tpu_custom_call.1} parent=1 // pred_fallthru
      _
    // Predicated region
    $region10: #{tpu_custom_call.1} parent=1 // pred_check
      _
    $region11: #{tpu_custom_call.1} parent=1 // pred_check_branch
      %52 = sbr.rel (0) target = $region13
    $region12: #{tpu_custom_call.1} parent=1 // pred_region
      %54 = vsyncadd [#allocation8], 0
      %s56 = sshll.u32 %s2, 4
      %s57 = int_to_ptr.hbm [resolvable:$true] %s56
      %s58 = sshll.u32 [#allocation9], 4
      %s59 = int_to_ptr.vmem [resolvable:$true] %s58
      %61 = dma.hbm_to_vmem [thread:$0]  %s57, 16, %s59, [#allocation8]
    $region13: #{tpu_custom_call.1} parent=1 // pred_fallthru
      _
    // Predicated region
    $region14: #{tpu_custom_call.1} parent=1 // pred_check
      _
    $region15: #{tpu_custom_call.1} parent=1 // pred_check_branch
      %63 = sbr.rel (0) target = $region17
    $region16: #{tpu_custom_call.1} parent=1 // pred_region
      %65 = vsyncadd [#allocation11], 0
      %s67 = sshll.u32 %s3, 4
      %s68 = int_to_ptr.hbm [resolvable:$true] %s67
      %s69 = sshll.u32 [#allocation10], 4
      %s70 = int_to_ptr.vmem [resolvable:$true] %s69
      %72 = dma.hbm_to_vmem [thread:$0]  %s68, 64, %s70, [#allocation11]
    $region17: #{tpu_custom_call.1} parent=1 // pred_fallthru
      _
    // Predicated region
    $region18: #{tpu_custom_call.1} parent=1 // pred_check
      _
    $region19: #{tpu_custom_call.1} parent=1 // pred_check_branch
      %74 = sbr.rel (0) target = $region21
    $region20: #{tpu_custom_call.1} parent=1 // pred_region
      %76 = vsyncadd [#allocation11], 0
      %s78 = sshll.u32 %s4, 4
      %s79 = int_to_ptr.hbm [resolvable:$true] %s78
      %s80 = sshll.u32 [#allocation12], 4
      %s81 = int_to_ptr.vmem [resolvable:$true] %s80
      %83 = dma.hbm_to_vmem [thread:$0]  %s79, 64, %s81, [#allocation11]
    $region21: #{tpu_custom_call.1} parent=1 // pred_fallthru
      _
    // Predicated region
    $region22: #{tpu_custom_call.1} parent=1 // pred_check
      _
    $region23: #{tpu_custom_call.1} parent=1 // pred_check_branch
      %85 = sbr.rel (0) target = $region25
    $region24: #{tpu_custom_call.1} parent=1 // pred_region
      %87 = vsyncadd [#allocation14], 0
      %s88 = sshll.u32 %s5, 4
      %s89 = int_to_ptr.hbm [resolvable:$true] %s88
      %s90 = sshll.u32 [#allocation13], 4
      %s91 = int_to_ptr.vmem [resolvable:$true] %s90
      %96 = dma.hbm_to_vmem [thread:$0]  %s89, 4096, %s91, [#allocation14], 256, 256, 16
    $region25: #{tpu_custom_call.1} parent=1 // pred_fallthru
      _
    // Predicated region
    $region26: #{tpu_custom_call.1} parent=1 // pred_check
      _
    $region27: #{tpu_custom_call.1} parent=1 // pred_check_branch
      %98 = sbr.rel (0) target = $region29
    $region28: #{tpu_custom_call.1} parent=1 // pred_region
      %100 = vsyncadd [#allocation14], 0
      %s101 = sshll.u32 %s6, 4
      %s102 = int_to_ptr.hbm [resolvable:$true] %s101
      %s103 = sshll.u32 [#allocation15], 4
      %s104 = int_to_ptr.vmem [resolvable:$true] %s103
      %109 = dma.hbm_to_vmem [thread:$0]  %s102, 4096, %s104, [#allocation14], 256, 256, 16
    $region29: #{tpu_custom_call.1} parent=1 // pred_fallthru
      _
    // Predicated region
    $region30: #{tpu_custom_call.1} parent=1 // pred_check
      _
    $region31: #{tpu_custom_call.1} parent=1 // pred_check_branch
      %111 = sbr.rel (0) target = $region33
    $region32: #{tpu_custom_call.1} parent=1 // pred_region
      _
    $region33: #{tpu_custom_call.1} parent=1 // pred_fallthru
      _
    // Predicated region
    $region34: #{tpu_custom_call.1} parent=1 // pred_check
      _
    $region35: #{tpu_custom_call.1} parent=1 // pred_check_branch
      %113 = sbr.rel (0) target = $region37
    $region36: #{tpu_custom_call.1} parent=1 // pred_region
      %115 = vsyncadd [#allocation17], 0
      %s116 = sshll.u32 %s8, 4
      %s117 = int_to_ptr.hbm [resolvable:$true] %s116
      %s118 = sshll.u32 [#allocation16], 4
      %s119 = int_to_ptr.vmem [resolvable:$true] %s118
      %124 = dma.hbm_to_vmem [thread:$0]  %s117, 4096, %s119, [#allocation17], 256, 256, 16
    $region37: #{tpu_custom_call.1} parent=1 // pred_fallthru
      _
    // Predicated region
    $region38: #{tpu_custom_call.1} parent=1 // pred_check
      _
    $region39: #{tpu_custom_call.1} parent=1 // pred_check_branch
      %126 = sbr.rel (0) target = $region41
    $region40: #{tpu_custom_call.1} parent=1 // pred_region
      %128 = vsyncadd [#allocation17], 0
      %s129 = sshll.u32 %s9, 4
      %s130 = int_to_ptr.hbm [resolvable:$true] %s129
      %s131 = sshll.u32 [#allocation18], 4
      %s132 = int_to_ptr.vmem [resolvable:$true] %s131
      %137 = dma.hbm_to_vmem [thread:$0]  %s130, 4096, %s132, [#allocation17], 256, 256, 16
    $region41: #{tpu_custom_call.1} parent=1 // pred_fallthru
      _
    // Predicated region
    $region42: #{tpu_custom_call.1} parent=1 // pred_check
      _
    $region43: #{tpu_custom_call.1} parent=1 // pred_check_branch
      %139 = sbr.rel (0) target = $region45
    $region44: #{tpu_custom_call.1} parent=1 // pred_region
      _
    $region45: #{tpu_custom_call.1} parent=1 // pred_fallthru
      _
    // Predicated region
    $region46: #{tpu_custom_call.1} parent=1 // pred_check
      _
    $region47: #{tpu_custom_call.1} parent=1 // pred_check_branch
      %141 = sbr.rel (0) target = $region49
    $region48: #{tpu_custom_call.1} parent=1 // pred_region
      %143 = vsyncadd [#allocation20], 0
      %s144 = sshll.u32 %s11, 4
      %s145 = int_to_ptr.hbm [resolvable:$true] %s144
      %s146 = sshll.u32 [#allocation19], 4
      %s147 = int_to_ptr.vmem [resolvable:$true] %s146
      %152 = dma.hbm_to_vmem [thread:$0]  %s145, 1024, %s147, [#allocation20], 64, 64, 4
    $region49: #{tpu_custom_call.1} parent=1 // pred_fallthru
      _
    // Predicated region
    $region50: #{tpu_custom_call.1} parent=1 // pred_check
      _
    $region51: #{tpu_custom_call.1} parent=1 // pred_check_branch
      %154 = sbr.rel (0) target = $region53
    $region52: #{tpu_custom_call.1} parent=1 // pred_region
      _
    $region53: #{tpu_custom_call.1} parent=1 // pred_fallthru
      _
    // Predicated region
    $region54: #{tpu_custom_call.1} parent=1 // pred_check
      _
    $region55: #{tpu_custom_call.1} parent=1 // pred_check_branch
      %156 = sbr.rel (0) target = $region57
    $region56: #{tpu_custom_call.1} parent=1 // pred_region
      %158 = dma.done [#allocation5], 512
    $region57: #{tpu_custom_call.1} parent=1 // pred_fallthru
      _
    // Predicated region
    $region58: #{tpu_custom_call.1} parent=1 // pred_check
      _
    $region59: #{tpu_custom_call.1} parent=1 // pred_check_branch
      %160 = sbr.rel (0) target = $region61
    $region60: #{tpu_custom_call.1} parent=1 // pred_region
      %162 = dma.done [#allocation8], 1024
    $region61: #{tpu_custom_call.1} parent=1 // pred_fallthru
      _
    // Predicated region
    $region62: #{tpu_custom_call.1} parent=1 // pred_check
      _
    $region63: #{tpu_custom_call.1} parent=1 // pred_check_branch
      %164 = sbr.rel (0) target = $region65
    $region64: #{tpu_custom_call.1} parent=1 // pred_region
      %166 = dma.done [#allocation8], 16
    $region65: #{tpu_custom_call.1} parent=1 // pred_fallthru
      _
    // Predicated region
    $region66: #{tpu_custom_call.1} parent=1 // pred_check
      _
    $region67: #{tpu_custom_call.1} parent=1 // pred_check_branch
      %168 = sbr.rel (0) target = $region69
    $region68: #{tpu_custom_call.1} parent=1 // pred_region
      %170 = dma.done [#allocation11], 64
    $region69: #{tpu_custom_call.1} parent=1 // pred_fallthru
      _
    // Predicated region
    $region70: #{tpu_custom_call.1} parent=1 // pred_check
      _
    $region71: #{tpu_custom_call.1} parent=1 // pred_check_branch
      %172 = sbr.rel (0) target = $region73
    $region72: #{tpu_custom_call.1} parent=1 // pred_region
      %174 = dma.done [#allocation11], 64
    $region73: #{tpu_custom_call.1} parent=1 // pred_fallthru
      _
    // Predicated region
    $region74: #{tpu_custom_call.1} parent=1 // pred_check
      _
    $region75: #{tpu_custom_call.1} parent=1 // pred_check_branch
      %176 = sbr.rel (0) target = $region77
    $region76: #{tpu_custom_call.1} parent=1 // pred_region
      %178 = dma.done [#allocation14], 4096
    $region77: #{tpu_custom_call.1} parent=1 // pred_fallthru
      _
    // Predicated region
    $region78: #{tpu_custom_call.1} parent=1 // pred_check
      _
    $region79: #{tpu_custom_call.1} parent=1 // pred_check_branch
      %180 = sbr.rel (0) target = $region81
    $region80: #{tpu_custom_call.1} parent=1 // pred_region
      %182 = dma.done [#allocation14], 4096
    $region81: #{tpu_custom_call.1} parent=1 // pred_fallthru
      _
    // Predicated region
    $region82: #{tpu_custom_call.1} parent=1 // pred_check
      _
    $region83: #{tpu_custom_call.1} parent=1 // pred_check_branch
      %184 = sbr.rel (0) target = $region85
    $region84: #{tpu_custom_call.1} parent=1 // pred_region
      %186 = dma.done [#allocation17], 4096
    $region85: #{tpu_custom_call.1} parent=1 // pred_fallthru
      _
    // Predicated region
    $region86: #{tpu_custom_call.1} parent=1 // pred_check
      _
    $region87: #{tpu_custom_call.1} parent=1 // pred_check_branch
      %188 = sbr.rel (0) target = $region89
    $region88: #{tpu_custom_call.1} parent=1 // pred_region
      %190 = dma.done [#allocation17], 4096
    $region89: #{tpu_custom_call.1} parent=1 // pred_fallthru
      _
    // Predicated region
    $region90: #{tpu_custom_call.1} parent=1 // pred_check
      _
    $region91: #{tpu_custom_call.1} parent=1 // pred_check_branch
      %192 = sbr.rel (0) target = $region93
    $region92: #{tpu_custom_call.1} parent=1 // pred_region
      %194 = dma.done [#allocation20], 1024
    $region93: #{tpu_custom_call.1} parent=1 // pred_fallthru
      _
    %v196 = vlaneseq
    %v197 = vshrl.u32 %v196, 7
    %vm198 = vcmp.lt.s32.totalorder %v197, 2
    %v199 = vsel %vm198, 1, 0
    %v200 = vcvt.s32.f32 %v199
    %v201 = vld [vmem:[#allocation4] sm:$0xf]
    %v202 = vld [vmem:[#allocation4 + $0x4] sm:$0xf]
    %v203 = vld [vmem:[#allocation4 + $0x8] sm:$0xf]
    %v204 = vld [vmem:[#allocation4 + $0xc] sm:$0xf]
    %v205 = vld [vmem:[#allocation4 + $0x10] sm:$0xf]
    %v206 = vld [vmem:[#allocation4 + $0x14] sm:$0xf]
    %v207 = vld [vmem:[#allocation4 + $0x18] sm:$0xf]
    %v208 = vld [vmem:[#allocation4 + $0x1c] sm:$0xf]
    %v209 = vld [vmem:[#allocation7] sm:$0xf]
    %v210 = vld [vmem:[#allocation7 + $0x4] sm:$0xf]
    %v211 = vld [vmem:[#allocation7 + $0x8] sm:$0xf]
    %v212 = vld [vmem:[#allocation7 + $0xc] sm:$0xf]
    %v213 = vld [vmem:[#allocation7 + $0x10] sm:$0xf]
    %v214 = vld [vmem:[#allocation7 + $0x14] sm:$0xf]
    %v215 = vld [vmem:[#allocation7 + $0x18] sm:$0xf]
    %v216 = vld [vmem:[#allocation7 + $0x1c] sm:$0xf]
    %v217 = vld [vmem:[#allocation7 + $0x20] sm:$0xf]
    %v218 = vld [vmem:[#allocation7 + $0x24] sm:$0xf]
    %v219 = vld [vmem:[#allocation7 + $0x28] sm:$0xf]
    %v220 = vld [vmem:[#allocation7 + $0x2c] sm:$0xf]
    %v221 = vld [vmem:[#allocation7 + $0x30] sm:$0xf]
    %v222 = vld [vmem:[#allocation7 + $0x34] sm:$0xf]
    %v223 = vld [vmem:[#allocation7 + $0x38] sm:$0xf]
    %v224 = vld [vmem:[#allocation7 + $0x3c] sm:$0xf]
    %v225 = vld [vmem:[#allocation9] sm:$0x1]
    %v227 = vperm.slane %v225, 0
    %v237 = vunpack.c.l.b16 %v201
    %v238 = vunpack.c.l.b16 %v202
    %v239 = vunpack.c.l.b16 %v203
    %v240 = vunpack.c.l.b16 %v204
    %v241 = vunpack.c.l.b16 %v205
    %v242 = vunpack.c.l.b16 %v206
    %v243 = vunpack.c.l.b16 %v207
    %v244 = vunpack.c.l.b16 %v208
    %v245 = vpack.c.b16 %v238, %v237
    %v246 = vpack.c.b16 %v240, %v239
    %v247 = vpack.c.b16 %v242, %v241
    %v248 = vpack.c.b16 %v244, %v243
    %v269 = vunpack.c.l.b16 %v209
    %v270 = vunpack.c.l.b16 %v210
    %v271 = vunpack.c.l.b16 %v211
    %v272 = vunpack.c.l.b16 %v212
    %v273 = vunpack.c.l.b16 %v213
    %v274 = vunpack.c.l.b16 %v214
    %v275 = vunpack.c.l.b16 %v215
    %v276 = vunpack.c.l.b16 %v216
    %v277 = vunpack.c.l.b16 %v217
    %v278 = vunpack.c.l.b16 %v218
    %v279 = vunpack.c.l.b16 %v219
    %v280 = vunpack.c.l.b16 %v220
    %v281 = vunpack.c.l.b16 %v221
    %v282 = vunpack.c.l.b16 %v222
    %v283 = vunpack.c.l.b16 %v223
    %v284 = vunpack.c.l.b16 %v224
    %v285 = vpack.c.b16 %v270, %v269
    %v286 = vpack.c.b16 %v272, %v271
    %v287 = vpack.c.b16 %v274, %v273
    %v288 = vpack.c.b16 %v276, %v275
    %v289 = vpack.c.b16 %v278, %v277
    %v290 = vpack.c.b16 %v280, %v279
    %v291 = vpack.c.b16 %v282, %v281
    %v292 = vpack.c.b16 %v284, %v283
    %301 = vmatpush.bf16.msra.mxu0 %v292
    %302 = vmatpush.bf16.msra.mxu0 %v291
    %303 = vmatpush.bf16.msra.mxu0 %v290
    %304 = vmatpush.bf16.msra.mxu0 %v289
    %305 = vmatpush.bf16.msra.mxu0 %v288
    %306 = vmatpush.bf16.msra.mxu0 %v287
    %307 = vmatpush.bf16.msra.mxu0 %v286
    %308 = vmatpush.bf16.msra.mxu0 %v285
    %309 = vmatmul.bf16.gmra.mxu0 %v245
    %v310 = vpop.f32.mrf.mxu0
    %v311 = vadd.f32 %v227, %v310
    %v312 = vpop.f32.mrf.mxu0
    %v313 = vadd.f32 %v227, %v312
    %314 = vmatmul.bf16.gmra.mxu0 %v246
    %v315 = vpop.f32.mrf.mxu0
    %v316 = vadd.f32 %v227, %v315
    %v317 = vpop.f32.mrf.mxu0
    %v318 = vadd.f32 %v227, %v317
    %319 = vmatmul.bf16.gmra.mxu0 %v247
    %v320 = vpop.f32.mrf.mxu0
    %v321 = vadd.f32 %v227, %v320
    %v322 = vpop.f32.mrf.mxu0
    %v323 = vadd.f32 %v227, %v322
    %324 = vmatmul.bf16.gmra.mxu0 %v248
    %v325 = vpop.f32.mrf.mxu0
    %v326 = vadd.f32 %v227, %v325
    %v327 = vpop.f32.mrf.mxu0
    %v328 = vadd.f32 %v227, %v327
    %329 = vdwg.mxu0
    %v330 = vmul.f32 %v311, %v200
    %v331 = vmul.f32 %v313, %v200
    %v332 = vmul.f32 %v316, %v200
    %v333 = vmul.f32 %v318, %v200
    %v334 = vmul.f32 %v321, %v200
    %v335 = vmul.f32 %v323, %v200
    %v336 = vmul.f32 %v326, %v200
    %v337 = vmul.f32 %v328, %v200
    %v338 = vadd.f32 %v330, %v331
    %v339 = vadd.f32 %v338, %v332
    %v340 = vadd.f32 %v339, %v333
    %v341 = vadd.f32 %v340, %v334
    %v342 = vadd.f32 %v341, %v335
    %v343 = vadd.f32 %v342, %v336
    %v344 = vadd.f32 %v343, %v337
    %v345 = vrot.slane %v344, 4
    %v346 = vadd.f32 %v344, %v345
    %v347 = vrot.slane %v346, 2
    %v348 = vadd.f32 %v346, %v347
    %v349 = vrot.slane %v348, 1
    %v350 = vadd.f32 %v348, %v349
    %v351 = vmul.f32 %v330, %v330
    %v352 = vmul.f32 %v331, %v331
    %v353 = vmul.f32 %v332, %v332
    %v354 = vmul.f32 %v333, %v333
    %v355 = vmul.f32 %v334, %v334
    %v356 = vmul.f32 %v335, %v335
    %v357 = vmul.f32 %v336, %v336
    %v358 = vmul.f32 %v337, %v337
    %v359 = vadd.f32 %v351, %v352
    %v360 = vadd.f32 %v359, %v353
    %v361 = vadd.f32 %v360, %v354
    %v362 = vadd.f32 %v361, %v355
    %v363 = vadd.f32 %v362, %v356
    %v364 = vadd.f32 %v363, %v357
    %v365 = vadd.f32 %v364, %v358
    %v366 = vrot.slane %v365, 4
    %v367 = vadd.f32 %v365, %v366
    %v368 = vrot.slane %v367, 2
    %v369 = vadd.f32 %v367, %v368
    %v370 = vrot.slane %v369, 1
    %v371 = vadd.f32 %v369, %v370
    %v372 = vmul.f32 %v350, 0.0625
    %v373 = vmul.f32 %v371, 0.0625
    %v374 = vmul.f32 %v372, %v372
    %v375 = vsub.f32 %v373, %v374
    %v376 = vld [vmem:[#allocation10] sm:$0x1]
    %v377 = vld [vmem:[#allocation12] sm:$0x1]
    %v378 = vadd.f32 %v375, 1e-05
    %v379 = vrsqrt.pop %v378
    %v380 = vmul.f32 %v379, %v378
    %v381 = vmul.f32 %v380, %v379
    %v382 = vmul.f32 0.5, %v381
    %v383 = vsub.f32 1.5, %v382
    %v384 = vmul.f32 %v379, %v383
    %vm385 = vweird.f32 %v378
    %vm386 = vweird.f32 %v379
    %vm387 = vmor %vm385, %vm386
    %v388 = vsel %vm387, %v379, %v384
    %v389 = vmul.f32 %v376, %v388
    %v390 = vmul.f32 %v372, %v389
    %v391 = vsub.f32 %v377, %v390
    %v392 = vperm.slane %v389, 0
    %v393 = vmul.f32 %v311, %v392
    %v394 = vmul.f32 %v313, %v392
    %v395 = vmul.f32 %v316, %v392
    %v396 = vmul.f32 %v318, %v392
    %v397 = vmul.f32 %v321, %v392
    %v398 = vmul.f32 %v323, %v392
    %v399 = vmul.f32 %v326, %v392
    %v400 = vmul.f32 %v328, %v392
    %v401 = vperm.slane %v391, 0
    %v402 = vadd.f32 %v393, %v401
    %v403 = vadd.f32 %v394, %v401
    %v404 = vadd.f32 %v395, %v401
    %v405 = vadd.f32 %v396, %v401
    %v406 = vadd.f32 %v397, %v401
    %v407 = vadd.f32 %v398, %v401
    %v408 = vadd.f32 %v399, %v401
    %v409 = vadd.f32 %v400, %v401
    %vm410 = vcmp.ge.f32.partialorder %v402, 0.0
    %vm411 = vcmp.ge.f32.partialorder %v403, 0.0
    %vm412 = vcmp.ge.f32.partialorder %v404, 0.0
    %vm413 = vcmp.ge.f32.partialorder %v405, 0.0
    %vm414 = vcmp.ge.f32.partialorder %v406, 0.0
    %vm415 = vcmp.ge.f32.partialorder %v407, 0.0
    %vm416 = vcmp.ge.f32.partialorder %v408, 0.0
    %vm417 = vcmp.ge.f32.partialorder %v409, 0.0
    %v418 = vmul.f32 %v402, 0.01
    %v419 = vmul.f32 %v403, 0.01
    %v420 = vmul.f32 %v404, 0.01
    %v421 = vmul.f32 %v405, 0.01
    %v422 = vmul.f32 %v406, 0.01
    %v423 = vmul.f32 %v407, 0.01
    %v424 = vmul.f32 %v408, 0.01
    %v425 = vmul.f32 %v409, 0.01
    %v426 = vsel %vm410, %v402, %v418
    %v427 = vsel %vm411, %v403, %v419
    %v428 = vsel %vm412, %v404, %v420
    %v429 = vsel %vm413, %v405, %v421
    %v430 = vsel %vm414, %v406, %v422
    %v431 = vsel %vm415, %v407, %v423
    %v432 = vsel %vm416, %v408, %v424
    %v433 = vsel %vm417, %v409, %v425
    %v434 = vpack.c.bf16 %v427, %v426
    %v435 = vpack.c.bf16 %v429, %v428
    %v436 = vpack.c.bf16 %v431, %v430
    %v437 = vpack.c.bf16 %v433, %v432
    %v438 = vld [vmem:[#allocation13] sm:$0xff]
    %v439 = vld [vmem:[#allocation13 + $0x8] sm:$0xff]
    %v440 = vld [vmem:[#allocation13 + $0x10] sm:$0xff]
    %v441 = vld [vmem:[#allocation13 + $0x18] sm:$0xff]
    %v442 = vld [vmem:[#allocation13 + $0x20] sm:$0xff]
    %v443 = vld [vmem:[#allocation13 + $0x28] sm:$0xff]
    %v444 = vld [vmem:[#allocation13 + $0x30] sm:$0xff]
    %v445 = vld [vmem:[#allocation13 + $0x38] sm:$0xff]
    %v446 = vld [vmem:[#allocation13 + $0x40] sm:$0xff]
    %v447 = vld [vmem:[#allocation13 + $0x48] sm:$0xff]
    %v448 = vld [vmem:[#allocation13 + $0x50] sm:$0xff]
    %v449 = vld [vmem:[#allocation13 + $0x58] sm:$0xff]
    %v450 = vld [vmem:[#allocation13 + $0x60] sm:$0xff]
    %v451 = vld [vmem:[#allocation13 + $0x68] sm:$0xff]
    %v452 = vld [vmem:[#allocation13 + $0x70] sm:$0xff]
    %v453 = vld [vmem:[#allocation13 + $0x78] sm:$0xff]
    %v454 = vld [vmem:[#allocation13 + $0x80] sm:$0xff]
    %v455 = vld [vmem:[#allocation13 + $0x88] sm:$0xff]
    %v456 = vld [vmem:[#allocation13 + $0x90] sm:$0xff]
    %v457 = vld [vmem:[#allocation13 + $0x98] sm:$0xff]
    %v458 = vld [vmem:[#allocation13 + $0xa0] sm:$0xff]
    %v459 = vld [vmem:[#allocation13 + $0xa8] sm:$0xff]
    %v460 = vld [vmem:[#allocation13 + $0xb0] sm:$0xff]
    %v461 = vld [vmem:[#allocation13 + $0xb8] sm:$0xff]
    %v462 = vld [vmem:[#allocation13 + $0xc0] sm:$0xff]
    %v463 = vld [vmem:[#allocation13 + $0xc8] sm:$0xff]
    %v464 = vld [vmem:[#allocation13 + $0xd0] sm:$0xff]
    %v465 = vld [vmem:[#allocation13 + $0xd8] sm:$0xff]
    %v466 = vld [vmem:[#allocation13 + $0xe0] sm:$0xff]
    %v467 = vld [vmem:[#allocation13 + $0xe8] sm:$0xff]
    %v468 = vld [vmem:[#allocation13 + $0xf0] sm:$0xff]
    %v469 = vld [vmem:[#allocation13 + $0xf8] sm:$0xff]
    %v470 = vld [vmem:[%s7] sm:$0xf]
    %v472 = vperm.slane %v470, 0
    %v473 = vperm.slane %v470, 1
    %v474 = vperm.slane %v470, 2
    %v475 = vperm.slane %v470, 3
    %v512 = vunpack.c.l.b16 %v438
    %v513 = vunpack.c.h.b16 %v438
    %v514 = vunpack.c.l.b16 %v439
    %v515 = vunpack.c.h.b16 %v439
    %v516 = vunpack.c.l.b16 %v440
    %v517 = vunpack.c.h.b16 %v440
    %v518 = vunpack.c.l.b16 %v441
    %v519 = vunpack.c.h.b16 %v441
    %v520 = vunpack.c.l.b16 %v442
    %v521 = vunpack.c.h.b16 %v442
    %v522 = vunpack.c.l.b16 %v443
    %v523 = vunpack.c.h.b16 %v443
    %v524 = vunpack.c.l.b16 %v444
    %v525 = vunpack.c.h.b16 %v444
    %v526 = vunpack.c.l.b16 %v445
    %v527 = vunpack.c.h.b16 %v445
    %v528 = vunpack.c.l.b16 %v446
    %v529 = vunpack.c.h.b16 %v446
    %v530 = vunpack.c.l.b16 %v447
    %v531 = vunpack.c.h.b16 %v447
    %v532 = vunpack.c.l.b16 %v448
    %v533 = vunpack.c.h.b16 %v448
    %v534 = vunpack.c.l.b16 %v449
    %v535 = vunpack.c.h.b16 %v449
    %v536 = vunpack.c.l.b16 %v450
    %v537 = vunpack.c.h.b16 %v450
    %v538 = vunpack.c.l.b16 %v451
    %v539 = vunpack.c.h.b16 %v451
    %v540 = vunpack.c.l.b16 %v452
    %v541 = vunpack.c.h.b16 %v452
    %v542 = vunpack.c.l.b16 %v453
    %v543 = vunpack.c.h.b16 %v453
    %v544 = vunpack.c.l.b16 %v454
    %v545 = vunpack.c.h.b16 %v454
    %v546 = vunpack.c.l.b16 %v455
    %v547 = vunpack.c.h.b16 %v455
    %v548 = vunpack.c.l.b16 %v456
    %v549 = vunpack.c.h.b16 %v456
    %v550 = vunpack.c.l.b16 %v457
    %v551 = vunpack.c.h.b16 %v457
    %v552 = vunpack.c.l.b16 %v458
    %v553 = vunpack.c.h.b16 %v458
    %v554 = vunpack.c.l.b16 %v459
    %v555 = vunpack.c.h.b16 %v459
    %v556 = vunpack.c.l.b16 %v460
    %v557 = vunpack.c.h.b16 %v460
    %v558 = vunpack.c.l.b16 %v461
    %v559 = vunpack.c.h.b16 %v461
    %v560 = vunpack.c.l.b16 %v462
    %v561 = vunpack.c.h.b16 %v462
    %v562 = vunpack.c.l.b16 %v463
    %v563 = vunpack.c.h.b16 %v463
    %v564 = vunpack.c.l.b16 %v464
    %v565 = vunpack.c.h.b16 %v464
    %v566 = vunpack.c.l.b16 %v465
    %v567 = vunpack.c.h.b16 %v465
    %v568 = vunpack.c.l.b16 %v466
    %v569 = vunpack.c.h.b16 %v466
    %v570 = vunpack.c.l.b16 %v467
    %v571 = vunpack.c.h.b16 %v467
    %v572 = vunpack.c.l.b16 %v468
    %v573 = vunpack.c.h.b16 %v468
    %v574 = vunpack.c.l.b16 %v469
    %v575 = vunpack.c.h.b16 %v469
    %v576 = vpack.c.b16 %v516, %v512
    %v577 = vpack.c.b16 %v517, %v513
    %v578 = vpack.c.b16 %v518, %v514
    %v579 = vpack.c.b16 %v519, %v515
    %v580 = vpack.c.b16 %v524, %v520
    %v581 = vpack.c.b16 %v525, %v521
    %v582 = vpack.c.b16 %v526, %v522
    %v583 = vpack.c.b16 %v527, %v523
    %v584 = vpack.c.b16 %v532, %v528
    %v585 = vpack.c.b16 %v533, %v529
    %v586 = vpack.c.b16 %v534, %v530
    %v587 = vpack.c.b16 %v535, %v531
    %v588 = vpack.c.b16 %v540, %v536
    %v589 = vpack.c.b16 %v541, %v537
    %v590 = vpack.c.b16 %v542, %v538
    %v591 = vpack.c.b16 %v543, %v539
    %v592 = vpack.c.b16 %v548, %v544
    %v593 = vpack.c.b16 %v549, %v545
    %v594 = vpack.c.b16 %v550, %v546
    %v595 = vpack.c.b16 %v551, %v547
    %v596 = vpack.c.b16 %v556, %v552
    %v597 = vpack.c.b16 %v557, %v553
    %v598 = vpack.c.b16 %v558, %v554
    %v599 = vpack.c.b16 %v559, %v555
    %v600 = vpack.c.b16 %v564, %v560
    %v601 = vpack.c.b16 %v565, %v561
    %v602 = vpack.c.b16 %v566, %v562
    %v603 = vpack.c.b16 %v567, %v563
    %v604 = vpack.c.b16 %v572, %v568
    %v605 = vpack.c.b16 %v573, %v569
    %v606 = vpack.c.b16 %v574, %v570
    %v607 = vpack.c.b16 %v575, %v571
    %640 = vmatpush.bf16.msra.mxu0 %v604
    %641 = vmatpush.bf16.msra.mxu0 %v600
    %642 = vmatpush.bf16.msra.mxu0 %v596
    %643 = vmatpush.bf16.msra.mxu0 %v592
    %644 = vmatpush.bf16.msra.mxu0 %v588
    %645 = vmatpush.bf16.msra.mxu0 %v584
    %646 = vmatpush.bf16.msra.mxu0 %v580
    %647 = vmatpush.bf16.msra.mxu0 %v576
    %648 = vmatmul.bf16.gmra.mxu0 %v434
    %v649 = vpop.f32.mrf.mxu0
    %v650 = vadd.f32 %v472, %v649
    %v651 = vpop.f32.mrf.mxu0
    %v652 = vadd.f32 %v472, %v651
    %653 = vmatmul.bf16.gmra.mxu0 %v435
    %v654 = vpop.f32.mrf.mxu0
    %v655 = vadd.f32 %v472, %v654
    %v656 = vpop.f32.mrf.mxu0
    %v657 = vadd.f32 %v472, %v656
    %658 = vmatmul.bf16.gmra.mxu0 %v436
    %v659 = vpop.f32.mrf.mxu0
    %v660 = vadd.f32 %v472, %v659
    %v661 = vpop.f32.mrf.mxu0
    %v662 = vadd.f32 %v472, %v661
    %663 = vmatmul.bf16.gmra.mxu0 %v437
    %v664 = vpop.f32.mrf.mxu0
    %v665 = vadd.f32 %v472, %v664
    %v666 = vpop.f32.mrf.mxu0
    %v667 = vadd.f32 %v472, %v666
    %668 = vdwg.mxu0
    %669 = vmatpush.bf16.msra.mxu0 %v605
    %670 = vmatpush.bf16.msra.mxu0 %v601
    %671 = vmatpush.bf16.msra.mxu0 %v597
    %672 = vmatpush.bf16.msra.mxu0 %v593
    %673 = vmatpush.bf16.msra.mxu0 %v589
    %674 = vmatpush.bf16.msra.mxu0 %v585
    %675 = vmatpush.bf16.msra.mxu0 %v581
    %676 = vmatpush.bf16.msra.mxu0 %v577
    %677 = vmatmul.bf16.gmra.mxu0 %v434
    %v678 = vpop.f32.mrf.mxu0
    %v679 = vadd.f32 %v473, %v678
    %v680 = vpop.f32.mrf.mxu0
    %v681 = vadd.f32 %v473, %v680
    %682 = vmatmul.bf16.gmra.mxu0 %v435
    %v683 = vpop.f32.mrf.mxu0
    %v684 = vadd.f32 %v473, %v683
    %v685 = vpop.f32.mrf.mxu0
    %v686 = vadd.f32 %v473, %v685
    %687 = vmatmul.bf16.gmra.mxu0 %v436
    %v688 = vpop.f32.mrf.mxu0
    %v689 = vadd.f32 %v473, %v688
    %v690 = vpop.f32.mrf.mxu0
    %v691 = vadd.f32 %v473, %v690
    %692 = vmatmul.bf16.gmra.mxu0 %v437
    %v693 = vpop.f32.mrf.mxu0
    %v694 = vadd.f32 %v473, %v693
    %v695 = vpop.f32.mrf.mxu0
    %v696 = vadd.f32 %v473, %v695
    %697 = vdwg.mxu0
    %698 = vmatpush.bf16.msra.mxu0 %v606
    %699 = vmatpush.bf16.msra.mxu0 %v602
    %700 = vmatpush.bf16.msra.mxu0 %v598
    %701 = vmatpush.bf16.msra.mxu0 %v594
    %702 = vmatpush.bf16.msra.mxu0 %v590
    %703 = vmatpush.bf16.msra.mxu0 %v586
    %704 = vmatpush.bf16.msra.mxu0 %v582
    %705 = vmatpush.bf16.msra.mxu0 %v578
    %706 = vmatmul.bf16.gmra.mxu0 %v434
    %v707 = vpop.f32.mrf.mxu0
    %v708 = vadd.f32 %v474, %v707
    %v709 = vpop.f32.mrf.mxu0
    %v710 = vadd.f32 %v474, %v709
    %711 = vmatmul.bf16.gmra.mxu0 %v435
    %v712 = vpop.f32.mrf.mxu0
    %v713 = vadd.f32 %v474, %v712
    %v714 = vpop.f32.mrf.mxu0
    %v715 = vadd.f32 %v474, %v714
    %716 = vmatmul.bf16.gmra.mxu0 %v436
    %v717 = vpop.f32.mrf.mxu0
    %v718 = vadd.f32 %v474, %v717
    %v719 = vpop.f32.mrf.mxu0
    %v720 = vadd.f32 %v474, %v719
    %721 = vmatmul.bf16.gmra.mxu0 %v437
    %v722 = vpop.f32.mrf.mxu0
    %v723 = vadd.f32 %v474, %v722
    %v724 = vpop.f32.mrf.mxu0
    %v725 = vadd.f32 %v474, %v724
    %726 = vdwg.mxu0
    %727 = vmatpush.bf16.msra.mxu0 %v607
    %728 = vmatpush.bf16.msra.mxu0 %v603
    %729 = vmatpush.bf16.msra.mxu0 %v599
    %730 = vmatpush.bf16.msra.mxu0 %v595
    %731 = vmatpush.bf16.msra.mxu0 %v591
    %732 = vmatpush.bf16.msra.mxu0 %v587
    %733 = vmatpush.bf16.msra.mxu0 %v583
    %734 = vmatpush.bf16.msra.mxu0 %v579
    %735 = vmatmul.bf16.gmra.mxu0 %v434
    %v736 = vpop.f32.mrf.mxu0
    %v737 = vadd.f32 %v475, %v736
    %v738 = vpop.f32.mrf.mxu0
    %v739 = vadd.f32 %v475, %v738
    %740 = vmatmul.bf16.gmra.mxu0 %v435
    %v741 = vpop.f32.mrf.mxu0
    %v742 = vadd.f32 %v475, %v741
    %v743 = vpop.f32.mrf.mxu0
    %v744 = vadd.f32 %v475, %v743
    %745 = vmatmul.bf16.gmra.mxu0 %v436
    %v746 = vpop.f32.mrf.mxu0
    %v747 = vadd.f32 %v475, %v746
    %v748 = vpop.f32.mrf.mxu0
    %v749 = vadd.f32 %v475, %v748
    %750 = vmatmul.bf16.gmra.mxu0 %v437
    %v751 = vpop.f32.mrf.mxu0
    %v752 = vadd.f32 %v475, %v751
    %v753 = vpop.f32.mrf.mxu0
    %v754 = vadd.f32 %v475, %v753
    %755 = vdwg.mxu0
    %756 = vst [vmem:[#allocation2] sm:$0xff] %v650
    %757 = vst [vmem:[#allocation2 + $0x8] sm:$0xff] %v679
    %758 = vst [vmem:[#allocation2 + $0x10] sm:$0xff] %v708
    %759 = vst [vmem:[#allocation2 + $0x18] sm:$0xff] %v737
    %760 = vst [vmem:[#allocation2 + $0x20] sm:$0xff] %v652
    %761 = vst [vmem:[#allocation2 + $0x28] sm:$0xff] %v681
    %762 = vst [vmem:[#allocation2 + $0x30] sm:$0xff] %v710
    %763 = vst [vmem:[#allocation2 + $0x38] sm:$0xff] %v739
    %764 = vst [vmem:[#allocation2 + $0x40] sm:$0xff] %v655
    %765 = vst [vmem:[#allocation2 + $0x48] sm:$0xff] %v684
    %766 = vst [vmem:[#allocation2 + $0x50] sm:$0xff] %v713
    %767 = vst [vmem:[#allocation2 + $0x58] sm:$0xff] %v742
    %768 = vst [vmem:[#allocation2 + $0x60] sm:$0xff] %v657
    %769 = vst [vmem:[#allocation2 + $0x68] sm:$0xff] %v686
    %770 = vst [vmem:[#allocation2 + $0x70] sm:$0xff] %v715
    %771 = vst [vmem:[#allocation2 + $0x78] sm:$0xff] %v744
    %772 = vst [vmem:[#allocation2 + $0x80] sm:$0xff] %v660
    %773 = vst [vmem:[#allocation2 + $0x88] sm:$0xff] %v689
    %774 = vst [vmem:[#allocation2 + $0x90] sm:$0xff] %v718
    %775 = vst [vmem:[#allocation2 + $0x98] sm:$0xff] %v747
    %776 = vst [vmem:[#allocation2 + $0xa0] sm:$0xff] %v662
    %777 = vst [vmem:[#allocation2 + $0xa8] sm:$0xff] %v691
    %778 = vst [vmem:[#allocation2 + $0xb0] sm:$0xff] %v720
    %779 = vst [vmem:[#allocation2 + $0xb8] sm:$0xff] %v749
    %780 = vst [vmem:[#allocation2 + $0xc0] sm:$0xff] %v665
    %781 = vst [vmem:[#allocation2 + $0xc8] sm:$0xff] %v694
    %782 = vst [vmem:[#allocation2 + $0xd0] sm:$0xff] %v723
    %783 = vst [vmem:[#allocation2 + $0xd8] sm:$0xff] %v752
    %784 = vst [vmem:[#allocation2 + $0xe0] sm:$0xff] %v667
    %785 = vst [vmem:[#allocation2 + $0xe8] sm:$0xff] %v696
    %786 = vst [vmem:[#allocation2 + $0xf0] sm:$0xff] %v725
    %787 = vst [vmem:[#allocation2 + $0xf8] sm:$0xff] %v754
    %v788 = vld [vmem:[#allocation15] sm:$0xff]
    %v789 = vld [vmem:[#allocation15 + $0x8] sm:$0xff]
    %v790 = vld [vmem:[#allocation15 + $0x10] sm:$0xff]
    %v791 = vld [vmem:[#allocation15 + $0x18] sm:$0xff]
    %v792 = vld [vmem:[#allocation15 + $0x20] sm:$0xff]
    %v793 = vld [vmem:[#allocation15 + $0x28] sm:$0xff]
    %v794 = vld [vmem:[#allocation15 + $0x30] sm:$0xff]
    %v795 = vld [vmem:[#allocation15 + $0x38] sm:$0xff]
    %v796 = vld [vmem:[#allocation15 + $0x40] sm:$0xff]
    %v797 = vld [vmem:[#allocation15 + $0x48] sm:$0xff]
    %v798 = vld [vmem:[#allocation15 + $0x50] sm:$0xff]
    %v799 = vld [vmem:[#allocation15 + $0x58] sm:$0xff]
    %v800 = vld [vmem:[#allocation15 + $0x60] sm:$0xff]
    %v801 = vld [vmem:[#allocation15 + $0x68] sm:$0xff]
    %v802 = vld [vmem:[#allocation15 + $0x70] sm:$0xff]
    %v803 = vld [vmem:[#allocation15 + $0x78] sm:$0xff]
    %v804 = vld [vmem:[#allocation15 + $0x80] sm:$0xff]
    %v805 = vld [vmem:[#allocation15 + $0x88] sm:$0xff]
    %v806 = vld [vmem:[#allocation15 + $0x90] sm:$0xff]
    %v807 = vld [vmem:[#allocation15 + $0x98] sm:$0xff]
    %v808 = vld [vmem:[#allocation15 + $0xa0] sm:$0xff]
    %v809 = vld [vmem:[#allocation15 + $0xa8] sm:$0xff]
    %v810 = vld [vmem:[#allocation15 + $0xb0] sm:$0xff]
    %v811 = vld [vmem:[#allocation15 + $0xb8] sm:$0xff]
    %v812 = vld [vmem:[#allocation15 + $0xc0] sm:$0xff]
    %v813 = vld [vmem:[#allocation15 + $0xc8] sm:$0xff]
    %v814 = vld [vmem:[#allocation15 + $0xd0] sm:$0xff]
    %v815 = vld [vmem:[#allocation15 + $0xd8] sm:$0xff]
    %v816 = vld [vmem:[#allocation15 + $0xe0] sm:$0xff]
    %v817 = vld [vmem:[#allocation15 + $0xe8] sm:$0xff]
    %v818 = vld [vmem:[#allocation15 + $0xf0] sm:$0xff]
    %v819 = vld [vmem:[#allocation15 + $0xf8] sm:$0xff]
    %v820 = vld [vmem:[#allocation2] sm:$0xff]
    %v821 = vld [vmem:[#allocation2 + $0x8] sm:$0xff]
    %v822 = vld [vmem:[#allocation2 + $0x10] sm:$0xff]
    %v823 = vld [vmem:[#allocation2 + $0x18] sm:$0xff]
    %v856 = vunpack.c.l.b16 %v788
    %v857 = vunpack.c.h.b16 %v788
    %v858 = vunpack.c.l.b16 %v789
    %v859 = vunpack.c.h.b16 %v789
    %v860 = vunpack.c.l.b16 %v790
    %v861 = vunpack.c.h.b16 %v790
    %v862 = vunpack.c.l.b16 %v791
    %v863 = vunpack.c.h.b16 %v791
    %v864 = vunpack.c.l.b16 %v792
    %v865 = vunpack.c.h.b16 %v792
    %v866 = vunpack.c.l.b16 %v793
    %v867 = vunpack.c.h.b16 %v793
    %v868 = vunpack.c.l.b16 %v794
    %v869 = vunpack.c.h.b16 %v794
    %v870 = vunpack.c.l.b16 %v795
    %v871 = vunpack.c.h.b16 %v795
    %v872 = vunpack.c.l.b16 %v796
    %v873 = vunpack.c.h.b16 %v796
    %v874 = vunpack.c.l.b16 %v797
    %v875 = vunpack.c.h.b16 %v797
    %v876 = vunpack.c.l.b16 %v798
    %v877 = vunpack.c.h.b16 %v798
    %v878 = vunpack.c.l.b16 %v799
    %v879 = vunpack.c.h.b16 %v799
    %v880 = vunpack.c.l.b16 %v800
    %v881 = vunpack.c.h.b16 %v800
    %v882 = vunpack.c.l.b16 %v801
    %v883 = vunpack.c.h.b16 %v801
    %v884 = vunpack.c.l.b16 %v802
    %v885 = vunpack.c.h.b16 %v802
    %v886 = vunpack.c.l.b16 %v803
    %v887 = vunpack.c.h.b16 %v803
    %v888 = vunpack.c.l.b16 %v804
    %v889 = vunpack.c.h.b16 %v804
    %v890 = vunpack.c.l.b16 %v805
    %v891 = vunpack.c.h.b16 %v805
    %v892 = vunpack.c.l.b16 %v806
    %v893 = vunpack.c.h.b16 %v806
    %v894 = vunpack.c.l.b16 %v807
    %v895 = vunpack.c.h.b16 %v807
    %v896 = vunpack.c.l.b16 %v808
    %v897 = vunpack.c.h.b16 %v808
    %v898 = vunpack.c.l.b16 %v809
    %v899 = vunpack.c.h.b16 %v809
    %v900 = vunpack.c.l.b16 %v810
    %v901 = vunpack.c.h.b16 %v810
    %v902 = vunpack.c.l.b16 %v811
    %v903 = vunpack.c.h.b16 %v811
    %v904 = vunpack.c.l.b16 %v812
    %v905 = vunpack.c.h.b16 %v812
    %v906 = vunpack.c.l.b16 %v813
    %v907 = vunpack.c.h.b16 %v813
    %v908 = vunpack.c.l.b16 %v814
    %v909 = vunpack.c.h.b16 %v814
    %v910 = vunpack.c.l.b16 %v815
    %v911 = vunpack.c.h.b16 %v815
    %v912 = vunpack.c.l.b16 %v816
    %v913 = vunpack.c.h.b16 %v816
    %v914 = vunpack.c.l.b16 %v817
    %v915 = vunpack.c.h.b16 %v817
    %v916 = vunpack.c.l.b16 %v818
    %v917 = vunpack.c.h.b16 %v818
    %v918 = vunpack.c.l.b16 %v819
    %v919 = vunpack.c.h.b16 %v819
    %v920 = vpack.c.b16 %v860, %v856
    %v921 = vpack.c.b16 %v861, %v857
    %v922 = vpack.c.b16 %v862, %v858
    %v923 = vpack.c.b16 %v863, %v859
    %v924 = vpack.c.b16 %v868, %v864
    %v925 = vpack.c.b16 %v869, %v865
    %v926 = vpack.c.b16 %v870, %v866
    %v927 = vpack.c.b16 %v871, %v867
    %v928 = vpack.c.b16 %v876, %v872
    %v929 = vpack.c.b16 %v877, %v873
    %v930 = vpack.c.b16 %v878, %v874
    %v931 = vpack.c.b16 %v879, %v875
    %v932 = vpack.c.b16 %v884, %v880
    %v933 = vpack.c.b16 %v885, %v881
    %v934 = vpack.c.b16 %v886, %v882
    %v935 = vpack.c.b16 %v887, %v883
    %v936 = vpack.c.b16 %v892, %v888
    %v937 = vpack.c.b16 %v893, %v889
    %v938 = vpack.c.b16 %v894, %v890
    %v939 = vpack.c.b16 %v895, %v891
    %v940 = vpack.c.b16 %v900, %v896
    %v941 = vpack.c.b16 %v901, %v897
    %v942 = vpack.c.b16 %v902, %v898
    %v943 = vpack.c.b16 %v903, %v899
    %v944 = vpack.c.b16 %v908, %v904
    %v945 = vpack.c.b16 %v909, %v905
    %v946 = vpack.c.b16 %v910, %v906
    %v947 = vpack.c.b16 %v911, %v907
    %v948 = vpack.c.b16 %v916, %v912
    %v949 = vpack.c.b16 %v917, %v913
    %v950 = vpack.c.b16 %v918, %v914
    %v951 = vpack.c.b16 %v919, %v915
    %984 = vmatpush.bf16.msra.mxu0 %v948
    %985 = vmatpush.bf16.msra.mxu0 %v944
    %986 = vmatpush.bf16.msra.mxu0 %v940
    %987 = vmatpush.bf16.msra.mxu0 %v936
    %988 = vmatpush.bf16.msra.mxu0 %v932
    %989 = vmatpush.bf16.msra.mxu0 %v928
    %990 = vmatpush.bf16.msra.mxu0 %v924
    %991 = vmatpush.bf16.msra.mxu0 %v920
    %992 = vmatmul.bf16.gmra.mxu0 0
    %v993 = vpop.f32.mrf.mxu0
    %v994 = vadd.f32 0.0, %v993
    %v995 = vpop.f32.mrf.mxu0
    %996 = vdwg.mxu0
    %997 = vmatpush.bf16.msra.mxu0 %v949
    %998 = vmatpush.bf16.msra.mxu0 %v945
    %999 = vmatpush.bf16.msra.mxu0 %v941
    %1000 = vmatpush.bf16.msra.mxu0 %v937
    %1001 = vmatpush.bf16.msra.mxu0 %v933
    %1002 = vmatpush.bf16.msra.mxu0 %v929
    %1003 = vmatpush.bf16.msra.mxu0 %v925
    %1004 = vmatpush.bf16.msra.mxu0 %v921
    %1005 = vmatmul.bf16.gmra.mxu0 0
    %v1006 = vpop.f32.mrf.mxu0
    %v1007 = vadd.f32 0.0, %v1006
    %v1008 = vpop.f32.mrf.mxu0
    %1009 = vdwg.mxu0
    %1010 = vmatpush.bf16.msra.mxu0 %v950
    %1011 = vmatpush.bf16.msra.mxu0 %v946
    %1012 = vmatpush.bf16.msra.mxu0 %v942
    %1013 = vmatpush.bf16.msra.mxu0 %v938
    %1014 = vmatpush.bf16.msra.mxu0 %v934
    %1015 = vmatpush.bf16.msra.mxu0 %v930
    %1016 = vmatpush.bf16.msra.mxu0 %v926
    %1017 = vmatpush.bf16.msra.mxu0 %v922
    %1018 = vmatmul.bf16.gmra.mxu0 0
    %v1019 = vpop.f32.mrf.mxu0
    %v1020 = vadd.f32 0.0, %v1019
    %v1021 = vpop.f32.mrf.mxu0
    %1022 = vdwg.mxu0
    %1023 = vmatpush.bf16.msra.mxu0 %v951
    %1024 = vmatpush.bf16.msra.mxu0 %v947
    %1025 = vmatpush.bf16.msra.mxu0 %v943
    %1026 = vmatpush.bf16.msra.mxu0 %v939
    %1027 = vmatpush.bf16.msra.mxu0 %v935
    %1028 = vmatpush.bf16.msra.mxu0 %v931
    %1029 = vmatpush.bf16.msra.mxu0 %v927
    %1030 = vmatpush.bf16.msra.mxu0 %v923
    %1031 = vmatmul.bf16.gmra.mxu0 0
    %v1032 = vpop.f32.mrf.mxu0
    %v1033 = vadd.f32 0.0, %v1032
    %v1034 = vpop.f32.mrf.mxu0
    %1035 = vdwg.mxu0
    %v1036 = vadd.f32 %v820, %v994
    %v1037 = vadd.f32 %v821, %v1007
    %v1038 = vadd.f32 %v822, %v1020
    %v1039 = vadd.f32 %v823, %v1033
    %v1040 = vxor.u32 %v1036, 2147483648
    %v1041 = vmul.f32 %v1040, 1.442695
    %v1042 = vpow.pop %v1041
    %v1043 = vadd.f32 %v1042, 1.0
    %v1044 = vrcp.pop %v1043
    %v1045 = vmul.f32 %v1043, %v1044
    %v1046 = vsub.f32 1.0, %v1045
    %v1047 = vmul.f32 %v1044, %v1046
    %v1048 = vadd.f32 %v1044, %v1047
    %vm1049 = vweird.f32 %v1043
    %vm1050 = vweird.f32 %v1044
    %vm1051 = vmor %vm1049, %vm1050
    %v1052 = vsel %vm1051, %v1044, %v1048
    %v1053 = vand.u32 2147483647, %v1043
    %vm1054 = vcmp.eq.f32.partialorder %v1053, 8.507059e+37
    %v1055 = vand.u32 %v1043, 2147483648
    %v1056 = vor.u32 1.1754944e-38, %v1055
    %v1057 = vsel %vm1054, %v1056, %v1052
    %v1058 = vmul.f32 1.0, %v1057
    %v1059 = vxor.u32 %v1037, 2147483648
    %v1060 = vmul.f32 %v1059, 1.442695
    %v1061 = vpow.pop %v1060
    %v1062 = vadd.f32 %v1061, 1.0
    %v1063 = vrcp.pop %v1062
    %v1064 = vmul.f32 %v1062, %v1063
    %v1065 = vsub.f32 1.0, %v1064
    %v1066 = vmul.f32 %v1063, %v1065
    %v1067 = vadd.f32 %v1063, %v1066
    %vm1068 = vweird.f32 %v1062
    %vm1069 = vweird.f32 %v1063
    %vm1070 = vmor %vm1068, %vm1069
    %v1071 = vsel %vm1070, %v1063, %v1067
    %v1072 = vand.u32 2147483647, %v1062
    %vm1073 = vcmp.eq.f32.partialorder %v1072, 8.507059e+37
    %v1074 = vand.u32 %v1062, 2147483648
    %v1075 = vor.u32 1.1754944e-38, %v1074
    %v1076 = vsel %vm1073, %v1075, %v1071
    %v1077 = vmul.f32 1.0, %v1076
    %v1078 = vtanh.pop %v1038
    %v1079 = vxor.u32 %v1039, 2147483648
    %v1080 = vmul.f32 %v1079, 1.442695
    %v1081 = vpow.pop %v1080
    %v1082 = vadd.f32 %v1081, 1.0
    %v1083 = vrcp.pop %v1082
    %v1084 = vmul.f32 %v1082, %v1083
    %v1085 = vsub.f32 1.0, %v1084
    %v1086 = vmul.f32 %v1083, %v1085
    %v1087 = vadd.f32 %v1083, %v1086
    %vm1088 = vweird.f32 %v1082
    %vm1089 = vweird.f32 %v1083
    %vm1090 = vmor %vm1088, %vm1089
    %v1091 = vsel %vm1090, %v1083, %v1087
    %v1092 = vand.u32 2147483647, %v1082
    %vm1093 = vcmp.eq.f32.partialorder %v1092, 8.507059e+37
    %v1094 = vand.u32 %v1082, 2147483648
    %v1095 = vor.u32 1.1754944e-38, %v1094
    %v1096 = vsel %vm1093, %v1095, %v1091
    %v1097 = vmul.f32 1.0, %v1096
    %v1098 = vmul.f32 %v1077, 0.0
    %v1099 = vmul.f32 %v1058, %v1078
    %v1100 = vadd.f32 %v1098, %v1099
    %v1101 = vtanh.pop %v1100
    %v1102 = vmul.f32 %v1097, %v1101
    %1103 = vst [vmem:[#allocation3] sm:$0xff] %v1102
    %s1104 = scalar_lea.vmem [#allocation2], 32
    %v1105 = vld [vmem:[%s1104] sm:$0xff]
    %v1106 = vld [vmem:[%s1104 + $0x8] sm:$0xff]
    %v1107 = vld [vmem:[%s1104 + $0x10] sm:$0xff]
    %v1108 = vld [vmem:[%s1104 + $0x18] sm:$0xff]
    %v1109 = vpack.c.bf16 %v1102, %v1102
    %1110 = vmatpush.bf16.msra.mxu0 %v948
    %1111 = vmatpush.bf16.msra.mxu0 %v944
    %1112 = vmatpush.bf16.msra.mxu0 %v940
    %1113 = vmatpush.bf16.msra.mxu0 %v936
    %1114 = vmatpush.bf16.msra.mxu0 %v932
    %1115 = vmatpush.bf16.msra.mxu0 %v928
    %1116 = vmatpush.bf16.msra.mxu0 %v924
    %1117 = vmatpush.bf16.msra.mxu0 %v920
    %1118 = vmatmul.bf16.gmra.mxu0 %v1109
    %v1119 = vpop.f32.mrf.mxu0
    %v1120 = vadd.f32 0.0, %v1119
    %v1121 = vpop.f32.mrf.mxu0
    %1122 = vdwg.mxu0
    %1123 = vmatpush.bf16.msra.mxu0 %v949
    %1124 = vmatpush.bf16.msra.mxu0 %v945
    %1125 = vmatpush.bf16.msra.mxu0 %v941
    %1126 = vmatpush.bf16.msra.mxu0 %v937
    %1127 = vmatpush.bf16.msra.mxu0 %v933
    %1128 = vmatpush.bf16.msra.mxu0 %v929
    %1129 = vmatpush.bf16.msra.mxu0 %v925
    %1130 = vmatpush.bf16.msra.mxu0 %v921
    %1131 = vmatmul.bf16.gmra.mxu0 %v1109
    %v1132 = vpop.f32.mrf.mxu0
    %v1133 = vadd.f32 0.0, %v1132
    %v1134 = vpop.f32.mrf.mxu0
    %1135 = vdwg.mxu0
    %1136 = vmatpush.bf16.msra.mxu0 %v950
    %1137 = vmatpush.bf16.msra.mxu0 %v946
    %1138 = vmatpush.bf16.msra.mxu0 %v942
    %1139 = vmatpush.bf16.msra.mxu0 %v938
    %1140 = vmatpush.bf16.msra.mxu0 %v934
    %1141 = vmatpush.bf16.msra.mxu0 %v930
    %1142 = vmatpush.bf16.msra.mxu0 %v926
    %1143 = vmatpush.bf16.msra.mxu0 %v922
    %1144 = vmatmul.bf16.gmra.mxu0 %v1109
    %v1145 = vpop.f32.mrf.mxu0
    %v1146 = vadd.f32 0.0, %v1145
    %v1147 = vpop.f32.mrf.mxu0
    %1148 = vdwg.mxu0
    %1149 = vmatpush.bf16.msra.mxu0 %v951
    %1150 = vmatpush.bf16.msra.mxu0 %v947
    %1151 = vmatpush.bf16.msra.mxu0 %v943
    %1152 = vmatpush.bf16.msra.mxu0 %v939
    %1153 = vmatpush.bf16.msra.mxu0 %v935
    %1154 = vmatpush.bf16.msra.mxu0 %v931
    %1155 = vmatpush.bf16.msra.mxu0 %v927
    %1156 = vmatpush.bf16.msra.mxu0 %v923
    %1157 = vmatmul.bf16.gmra.mxu0 %v1109
    %v1158 = vpop.f32.mrf.mxu0
    %v1159 = vadd.f32 0.0, %v1158
    %v1160 = vpop.f32.mrf.mxu0
    %1161 = vdwg.mxu0
    %v1162 = vadd.f32 %v1105, %v1120
    %v1163 = vadd.f32 %v1106, %v1133
    %v1164 = vadd.f32 %v1107, %v1146
    %v1165 = vadd.f32 %v1108, %v1159
    %v1166 = vxor.u32 %v1162, 2147483648
    %v1167 = vmul.f32 %v1166, 1.442695
    %v1168 = vpow.pop %v1167
    %v1169 = vadd.f32 %v1168, 1.0
    %v1170 = vrcp.pop %v1169
    %v1171 = vmul.f32 %v1169, %v1170
    %v1172 = vsub.f32 1.0, %v1171
    %v1173 = vmul.f32 %v1170, %v1172
    %v1174 = vadd.f32 %v1170, %v1173
    %vm1175 = vweird.f32 %v1169
    %vm1176 = vweird.f32 %v1170
    %vm1177 = vmor %vm1175, %vm1176
    %v1178 = vsel %vm1177, %v1170, %v1174
    %v1179 = vand.u32 2147483647, %v1169
    %vm1180 = vcmp.eq.f32.partialorder %v1179, 8.507059e+37
    %v1181 = vand.u32 %v1169, 2147483648
    %v1182 = vor.u32 1.1754944e-38, %v1181
    %v1183 = vsel %vm1180, %v1182, %v1178
    %v1184 = vmul.f32 1.0, %v1183
    %v1185 = vxor.u32 %v1163, 2147483648
    %v1186 = vmul.f32 %v1185, 1.442695
    %v1187 = vpow.pop %v1186
    %v1188 = vadd.f32 %v1187, 1.0
    %v1189 = vrcp.pop %v1188
    %v1190 = vmul.f32 %v1188, %v1189
    %v1191 = vsub.f32 1.0, %v1190
    %v1192 = vmul.f32 %v1189, %v1191
    %v1193 = vadd.f32 %v1189, %v1192
    %vm1194 = vweird.f32 %v1188
    %vm1195 = vweird.f32 %v1189
    %vm1196 = vmor %vm1194, %vm1195
    %v1197 = vsel %vm1196, %v1189, %v1193
    %v1198 = vand.u32 2147483647, %v1188
    %vm1199 = vcmp.eq.f32.partialorder %v1198, 8.507059e+37
    %v1200 = vand.u32 %v1188, 2147483648
    %v1201 = vor.u32 1.1754944e-38, %v1200
    %v1202 = vsel %vm1199, %v1201, %v1197
    %v1203 = vmul.f32 1.0, %v1202
    %v1204 = vtanh.pop %v1164
    %v1205 = vxor.u32 %v1165, 2147483648
    %v1206 = vmul.f32 %v1205, 1.442695
    %v1207 = vpow.pop %v1206
    %v1208 = vadd.f32 %v1207, 1.0
    %v1209 = vrcp.pop %v1208
    %v1210 = vmul.f32 %v1208, %v1209
    %v1211 = vsub.f32 1.0, %v1210
    %v1212 = vmul.f32 %v1209, %v1211
    %v1213 = vadd.f32 %v1209, %v1212
    %vm1214 = vweird.f32 %v1208
    %vm1215 = vweird.f32 %v1209
    %vm1216 = vmor %vm1214, %vm1215
    %v1217 = vsel %vm1216, %v1209, %v1213
    %v1218 = vand.u32 2147483647, %v1208
    %vm1219 = vcmp.eq.f32.partialorder %v1218, 8.507059e+37
    %v1220 = vand.u32 %v1208, 2147483648
    %v1221 = vor.u32 1.1754944e-38, %v1220
    %v1222 = vsel %vm1219, %v1221, %v1217
    %v1223 = vmul.f32 1.0, %v1222
    %v1224 = vmul.f32 %v1203, %v1100
    %v1225 = vmul.f32 %v1184, %v1204
    %v1226 = vadd.f32 %v1224, %v1225
    %v1227 = vtanh.pop %v1226
    %v1228 = vmul.f32 %v1223, %v1227
    %s1229 = scalar_lea.vmem [#allocation3], 8
    %1230 = vst [vmem:[%s1229] sm:$0xff] %v1228
    %s1231 = scalar_lea.vmem [#allocation2], 64
    %v1232 = vld [vmem:[%s1231] sm:$0xff]
    %v1233 = vld [vmem:[%s1231 + $0x8] sm:$0xff]
    %v1234 = vld [vmem:[%s1231 + $0x10] sm:$0xff]
    %v1235 = vld [vmem:[%s1231 + $0x18] sm:$0xff]
    %v1236 = vpack.c.bf16 %v1228, %v1228
    %1237 = vmatpush.bf16.msra.mxu0 %v948
    %1238 = vmatpush.bf16.msra.mxu0 %v944
    %1239 = vmatpush.bf16.msra.mxu0 %v940
    %1240 = vmatpush.bf16.msra.mxu0 %v936
    %1241 = vmatpush.bf16.msra.mxu0 %v932
    %1242 = vmatpush.bf16.msra.mxu0 %v928
    %1243 = vmatpush.bf16.msra.mxu0 %v924
    %1244 = vmatpush.bf16.msra.mxu0 %v920
    %1245 = vmatmul.bf16.gmra.mxu0 %v1236
    %v1246 = vpop.f32.mrf.mxu0
    %v1247 = vadd.f32 0.0, %v1246
    %v1248 = vpop.f32.mrf.mxu0
    %1249 = vdwg.mxu0
    %1250 = vmatpush.bf16.msra.mxu0 %v949
    %1251 = vmatpush.bf16.msra.mxu0 %v945
    %1252 = vmatpush.bf16.msra.mxu0 %v941
    %1253 = vmatpush.bf16.msra.mxu0 %v937
    %1254 = vmatpush.bf16.msra.mxu0 %v933
    %1255 = vmatpush.bf16.msra.mxu0 %v929
    %1256 = vmatpush.bf16.msra.mxu0 %v925
    %1257 = vmatpush.bf16.msra.mxu0 %v921
    %1258 = vmatmul.bf16.gmra.mxu0 %v1236
    %v1259 = vpop.f32.mrf.mxu0
    %v1260 = vadd.f32 0.0, %v1259
    %v1261 = vpop.f32.mrf.mxu0
    %1262 = vdwg.mxu0
    %1263 = vmatpush.bf16.msra.mxu0 %v950
    %1264 = vmatpush.bf16.msra.mxu0 %v946
    %1265 = vmatpush.bf16.msra.mxu0 %v942
    %1266 = vmatpush.bf16.msra.mxu0 %v938
    %1267 = vmatpush.bf16.msra.mxu0 %v934
    %1268 = vmatpush.bf16.msra.mxu0 %v930
    %1269 = vmatpush.bf16.msra.mxu0 %v926
    %1270 = vmatpush.bf16.msra.mxu0 %v922
    %1271 = vmatmul.bf16.gmra.mxu0 %v1236
    %v1272 = vpop.f32.mrf.mxu0
    %v1273 = vadd.f32 0.0, %v1272
    %v1274 = vpop.f32.mrf.mxu0
    %1275 = vdwg.mxu0
    %1276 = vmatpush.bf16.msra.mxu0 %v951
    %1277 = vmatpush.bf16.msra.mxu0 %v947
    %1278 = vmatpush.bf16.msra.mxu0 %v943
    %1279 = vmatpush.bf16.msra.mxu0 %v939
    %1280 = vmatpush.bf16.msra.mxu0 %v935
    %1281 = vmatpush.bf16.msra.mxu0 %v931
    %1282 = vmatpush.bf16.msra.mxu0 %v927
    %1283 = vmatpush.bf16.msra.mxu0 %v923
    %1284 = vmatmul.bf16.gmra.mxu0 %v1236
    %v1285 = vpop.f32.mrf.mxu0
    %v1286 = vadd.f32 0.0, %v1285
    %v1287 = vpop.f32.mrf.mxu0
    %1288 = vdwg.mxu0
    %v1289 = vadd.f32 %v1232, %v1247
    %v1290 = vadd.f32 %v1233, %v1260
    %v1291 = vadd.f32 %v1234, %v1273
    %v1292 = vadd.f32 %v1235, %v1286
    %v1293 = vxor.u32 %v1289, 2147483648
    %v1294 = vmul.f32 %v1293, 1.442695
    %v1295 = vpow.pop %v1294
    %v1296 = vadd.f32 %v1295, 1.0
    %v1297 = vrcp.pop %v1296
    %v1298 = vmul.f32 %v1296, %v1297
    %v1299 = vsub.f32 1.0, %v1298
    %v1300 = vmul.f32 %v1297, %v1299
    %v1301 = vadd.f32 %v1297, %v1300
    %vm1302 = vweird.f32 %v1296
    %vm1303 = vweird.f32 %v1297
    %vm1304 = vmor %vm1302, %vm1303
    %v1305 = vsel %vm1304, %v1297, %v1301
    %v1306 = vand.u32 2147483647, %v1296
    %vm1307 = vcmp.eq.f32.partialorder %v1306, 8.507059e+37
    %v1308 = vand.u32 %v1296, 2147483648
    %v1309 = vor.u32 1.1754944e-38, %v1308
    %v1310 = vsel %vm1307, %v1309, %v1305
    %v1311 = vmul.f32 1.0, %v1310
    %v1312 = vxor.u32 %v1290, 2147483648
    %v1313 = vmul.f32 %v1312, 1.442695
    %v1314 = vpow.pop %v1313
    %v1315 = vadd.f32 %v1314, 1.0
    %v1316 = vrcp.pop %v1315
    %v1317 = vmul.f32 %v1315, %v1316
    %v1318 = vsub.f32 1.0, %v1317
    %v1319 = vmul.f32 %v1316, %v1318
    %v1320 = vadd.f32 %v1316, %v1319
    %vm1321 = vweird.f32 %v1315
    %vm1322 = vweird.f32 %v1316
    %vm1323 = vmor %vm1321, %vm1322
    %v1324 = vsel %vm1323, %v1316, %v1320
    %v1325 = vand.u32 2147483647, %v1315
    %vm1326 = vcmp.eq.f32.partialorder %v1325, 8.507059e+37
    %v1327 = vand.u32 %v1315, 2147483648
    %v1328 = vor.u32 1.1754944e-38, %v1327
    %v1329 = vsel %vm1326, %v1328, %v1324
    %v1330 = vmul.f32 1.0, %v1329
    %v1331 = vtanh.pop %v1291
    %v1332 = vxor.u32 %v1292, 2147483648
    %v1333 = vmul.f32 %v1332, 1.442695
    %v1334 = vpow.pop %v1333
    %v1335 = vadd.f32 %v1334, 1.0
    %v1336 = vrcp.pop %v1335
    %v1337 = vmul.f32 %v1335, %v1336
    %v1338 = vsub.f32 1.0, %v1337
    %v1339 = vmul.f32 %v1336, %v1338
    %v1340 = vadd.f32 %v1336, %v1339
    %vm1341 = vweird.f32 %v1335
    %vm1342 = vweird.f32 %v1336
    %vm1343 = vmor %vm1341, %vm1342
    %v1344 = vsel %vm1343, %v1336, %v1340
    %v1345 = vand.u32 2147483647, %v1335
    %vm1346 = vcmp.eq.f32.partialorder %v1345, 8.507059e+37
    %v1347 = vand.u32 %v1335, 2147483648
    %v1348 = vor.u32 1.1754944e-38, %v1347
    %v1349 = vsel %vm1346, %v1348, %v1344
    %v1350 = vmul.f32 1.0, %v1349
    %v1351 = vmul.f32 %v1330, %v1226
    %v1352 = vmul.f32 %v1311, %v1331
    %v1353 = vadd.f32 %v1351, %v1352
    %v1354 = vtanh.pop %v1353
    %v1355 = vmul.f32 %v1350, %v1354
    %s1356 = scalar_lea.vmem [#allocation3], 16
    %1357 = vst [vmem:[%s1356] sm:$0xff] %v1355
    %s1358 = scalar_lea.vmem [#allocation2], 96
    %v1359 = vld [vmem:[%s1358] sm:$0xff]
    %v1360 = vld [vmem:[%s1358 + $0x8] sm:$0xff]
    %v1361 = vld [vmem:[%s1358 + $0x10] sm:$0xff]
    %v1362 = vld [vmem:[%s1358 + $0x18] sm:$0xff]
    %v1363 = vpack.c.bf16 %v1355, %v1355
    %1364 = vmatpush.bf16.msra.mxu0 %v948
    %1365 = vmatpush.bf16.msra.mxu0 %v944
    %1366 = vmatpush.bf16.msra.mxu0 %v940
    %1367 = vmatpush.bf16.msra.mxu0 %v936
    %1368 = vmatpush.bf16.msra.mxu0 %v932
    %1369 = vmatpush.bf16.msra.mxu0 %v928
    %1370 = vmatpush.bf16.msra.mxu0 %v924
    %1371 = vmatpush.bf16.msra.mxu0 %v920
    %1372 = vmatmul.bf16.gmra.mxu0 %v1363
    %v1373 = vpop.f32.mrf.mxu0
    %v1374 = vadd.f32 0.0, %v1373
    %v1375 = vpop.f32.mrf.mxu0
    %1376 = vdwg.mxu0
    %1377 = vmatpush.bf16.msra.mxu0 %v949
    %1378 = vmatpush.bf16.msra.mxu0 %v945
    %1379 = vmatpush.bf16.msra.mxu0 %v941
    %1380 = vmatpush.bf16.msra.mxu0 %v937
    %1381 = vmatpush.bf16.msra.mxu0 %v933
    %1382 = vmatpush.bf16.msra.mxu0 %v929
    %1383 = vmatpush.bf16.msra.mxu0 %v925
    %1384 = vmatpush.bf16.msra.mxu0 %v921
    %1385 = vmatmul.bf16.gmra.mxu0 %v1363
    %v1386 = vpop.f32.mrf.mxu0
    %v1387 = vadd.f32 0.0, %v1386
    %v1388 = vpop.f32.mrf.mxu0
    %1389 = vdwg.mxu0
    %1390 = vmatpush.bf16.msra.mxu0 %v950
    %1391 = vmatpush.bf16.msra.mxu0 %v946
    %1392 = vmatpush.bf16.msra.mxu0 %v942
    %1393 = vmatpush.bf16.msra.mxu0 %v938
    %1394 = vmatpush.bf16.msra.mxu0 %v934
    %1395 = vmatpush.bf16.msra.mxu0 %v930
    %1396 = vmatpush.bf16.msra.mxu0 %v926
    %1397 = vmatpush.bf16.msra.mxu0 %v922
    %1398 = vmatmul.bf16.gmra.mxu0 %v1363
    %v1399 = vpop.f32.mrf.mxu0
    %v1400 = vadd.f32 0.0, %v1399
    %v1401 = vpop.f32.mrf.mxu0
    %1402 = vdwg.mxu0
    %1403 = vmatpush.bf16.msra.mxu0 %v951
    %1404 = vmatpush.bf16.msra.mxu0 %v947
    %1405 = vmatpush.bf16.msra.mxu0 %v943
    %1406 = vmatpush.bf16.msra.mxu0 %v939
    %1407 = vmatpush.bf16.msra.mxu0 %v935
    %1408 = vmatpush.bf16.msra.mxu0 %v931
    %1409 = vmatpush.bf16.msra.mxu0 %v927
    %1410 = vmatpush.bf16.msra.mxu0 %v923
    %1411 = vmatmul.bf16.gmra.mxu0 %v1363
    %v1412 = vpop.f32.mrf.mxu0
    %v1413 = vadd.f32 0.0, %v1412
    %v1414 = vpop.f32.mrf.mxu0
    %1415 = vdwg.mxu0
    %v1416 = vadd.f32 %v1359, %v1374
    %v1417 = vadd.f32 %v1360, %v1387
    %v1418 = vadd.f32 %v1361, %v1400
    %v1419 = vadd.f32 %v1362, %v1413
    %v1420 = vxor.u32 %v1416, 2147483648
    %v1421 = vmul.f32 %v1420, 1.442695
    %v1422 = vpow.pop %v1421
    %v1423 = vadd.f32 %v1422, 1.0
    %v1424 = vrcp.pop %v1423
    %v1425 = vmul.f32 %v1423, %v1424
    %v1426 = vsub.f32 1.0, %v1425
    %v1427 = vmul.f32 %v1424, %v1426
    %v1428 = vadd.f32 %v1424, %v1427
    %vm1429 = vweird.f32 %v1423
    %vm1430 = vweird.f32 %v1424
    %vm1431 = vmor %vm1429, %vm1430
    %v1432 = vsel %vm1431, %v1424, %v1428
    %v1433 = vand.u32 2147483647, %v1423
    %vm1434 = vcmp.eq.f32.partialorder %v1433, 8.507059e+37
    %v1435 = vand.u32 %v1423, 2147483648
    %v1436 = vor.u32 1.1754944e-38, %v1435
    %v1437 = vsel %vm1434, %v1436, %v1432
    %v1438 = vmul.f32 1.0, %v1437
    %v1439 = vxor.u32 %v1417, 2147483648
    %v1440 = vmul.f32 %v1439, 1.442695
    %v1441 = vpow.pop %v1440
    %v1442 = vadd.f32 %v1441, 1.0
    %v1443 = vrcp.pop %v1442
    %v1444 = vmul.f32 %v1442, %v1443
    %v1445 = vsub.f32 1.0, %v1444
    %v1446 = vmul.f32 %v1443, %v1445
    %v1447 = vadd.f32 %v1443, %v1446
    %vm1448 = vweird.f32 %v1442
    %vm1449 = vweird.f32 %v1443
    %vm1450 = vmor %vm1448, %vm1449
    %v1451 = vsel %vm1450, %v1443, %v1447
    %v1452 = vand.u32 2147483647, %v1442
    %vm1453 = vcmp.eq.f32.partialorder %v1452, 8.507059e+37
    %v1454 = vand.u32 %v1442, 2147483648
    %v1455 = vor.u32 1.1754944e-38, %v1454
    %v1456 = vsel %vm1453, %v1455, %v1451
    %v1457 = vmul.f32 1.0, %v1456
    %v1458 = vtanh.pop %v1418
    %v1459 = vxor.u32 %v1419, 2147483648
    %v1460 = vmul.f32 %v1459, 1.442695
    %v1461 = vpow.pop %v1460
    %v1462 = vadd.f32 %v1461, 1.0
    %v1463 = vrcp.pop %v1462
    %v1464 = vmul.f32 %v1462, %v1463
    %v1465 = vsub.f32 1.0, %v1464
    %v1466 = vmul.f32 %v1463, %v1465
    %v1467 = vadd.f32 %v1463, %v1466
    %vm1468 = vweird.f32 %v1462
    %vm1469 = vweird.f32 %v1463
    %vm1470 = vmor %vm1468, %vm1469
    %v1471 = vsel %vm1470, %v1463, %v1467
    %v1472 = vand.u32 2147483647, %v1462
    %vm1473 = vcmp.eq.f32.partialorder %v1472, 8.507059e+37
    %v1474 = vand.u32 %v1462, 2147483648
    %v1475 = vor.u32 1.1754944e-38, %v1474
    %v1476 = vsel %vm1473, %v1475, %v1471
    %v1477 = vmul.f32 1.0, %v1476
    %v1478 = vmul.f32 %v1457, %v1353
    %v1479 = vmul.f32 %v1438, %v1458
    %v1480 = vadd.f32 %v1478, %v1479
    %v1481 = vtanh.pop %v1480
    %v1482 = vmul.f32 %v1477, %v1481
    %s1483 = scalar_lea.vmem [#allocation3], 24
    %1484 = vst [vmem:[%s1483] sm:$0xff] %v1482
    %s1485 = scalar_lea.vmem [#allocation2], 128
    %v1486 = vld [vmem:[%s1485] sm:$0xff]
    %v1487 = vld [vmem:[%s1485 + $0x8] sm:$0xff]
    %v1488 = vld [vmem:[%s1485 + $0x10] sm:$0xff]
    %v1489 = vld [vmem:[%s1485 + $0x18] sm:$0xff]
    %v1490 = vpack.c.bf16 %v1482, %v1482
    %1491 = vmatpush.bf16.msra.mxu0 %v948
    %1492 = vmatpush.bf16.msra.mxu0 %v944
    %1493 = vmatpush.bf16.msra.mxu0 %v940
    %1494 = vmatpush.bf16.msra.mxu0 %v936
    %1495 = vmatpush.bf16.msra.mxu0 %v932
    %1496 = vmatpush.bf16.msra.mxu0 %v928
    %1497 = vmatpush.bf16.msra.mxu0 %v924
    %1498 = vmatpush.bf16.msra.mxu0 %v920
    %1499 = vmatmul.bf16.gmra.mxu0 %v1490
    %v1500 = vpop.f32.mrf.mxu0
    %v1501 = vadd.f32 0.0, %v1500
    %v1502 = vpop.f32.mrf.mxu0
    %1503 = vdwg.mxu0
    %1504 = vmatpush.bf16.msra.mxu0 %v949
    %1505 = vmatpush.bf16.msra.mxu0 %v945
    %1506 = vmatpush.bf16.msra.mxu0 %v941
    %1507 = vmatpush.bf16.msra.mxu0 %v937
    %1508 = vmatpush.bf16.msra.mxu0 %v933
    %1509 = vmatpush.bf16.msra.mxu0 %v929
    %1510 = vmatpush.bf16.msra.mxu0 %v925
    %1511 = vmatpush.bf16.msra.mxu0 %v921
    %1512 = vmatmul.bf16.gmra.mxu0 %v1490
    %v1513 = vpop.f32.mrf.mxu0
    %v1514 = vadd.f32 0.0, %v1513
    %v1515 = vpop.f32.mrf.mxu0
    %1516 = vdwg.mxu0
    %1517 = vmatpush.bf16.msra.mxu0 %v950
    %1518 = vmatpush.bf16.msra.mxu0 %v946
    %1519 = vmatpush.bf16.msra.mxu0 %v942
    %1520 = vmatpush.bf16.msra.mxu0 %v938
    %1521 = vmatpush.bf16.msra.mxu0 %v934
    %1522 = vmatpush.bf16.msra.mxu0 %v930
    %1523 = vmatpush.bf16.msra.mxu0 %v926
    %1524 = vmatpush.bf16.msra.mxu0 %v922
    %1525 = vmatmul.bf16.gmra.mxu0 %v1490
    %v1526 = vpop.f32.mrf.mxu0
    %v1527 = vadd.f32 0.0, %v1526
    %v1528 = vpop.f32.mrf.mxu0
    %1529 = vdwg.mxu0
    %1530 = vmatpush.bf16.msra.mxu0 %v951
    %1531 = vmatpush.bf16.msra.mxu0 %v947
    %1532 = vmatpush.bf16.msra.mxu0 %v943
    %1533 = vmatpush.bf16.msra.mxu0 %v939
    %1534 = vmatpush.bf16.msra.mxu0 %v935
    %1535 = vmatpush.bf16.msra.mxu0 %v931
    %1536 = vmatpush.bf16.msra.mxu0 %v927
    %1537 = vmatpush.bf16.msra.mxu0 %v923
    %1538 = vmatmul.bf16.gmra.mxu0 %v1490
    %v1539 = vpop.f32.mrf.mxu0
    %v1540 = vadd.f32 0.0, %v1539
    %v1541 = vpop.f32.mrf.mxu0
    %1542 = vdwg.mxu0
    %v1543 = vadd.f32 %v1486, %v1501
    %v1544 = vadd.f32 %v1487, %v1514
    %v1545 = vadd.f32 %v1488, %v1527
    %v1546 = vadd.f32 %v1489, %v1540
    %v1547 = vxor.u32 %v1543, 2147483648
    %v1548 = vmul.f32 %v1547, 1.442695
    %v1549 = vpow.pop %v1548
    %v1550 = vadd.f32 %v1549, 1.0
    %v1551 = vrcp.pop %v1550
    %v1552 = vmul.f32 %v1550, %v1551
    %v1553 = vsub.f32 1.0, %v1552
    %v1554 = vmul.f32 %v1551, %v1553
    %v1555 = vadd.f32 %v1551, %v1554
    %vm1556 = vweird.f32 %v1550
    %vm1557 = vweird.f32 %v1551
    %vm1558 = vmor %vm1556, %vm1557
    %v1559 = vsel %vm1558, %v1551, %v1555
    %v1560 = vand.u32 2147483647, %v1550
    %vm1561 = vcmp.eq.f32.partialorder %v1560, 8.507059e+37
    %v1562 = vand.u32 %v1550, 2147483648
    %v1563 = vor.u32 1.1754944e-38, %v1562
    %v1564 = vsel %vm1561, %v1563, %v1559
    %v1565 = vmul.f32 1.0, %v1564
    %v1566 = vxor.u32 %v1544, 2147483648
    %v1567 = vmul.f32 %v1566, 1.442695
    %v1568 = vpow.pop %v1567
    %v1569 = vadd.f32 %v1568, 1.0
    %v1570 = vrcp.pop %v1569
    %v1571 = vmul.f32 %v1569, %v1570
    %v1572 = vsub.f32 1.0, %v1571
    %v1573 = vmul.f32 %v1570, %v1572
    %v1574 = vadd.f32 %v1570, %v1573
    %vm1575 = vweird.f32 %v1569
    %vm1576 = vweird.f32 %v1570
    %vm1577 = vmor %vm1575, %vm1576
    %v1578 = vsel %vm1577, %v1570, %v1574
    %v1579 = vand.u32 2147483647, %v1569
    %vm1580 = vcmp.eq.f32.partialorder %v1579, 8.507059e+37
    %v1581 = vand.u32 %v1569, 2147483648
    %v1582 = vor.u32 1.1754944e-38, %v1581
    %v1583 = vsel %vm1580, %v1582, %v1578
    %v1584 = vmul.f32 1.0, %v1583
    %v1585 = vtanh.pop %v1545
    %v1586 = vxor.u32 %v1546, 2147483648
    %v1587 = vmul.f32 %v1586, 1.442695
    %v1588 = vpow.pop %v1587
    %v1589 = vadd.f32 %v1588, 1.0
    %v1590 = vrcp.pop %v1589
    %v1591 = vmul.f32 %v1589, %v1590
    %v1592 = vsub.f32 1.0, %v1591
    %v1593 = vmul.f32 %v1590, %v1592
    %v1594 = vadd.f32 %v1590, %v1593
    %vm1595 = vweird.f32 %v1589
    %vm1596 = vweird.f32 %v1590
    %vm1597 = vmor %vm1595, %vm1596
    %v1598 = vsel %vm1597, %v1590, %v1594
    %v1599 = vand.u32 2147483647, %v1589
    %vm1600 = vcmp.eq.f32.partialorder %v1599, 8.507059e+37
    %v1601 = vand.u32 %v1589, 2147483648
    %v1602 = vor.u32 1.1754944e-38, %v1601
    %v1603 = vsel %vm1600, %v1602, %v1598
    %v1604 = vmul.f32 1.0, %v1603
    %v1605 = vmul.f32 %v1584, %v1480
    %v1606 = vmul.f32 %v1565, %v1585
    %v1607 = vadd.f32 %v1605, %v1606
    %v1608 = vtanh.pop %v1607
    %v1609 = vmul.f32 %v1604, %v1608
    %s1610 = scalar_lea.vmem [#allocation3], 32
    %1611 = vst [vmem:[%s1610] sm:$0xff] %v1609
    %s1612 = scalar_lea.vmem [#allocation2], 160
    %v1613 = vld [vmem:[%s1612] sm:$0xff]
    %v1614 = vld [vmem:[%s1612 + $0x8] sm:$0xff]
    %v1615 = vld [vmem:[%s1612 + $0x10] sm:$0xff]
    %v1616 = vld [vmem:[%s1612 + $0x18] sm:$0xff]
    %v1617 = vpack.c.bf16 %v1609, %v1609
    %1618 = vmatpush.bf16.msra.mxu0 %v948
    %1619 = vmatpush.bf16.msra.mxu0 %v944
    %1620 = vmatpush.bf16.msra.mxu0 %v940
    %1621 = vmatpush.bf16.msra.mxu0 %v936
    %1622 = vmatpush.bf16.msra.mxu0 %v932
    %1623 = vmatpush.bf16.msra.mxu0 %v928
    %1624 = vmatpush.bf16.msra.mxu0 %v924
    %1625 = vmatpush.bf16.msra.mxu0 %v920
    %1626 = vmatmul.bf16.gmra.mxu0 %v1617
    %v1627 = vpop.f32.mrf.mxu0
    %v1628 = vadd.f32 0.0, %v1627
    %v1629 = vpop.f32.mrf.mxu0
    %1630 = vdwg.mxu0
    %1631 = vmatpush.bf16.msra.mxu0 %v949
    %1632 = vmatpush.bf16.msra.mxu0 %v945
    %1633 = vmatpush.bf16.msra.mxu0 %v941
    %1634 = vmatpush.bf16.msra.mxu0 %v937
    %1635 = vmatpush.bf16.msra.mxu0 %v933
    %1636 = vmatpush.bf16.msra.mxu0 %v929
    %1637 = vmatpush.bf16.msra.mxu0 %v925
    %1638 = vmatpush.bf16.msra.mxu0 %v921
    %1639 = vmatmul.bf16.gmra.mxu0 %v1617
    %v1640 = vpop.f32.mrf.mxu0
    %v1641 = vadd.f32 0.0, %v1640
    %v1642 = vpop.f32.mrf.mxu0
    %1643 = vdwg.mxu0
    %1644 = vmatpush.bf16.msra.mxu0 %v950
    %1645 = vmatpush.bf16.msra.mxu0 %v946
    %1646 = vmatpush.bf16.msra.mxu0 %v942
    %1647 = vmatpush.bf16.msra.mxu0 %v938
    %1648 = vmatpush.bf16.msra.mxu0 %v934
    %1649 = vmatpush.bf16.msra.mxu0 %v930
    %1650 = vmatpush.bf16.msra.mxu0 %v926
    %1651 = vmatpush.bf16.msra.mxu0 %v922
    %1652 = vmatmul.bf16.gmra.mxu0 %v1617
    %v1653 = vpop.f32.mrf.mxu0
    %v1654 = vadd.f32 0.0, %v1653
    %v1655 = vpop.f32.mrf.mxu0
    %1656 = vdwg.mxu0
    %1657 = vmatpush.bf16.msra.mxu0 %v951
    %1658 = vmatpush.bf16.msra.mxu0 %v947
    %1659 = vmatpush.bf16.msra.mxu0 %v943
    %1660 = vmatpush.bf16.msra.mxu0 %v939
    %1661 = vmatpush.bf16.msra.mxu0 %v935
    %1662 = vmatpush.bf16.msra.mxu0 %v931
    %1663 = vmatpush.bf16.msra.mxu0 %v927
    %1664 = vmatpush.bf16.msra.mxu0 %v923
    %1665 = vmatmul.bf16.gmra.mxu0 %v1617
    %v1666 = vpop.f32.mrf.mxu0
    %v1667 = vadd.f32 0.0, %v1666
    %v1668 = vpop.f32.mrf.mxu0
    %1669 = vdwg.mxu0
    %v1670 = vadd.f32 %v1613, %v1628
    %v1671 = vadd.f32 %v1614, %v1641
    %v1672 = vadd.f32 %v1615, %v1654
    %v1673 = vadd.f32 %v1616, %v1667
    %v1674 = vxor.u32 %v1670, 2147483648
    %v1675 = vmul.f32 %v1674, 1.442695
    %v1676 = vpow.pop %v1675
    %v1677 = vadd.f32 %v1676, 1.0
    %v1678 = vrcp.pop %v1677
    %v1679 = vmul.f32 %v1677, %v1678
    %v1680 = vsub.f32 1.0, %v1679
    %v1681 = vmul.f32 %v1678, %v1680
    %v1682 = vadd.f32 %v1678, %v1681
    %vm1683 = vweird.f32 %v1677
    %vm1684 = vweird.f32 %v1678
    %vm1685 = vmor %vm1683, %vm1684
    %v1686 = vsel %vm1685, %v1678, %v1682
    %v1687 = vand.u32 2147483647, %v1677
    %vm1688 = vcmp.eq.f32.partialorder %v1687, 8.507059e+37
    %v1689 = vand.u32 %v1677, 2147483648
    %v1690 = vor.u32 1.1754944e-38, %v1689
    %v1691 = vsel %vm1688, %v1690, %v1686
    %v1692 = vmul.f32 1.0, %v1691
    %v1693 = vxor.u32 %v1671, 2147483648
    %v1694 = vmul.f32 %v1693, 1.442695
    %v1695 = vpow.pop %v1694
    %v1696 = vadd.f32 %v1695, 1.0
    %v1697 = vrcp.pop %v1696
    %v1698 = vmul.f32 %v1696, %v1697
    %v1699 = vsub.f32 1.0, %v1698
    %v1700 = vmul.f32 %v1697, %v1699
    %v1701 = vadd.f32 %v1697, %v1700
    %vm1702 = vweird.f32 %v1696
    %vm1703 = vweird.f32 %v1697
    %vm1704 = vmor %vm1702, %vm1703
    %v1705 = vsel %vm1704, %v1697, %v1701
    %v1706 = vand.u32 2147483647, %v1696
    %vm1707 = vcmp.eq.f32.partialorder %v1706, 8.507059e+37
    %v1708 = vand.u32 %v1696, 2147483648
    %v1709 = vor.u32 1.1754944e-38, %v1708
    %v1710 = vsel %vm1707, %v1709, %v1705
    %v1711 = vmul.f32 1.0, %v1710
    %v1712 = vtanh.pop %v1672
    %v1713 = vxor.u32 %v1673, 2147483648
    %v1714 = vmul.f32 %v1713, 1.442695
    %v1715 = vpow.pop %v1714
    %v1716 = vadd.f32 %v1715, 1.0
    %v1717 = vrcp.pop %v1716
    %v1718 = vmul.f32 %v1716, %v1717
    %v1719 = vsub.f32 1.0, %v1718
    %v1720 = vmul.f32 %v1717, %v1719
    %v1721 = vadd.f32 %v1717, %v1720
    %vm1722 = vweird.f32 %v1716
    %vm1723 = vweird.f32 %v1717
    %vm1724 = vmor %vm1722, %vm1723
    %v1725 = vsel %vm1724, %v1717, %v1721
    %v1726 = vand.u32 2147483647, %v1716
    %vm1727 = vcmp.eq.f32.partialorder %v1726, 8.507059e+37
    %v1728 = vand.u32 %v1716, 2147483648
    %v1729 = vor.u32 1.1754944e-38, %v1728
    %v1730 = vsel %vm1727, %v1729, %v1725
    %v1731 = vmul.f32 1.0, %v1730
    %v1732 = vmul.f32 %v1711, %v1607
    %v1733 = vmul.f32 %v1692, %v1712
    %v1734 = vadd.f32 %v1732, %v1733
    %v1735 = vtanh.pop %v1734
    %v1736 = vmul.f32 %v1731, %v1735
    %s1737 = scalar_lea.vmem [#allocation3], 40
    %1738 = vst [vmem:[%s1737] sm:$0xff] %v1736
    %s1739 = scalar_lea.vmem [#allocation2], 192
    %v1740 = vld [vmem:[%s1739] sm:$0xff]
    %v1741 = vld [vmem:[%s1739 + $0x8] sm:$0xff]
    %v1742 = vld [vmem:[%s1739 + $0x10] sm:$0xff]
    %v1743 = vld [vmem:[%s1739 + $0x18] sm:$0xff]
    %v1744 = vpack.c.bf16 %v1736, %v1736
    %1745 = vmatpush.bf16.msra.mxu0 %v948
    %1746 = vmatpush.bf16.msra.mxu0 %v944
    %1747 = vmatpush.bf16.msra.mxu0 %v940
    %1748 = vmatpush.bf16.msra.mxu0 %v936
    %1749 = vmatpush.bf16.msra.mxu0 %v932
    %1750 = vmatpush.bf16.msra.mxu0 %v928
    %1751 = vmatpush.bf16.msra.mxu0 %v924
    %1752 = vmatpush.bf16.msra.mxu0 %v920
    %1753 = vmatmul.bf16.gmra.mxu0 %v1744
    %v1754 = vpop.f32.mrf.mxu0
    %v1755 = vadd.f32 0.0, %v1754
    %v1756 = vpop.f32.mrf.mxu0
    %1757 = vdwg.mxu0
    %1758 = vmatpush.bf16.msra.mxu0 %v949
    %1759 = vmatpush.bf16.msra.mxu0 %v945
    %1760 = vmatpush.bf16.msra.mxu0 %v941
    %1761 = vmatpush.bf16.msra.mxu0 %v937
    %1762 = vmatpush.bf16.msra.mxu0 %v933
    %1763 = vmatpush.bf16.msra.mxu0 %v929
    %1764 = vmatpush.bf16.msra.mxu0 %v925
    %1765 = vmatpush.bf16.msra.mxu0 %v921
    %1766 = vmatmul.bf16.gmra.mxu0 %v1744
    %v1767 = vpop.f32.mrf.mxu0
    %v1768 = vadd.f32 0.0, %v1767
    %v1769 = vpop.f32.mrf.mxu0
    %1770 = vdwg.mxu0
    %1771 = vmatpush.bf16.msra.mxu0 %v950
    %1772 = vmatpush.bf16.msra.mxu0 %v946
    %1773 = vmatpush.bf16.msra.mxu0 %v942
    %1774 = vmatpush.bf16.msra.mxu0 %v938
    %1775 = vmatpush.bf16.msra.mxu0 %v934
    %1776 = vmatpush.bf16.msra.mxu0 %v930
    %1777 = vmatpush.bf16.msra.mxu0 %v926
    %1778 = vmatpush.bf16.msra.mxu0 %v922
    %1779 = vmatmul.bf16.gmra.mxu0 %v1744
    %v1780 = vpop.f32.mrf.mxu0
    %v1781 = vadd.f32 0.0, %v1780
    %v1782 = vpop.f32.mrf.mxu0
    %1783 = vdwg.mxu0
    %1784 = vmatpush.bf16.msra.mxu0 %v951
    %1785 = vmatpush.bf16.msra.mxu0 %v947
    %1786 = vmatpush.bf16.msra.mxu0 %v943
    %1787 = vmatpush.bf16.msra.mxu0 %v939
    %1788 = vmatpush.bf16.msra.mxu0 %v935
    %1789 = vmatpush.bf16.msra.mxu0 %v931
    %1790 = vmatpush.bf16.msra.mxu0 %v927
    %1791 = vmatpush.bf16.msra.mxu0 %v923
    %1792 = vmatmul.bf16.gmra.mxu0 %v1744
    %v1793 = vpop.f32.mrf.mxu0
    %v1794 = vadd.f32 0.0, %v1793
    %v1795 = vpop.f32.mrf.mxu0
    %1796 = vdwg.mxu0
    %v1797 = vadd.f32 %v1740, %v1755
    %v1798 = vadd.f32 %v1741, %v1768
    %v1799 = vadd.f32 %v1742, %v1781
    %v1800 = vadd.f32 %v1743, %v1794
    %v1801 = vxor.u32 %v1797, 2147483648
    %v1802 = vmul.f32 %v1801, 1.442695
    %v1803 = vpow.pop %v1802
    %v1804 = vadd.f32 %v1803, 1.0
    %v1805 = vrcp.pop %v1804
    %v1806 = vmul.f32 %v1804, %v1805
    %v1807 = vsub.f32 1.0, %v1806
    %v1808 = vmul.f32 %v1805, %v1807
    %v1809 = vadd.f32 %v1805, %v1808
    %vm1810 = vweird.f32 %v1804
    %vm1811 = vweird.f32 %v1805
    %vm1812 = vmor %vm1810, %vm1811
    %v1813 = vsel %vm1812, %v1805, %v1809
    %v1814 = vand.u32 2147483647, %v1804
    %vm1815 = vcmp.eq.f32.partialorder %v1814, 8.507059e+37
    %v1816 = vand.u32 %v1804, 2147483648
    %v1817 = vor.u32 1.1754944e-38, %v1816
    %v1818 = vsel %vm1815, %v1817, %v1813
    %v1819 = vmul.f32 1.0, %v1818
    %v1820 = vxor.u32 %v1798, 2147483648
    %v1821 = vmul.f32 %v1820, 1.442695
    %v1822 = vpow.pop %v1821
    %v1823 = vadd.f32 %v1822, 1.0
    %v1824 = vrcp.pop %v1823
    %v1825 = vmul.f32 %v1823, %v1824
    %v1826 = vsub.f32 1.0, %v1825
    %v1827 = vmul.f32 %v1824, %v1826
    %v1828 = vadd.f32 %v1824, %v1827
    %vm1829 = vweird.f32 %v1823
    %vm1830 = vweird.f32 %v1824
    %vm1831 = vmor %vm1829, %vm1830
    %v1832 = vsel %vm1831, %v1824, %v1828
    %v1833 = vand.u32 2147483647, %v1823
    %vm1834 = vcmp.eq.f32.partialorder %v1833, 8.507059e+37
    %v1835 = vand.u32 %v1823, 2147483648
    %v1836 = vor.u32 1.1754944e-38, %v1835
    %v1837 = vsel %vm1834, %v1836, %v1832
    %v1838 = vmul.f32 1.0, %v1837
    %v1839 = vtanh.pop %v1799
    %v1840 = vxor.u32 %v1800, 2147483648
    %v1841 = vmul.f32 %v1840, 1.442695
    %v1842 = vpow.pop %v1841
    %v1843 = vadd.f32 %v1842, 1.0
    %v1844 = vrcp.pop %v1843
    %v1845 = vmul.f32 %v1843, %v1844
    %v1846 = vsub.f32 1.0, %v1845
    %v1847 = vmul.f32 %v1844, %v1846
    %v1848 = vadd.f32 %v1844, %v1847
    %vm1849 = vweird.f32 %v1843
    %vm1850 = vweird.f32 %v1844
    %vm1851 = vmor %vm1849, %vm1850
    %v1852 = vsel %vm1851, %v1844, %v1848
    %v1853 = vand.u32 2147483647, %v1843
    %vm1854 = vcmp.eq.f32.partialorder %v1853, 8.507059e+37
    %v1855 = vand.u32 %v1843, 2147483648
    %v1856 = vor.u32 1.1754944e-38, %v1855
    %v1857 = vsel %vm1854, %v1856, %v1852
    %v1858 = vmul.f32 1.0, %v1857
    %v1859 = vmul.f32 %v1838, %v1734
    %v1860 = vmul.f32 %v1819, %v1839
    %v1861 = vadd.f32 %v1859, %v1860
    %v1862 = vtanh.pop %v1861
    %v1863 = vmul.f32 %v1858, %v1862
    %s1864 = scalar_lea.vmem [#allocation3], 48
    %1865 = vst [vmem:[%s1864] sm:$0xff] %v1863
    %s1866 = scalar_lea.vmem [#allocation2], 224
    %v1867 = vld [vmem:[%s1866] sm:$0xff]
    %v1868 = vld [vmem:[%s1866 + $0x8] sm:$0xff]
    %v1869 = vld [vmem:[%s1866 + $0x10] sm:$0xff]
    %v1870 = vld [vmem:[%s1866 + $0x18] sm:$0xff]
    %v1871 = vpack.c.bf16 %v1863, %v1863
    %1872 = vmatpush.bf16.msra.mxu0 %v948
    %1873 = vmatpush.bf16.msra.mxu0 %v944
    %1874 = vmatpush.bf16.msra.mxu0 %v940
    %1875 = vmatpush.bf16.msra.mxu0 %v936
    %1876 = vmatpush.bf16.msra.mxu0 %v932
    %1877 = vmatpush.bf16.msra.mxu0 %v928
    %1878 = vmatpush.bf16.msra.mxu0 %v924
    %1879 = vmatpush.bf16.msra.mxu0 %v920
    %1880 = vmatmul.bf16.gmra.mxu0 %v1871
    %v1881 = vpop.f32.mrf.mxu0
    %v1882 = vadd.f32 0.0, %v1881
    %v1883 = vpop.f32.mrf.mxu0
    %1884 = vdwg.mxu0
    %1885 = vmatpush.bf16.msra.mxu0 %v949
    %1886 = vmatpush.bf16.msra.mxu0 %v945
    %1887 = vmatpush.bf16.msra.mxu0 %v941
    %1888 = vmatpush.bf16.msra.mxu0 %v937
    %1889 = vmatpush.bf16.msra.mxu0 %v933
    %1890 = vmatpush.bf16.msra.mxu0 %v929
    %1891 = vmatpush.bf16.msra.mxu0 %v925
    %1892 = vmatpush.bf16.msra.mxu0 %v921
    %1893 = vmatmul.bf16.gmra.mxu0 %v1871
    %v1894 = vpop.f32.mrf.mxu0
    %v1895 = vadd.f32 0.0, %v1894
    %v1896 = vpop.f32.mrf.mxu0
    %1897 = vdwg.mxu0
    %1898 = vmatpush.bf16.msra.mxu0 %v950
    %1899 = vmatpush.bf16.msra.mxu0 %v946
    %1900 = vmatpush.bf16.msra.mxu0 %v942
    %1901 = vmatpush.bf16.msra.mxu0 %v938
    %1902 = vmatpush.bf16.msra.mxu0 %v934
    %1903 = vmatpush.bf16.msra.mxu0 %v930
    %1904 = vmatpush.bf16.msra.mxu0 %v926
    %1905 = vmatpush.bf16.msra.mxu0 %v922
    %1906 = vmatmul.bf16.gmra.mxu0 %v1871
    %v1907 = vpop.f32.mrf.mxu0
    %v1908 = vadd.f32 0.0, %v1907
    %v1909 = vpop.f32.mrf.mxu0
    %1910 = vdwg.mxu0
    %1911 = vmatpush.bf16.msra.mxu0 %v951
    %1912 = vmatpush.bf16.msra.mxu0 %v947
    %1913 = vmatpush.bf16.msra.mxu0 %v943
    %1914 = vmatpush.bf16.msra.mxu0 %v939
    %1915 = vmatpush.bf16.msra.mxu0 %v935
    %1916 = vmatpush.bf16.msra.mxu0 %v931
    %1917 = vmatpush.bf16.msra.mxu0 %v927
    %1918 = vmatpush.bf16.msra.mxu0 %v923
    %1919 = vmatmul.bf16.gmra.mxu0 %v1871
    %v1920 = vpop.f32.mrf.mxu0
    %v1921 = vadd.f32 0.0, %v1920
    %v1922 = vpop.f32.mrf.mxu0
    %1923 = vdwg.mxu0
    %v1924 = vadd.f32 %v1867, %v1882
    %v1925 = vadd.f32 %v1868, %v1895
    %v1926 = vadd.f32 %v1869, %v1908
    %v1927 = vadd.f32 %v1870, %v1921
    %v1928 = vxor.u32 %v1924, 2147483648
    %v1929 = vmul.f32 %v1928, 1.442695
    %v1930 = vpow.pop %v1929
    %v1931 = vadd.f32 %v1930, 1.0
    %v1932 = vrcp.pop %v1931
    %v1933 = vmul.f32 %v1931, %v1932
    %v1934 = vsub.f32 1.0, %v1933
    %v1935 = vmul.f32 %v1932, %v1934
    %v1936 = vadd.f32 %v1932, %v1935
    %vm1937 = vweird.f32 %v1931
    %vm1938 = vweird.f32 %v1932
    %vm1939 = vmor %vm1937, %vm1938
    %v1940 = vsel %vm1939, %v1932, %v1936
    %v1941 = vand.u32 2147483647, %v1931
    %vm1942 = vcmp.eq.f32.partialorder %v1941, 8.507059e+37
    %v1943 = vand.u32 %v1931, 2147483648
    %v1944 = vor.u32 1.1754944e-38, %v1943
    %v1945 = vsel %vm1942, %v1944, %v1940
    %v1946 = vmul.f32 1.0, %v1945
    %v1947 = vxor.u32 %v1925, 2147483648
    %v1948 = vmul.f32 %v1947, 1.442695
    %v1949 = vpow.pop %v1948
    %v1950 = vadd.f32 %v1949, 1.0
    %v1951 = vrcp.pop %v1950
    %v1952 = vmul.f32 %v1950, %v1951
    %v1953 = vsub.f32 1.0, %v1952
    %v1954 = vmul.f32 %v1951, %v1953
    %v1955 = vadd.f32 %v1951, %v1954
    %vm1956 = vweird.f32 %v1950
    %vm1957 = vweird.f32 %v1951
    %vm1958 = vmor %vm1956, %vm1957
    %v1959 = vsel %vm1958, %v1951, %v1955
    %v1960 = vand.u32 2147483647, %v1950
    %vm1961 = vcmp.eq.f32.partialorder %v1960, 8.507059e+37
    %v1962 = vand.u32 %v1950, 2147483648
    %v1963 = vor.u32 1.1754944e-38, %v1962
    %v1964 = vsel %vm1961, %v1963, %v1959
    %v1965 = vmul.f32 1.0, %v1964
    %v1966 = vtanh.pop %v1926
    %v1967 = vxor.u32 %v1927, 2147483648
    %v1968 = vmul.f32 %v1967, 1.442695
    %v1969 = vpow.pop %v1968
    %v1970 = vadd.f32 %v1969, 1.0
    %v1971 = vrcp.pop %v1970
    %v1972 = vmul.f32 %v1970, %v1971
    %v1973 = vsub.f32 1.0, %v1972
    %v1974 = vmul.f32 %v1971, %v1973
    %v1975 = vadd.f32 %v1971, %v1974
    %vm1976 = vweird.f32 %v1970
    %vm1977 = vweird.f32 %v1971
    %vm1978 = vmor %vm1976, %vm1977
    %v1979 = vsel %vm1978, %v1971, %v1975
    %v1980 = vand.u32 2147483647, %v1970
    %vm1981 = vcmp.eq.f32.partialorder %v1980, 8.507059e+37
    %v1982 = vand.u32 %v1970, 2147483648
    %v1983 = vor.u32 1.1754944e-38, %v1982
    %v1984 = vsel %vm1981, %v1983, %v1979
    %v1985 = vmul.f32 1.0, %v1984
    %v1986 = vmul.f32 %v1965, %v1861
    %v1987 = vmul.f32 %v1946, %v1966
    %v1988 = vadd.f32 %v1986, %v1987
    %v1989 = vtanh.pop %v1988
    %v1990 = vmul.f32 %v1985, %v1989
    %s1991 = scalar_lea.vmem [#allocation3], 56
    %1992 = vst [vmem:[%s1991] sm:$0xff] %v1990
    %v1993 = vld [vmem:[#allocation3] sm:$0xff]
    %v1994 = vld [vmem:[#allocation3 + $0x8] sm:$0xff]
    %v1995 = vld [vmem:[#allocation3 + $0x10] sm:$0xff]
    %v1996 = vld [vmem:[#allocation3 + $0x18] sm:$0xff]
    %v1997 = vld [vmem:[#allocation3 + $0x20] sm:$0xff]
    %v1998 = vld [vmem:[#allocation3 + $0x28] sm:$0xff]
    %v1999 = vld [vmem:[#allocation3 + $0x30] sm:$0xff]
    %v2000 = vld [vmem:[#allocation3 + $0x38] sm:$0xff]
    %v2001 = vmul.f32 %v1993, %v200
    %v2002 = vmul.f32 %v1994, %v200
    %v2003 = vmul.f32 %v1995, %v200
    %v2004 = vmul.f32 %v1996, %v200
    %v2005 = vmul.f32 %v1997, %v200
    %v2006 = vmul.f32 %v1998, %v200
    %v2007 = vmul.f32 %v1999, %v200
    %v2008 = vmul.f32 %v2000, %v200
    %v2009 = vadd.f32 %v2001, %v2002
    %v2010 = vadd.f32 %v2009, %v2003
    %v2011 = vadd.f32 %v2010, %v2004
    %v2012 = vadd.f32 %v2011, %v2005
    %v2013 = vadd.f32 %v2012, %v2006
    %v2014 = vadd.f32 %v2013, %v2007
    %v2015 = vadd.f32 %v2014, %v2008
    %v2016 = vrot.slane %v2015, 4
    %v2017 = vadd.f32 %v2015, %v2016
    %v2018 = vrot.slane %v2017, 2
    %v2019 = vadd.f32 %v2017, %v2018
    %v2020 = vrot.slane %v2019, 1
    %v2021 = vadd.f32 %v2019, %v2020
    %v2022 = vmul.f32 %v2001, %v2001
    %v2023 = vmul.f32 %v2002, %v2002
    %v2024 = vmul.f32 %v2003, %v2003
    %v2025 = vmul.f32 %v2004, %v2004
    %v2026 = vmul.f32 %v2005, %v2005
    %v2027 = vmul.f32 %v2006, %v2006
    %v2028 = vmul.f32 %v2007, %v2007
    %v2029 = vmul.f32 %v2008, %v2008
    %v2030 = vadd.f32 %v2022, %v2023
    %v2031 = vadd.f32 %v2030, %v2024
    %v2032 = vadd.f32 %v2031, %v2025
    %v2033 = vadd.f32 %v2032, %v2026
    %v2034 = vadd.f32 %v2033, %v2027
    %v2035 = vadd.f32 %v2034, %v2028
    %v2036 = vadd.f32 %v2035, %v2029
    %v2037 = vrot.slane %v2036, 4
    %v2038 = vadd.f32 %v2036, %v2037
    %v2039 = vrot.slane %v2038, 2
    %v2040 = vadd.f32 %v2038, %v2039
    %v2041 = vrot.slane %v2040, 1
    %v2042 = vadd.f32 %v2040, %v2041
    %v2043 = vmul.f32 %v2021, 0.0625
    %v2044 = vmul.f32 %v2042, 0.0625
    %v2045 = vmul.f32 %v2043, %v2043
    %v2046 = vsub.f32 %v2044, %v2045
    %v2047 = vld [vmem:[#allocation10 + $0x1] sm:$0x1]
    %v2048 = vld [vmem:[#allocation12 + $0x1] sm:$0x1]
    %v2049 = vadd.f32 %v2046, 1e-05
    %v2050 = vrsqrt.pop %v2049
    %v2051 = vmul.f32 %v2050, %v2049
    %v2052 = vmul.f32 %v2051, %v2050
    %v2053 = vmul.f32 0.5, %v2052
    %v2054 = vsub.f32 1.5, %v2053
    %v2055 = vmul.f32 %v2050, %v2054
    %vm2056 = vweird.f32 %v2049
    %vm2057 = vweird.f32 %v2050
    %vm2058 = vmor %vm2056, %vm2057
    %v2059 = vsel %vm2058, %v2050, %v2055
    %v2060 = vmul.f32 %v2047, %v2059
    %v2061 = vmul.f32 %v2043, %v2060
    %v2062 = vsub.f32 %v2048, %v2061
    %v2063 = vperm.slane %v2060, 0
    %v2064 = vmul.f32 %v1993, %v2063
    %v2065 = vmul.f32 %v1994, %v2063
    %v2066 = vmul.f32 %v1995, %v2063
    %v2067 = vmul.f32 %v1996, %v2063
    %v2068 = vmul.f32 %v1997, %v2063
    %v2069 = vmul.f32 %v1998, %v2063
    %v2070 = vmul.f32 %v1999, %v2063
    %v2071 = vmul.f32 %v2000, %v2063
    %v2072 = vperm.slane %v2062, 0
    %v2073 = vadd.f32 %v2064, %v2072
    %v2074 = vadd.f32 %v2065, %v2072
    %v2075 = vadd.f32 %v2066, %v2072
    %v2076 = vadd.f32 %v2067, %v2072
    %v2077 = vadd.f32 %v2068, %v2072
    %v2078 = vadd.f32 %v2069, %v2072
    %v2079 = vadd.f32 %v2070, %v2072
    %v2080 = vadd.f32 %v2071, %v2072
    %v2081 = vpack.c.bf16 %v2074, %v2073
    %v2082 = vpack.c.bf16 %v2076, %v2075
    %v2083 = vpack.c.bf16 %v2078, %v2077
    %v2084 = vpack.c.bf16 %v2080, %v2079
    %v2085 = vld [vmem:[#allocation16] sm:$0xff]
    %v2086 = vld [vmem:[#allocation16 + $0x8] sm:$0xff]
    %v2087 = vld [vmem:[#allocation16 + $0x10] sm:$0xff]
    %v2088 = vld [vmem:[#allocation16 + $0x18] sm:$0xff]
    %v2089 = vld [vmem:[#allocation16 + $0x20] sm:$0xff]
    %v2090 = vld [vmem:[#allocation16 + $0x28] sm:$0xff]
    %v2091 = vld [vmem:[#allocation16 + $0x30] sm:$0xff]
    %v2092 = vld [vmem:[#allocation16 + $0x38] sm:$0xff]
    %v2093 = vld [vmem:[#allocation16 + $0x40] sm:$0xff]
    %v2094 = vld [vmem:[#allocation16 + $0x48] sm:$0xff]
    %v2095 = vld [vmem:[#allocation16 + $0x50] sm:$0xff]
    %v2096 = vld [vmem:[#allocation16 + $0x58] sm:$0xff]
    %v2097 = vld [vmem:[#allocation16 + $0x60] sm:$0xff]
    %v2098 = vld [vmem:[#allocation16 + $0x68] sm:$0xff]
    %v2099 = vld [vmem:[#allocation16 + $0x70] sm:$0xff]
    %v2100 = vld [vmem:[#allocation16 + $0x78] sm:$0xff]
    %v2101 = vld [vmem:[#allocation16 + $0x80] sm:$0xff]
    %v2102 = vld [vmem:[#allocation16 + $0x88] sm:$0xff]
    %v2103 = vld [vmem:[#allocation16 + $0x90] sm:$0xff]
    %v2104 = vld [vmem:[#allocation16 + $0x98] sm:$0xff]
    %v2105 = vld [vmem:[#allocation16 + $0xa0] sm:$0xff]
    %v2106 = vld [vmem:[#allocation16 + $0xa8] sm:$0xff]
    %v2107 = vld [vmem:[#allocation16 + $0xb0] sm:$0xff]
    %v2108 = vld [vmem:[#allocation16 + $0xb8] sm:$0xff]
    %v2109 = vld [vmem:[#allocation16 + $0xc0] sm:$0xff]
    %v2110 = vld [vmem:[#allocation16 + $0xc8] sm:$0xff]
    %v2111 = vld [vmem:[#allocation16 + $0xd0] sm:$0xff]
    %v2112 = vld [vmem:[#allocation16 + $0xd8] sm:$0xff]
    %v2113 = vld [vmem:[#allocation16 + $0xe0] sm:$0xff]
    %v2114 = vld [vmem:[#allocation16 + $0xe8] sm:$0xff]
    %v2115 = vld [vmem:[#allocation16 + $0xf0] sm:$0xff]
    %v2116 = vld [vmem:[#allocation16 + $0xf8] sm:$0xff]
    %v2117 = vld [vmem:[%s10] sm:$0xf]
    %v2119 = vperm.slane %v2117, 0
    %v2120 = vperm.slane %v2117, 1
    %v2121 = vperm.slane %v2117, 2
    %v2122 = vperm.slane %v2117, 3
    %v2159 = vunpack.c.l.b16 %v2085
    %v2160 = vunpack.c.h.b16 %v2085
    %v2161 = vunpack.c.l.b16 %v2086
    %v2162 = vunpack.c.h.b16 %v2086
    %v2163 = vunpack.c.l.b16 %v2087
    %v2164 = vunpack.c.h.b16 %v2087
    %v2165 = vunpack.c.l.b16 %v2088
    %v2166 = vunpack.c.h.b16 %v2088
    %v2167 = vunpack.c.l.b16 %v2089
    %v2168 = vunpack.c.h.b16 %v2089
    %v2169 = vunpack.c.l.b16 %v2090
    %v2170 = vunpack.c.h.b16 %v2090
    %v2171 = vunpack.c.l.b16 %v2091
    %v2172 = vunpack.c.h.b16 %v2091
    %v2173 = vunpack.c.l.b16 %v2092
    %v2174 = vunpack.c.h.b16 %v2092
    %v2175 = vunpack.c.l.b16 %v2093
    %v2176 = vunpack.c.h.b16 %v2093
    %v2177 = vunpack.c.l.b16 %v2094
    %v2178 = vunpack.c.h.b16 %v2094
    %v2179 = vunpack.c.l.b16 %v2095
    %v2180 = vunpack.c.h.b16 %v2095
    %v2181 = vunpack.c.l.b16 %v2096
    %v2182 = vunpack.c.h.b16 %v2096
    %v2183 = vunpack.c.l.b16 %v2097
    %v2184 = vunpack.c.h.b16 %v2097
    %v2185 = vunpack.c.l.b16 %v2098
    %v2186 = vunpack.c.h.b16 %v2098
    %v2187 = vunpack.c.l.b16 %v2099
    %v2188 = vunpack.c.h.b16 %v2099
    %v2189 = vunpack.c.l.b16 %v2100
    %v2190 = vunpack.c.h.b16 %v2100
    %v2191 = vunpack.c.l.b16 %v2101
    %v2192 = vunpack.c.h.b16 %v2101
    %v2193 = vunpack.c.l.b16 %v2102
    %v2194 = vunpack.c.h.b16 %v2102
    %v2195 = vunpack.c.l.b16 %v2103
    %v2196 = vunpack.c.h.b16 %v2103
    %v2197 = vunpack.c.l.b16 %v2104
    %v2198 = vunpack.c.h.b16 %v2104
    %v2199 = vunpack.c.l.b16 %v2105
    %v2200 = vunpack.c.h.b16 %v2105
    %v2201 = vunpack.c.l.b16 %v2106
    %v2202 = vunpack.c.h.b16 %v2106
    %v2203 = vunpack.c.l.b16 %v2107
    %v2204 = vunpack.c.h.b16 %v2107
    %v2205 = vunpack.c.l.b16 %v2108
    %v2206 = vunpack.c.h.b16 %v2108
    %v2207 = vunpack.c.l.b16 %v2109
    %v2208 = vunpack.c.h.b16 %v2109
    %v2209 = vunpack.c.l.b16 %v2110
    %v2210 = vunpack.c.h.b16 %v2110
    %v2211 = vunpack.c.l.b16 %v2111
    %v2212 = vunpack.c.h.b16 %v2111
    %v2213 = vunpack.c.l.b16 %v2112
    %v2214 = vunpack.c.h.b16 %v2112
    %v2215 = vunpack.c.l.b16 %v2113
    %v2216 = vunpack.c.h.b16 %v2113
    %v2217 = vunpack.c.l.b16 %v2114
    %v2218 = vunpack.c.h.b16 %v2114
    %v2219 = vunpack.c.l.b16 %v2115
    %v2220 = vunpack.c.h.b16 %v2115
    %v2221 = vunpack.c.l.b16 %v2116
    %v2222 = vunpack.c.h.b16 %v2116
    %v2223 = vpack.c.b16 %v2163, %v2159
    %v2224 = vpack.c.b16 %v2164, %v2160
    %v2225 = vpack.c.b16 %v2165, %v2161
    %v2226 = vpack.c.b16 %v2166, %v2162
    %v2227 = vpack.c.b16 %v2171, %v2167
    %v2228 = vpack.c.b16 %v2172, %v2168
    %v2229 = vpack.c.b16 %v2173, %v2169
    %v2230 = vpack.c.b16 %v2174, %v2170
    %v2231 = vpack.c.b16 %v2179, %v2175
    %v2232 = vpack.c.b16 %v2180, %v2176
    %v2233 = vpack.c.b16 %v2181, %v2177
    %v2234 = vpack.c.b16 %v2182, %v2178
    %v2235 = vpack.c.b16 %v2187, %v2183
    %v2236 = vpack.c.b16 %v2188, %v2184
    %v2237 = vpack.c.b16 %v2189, %v2185
    %v2238 = vpack.c.b16 %v2190, %v2186
    %v2239 = vpack.c.b16 %v2195, %v2191
    %v2240 = vpack.c.b16 %v2196, %v2192
    %v2241 = vpack.c.b16 %v2197, %v2193
    %v2242 = vpack.c.b16 %v2198, %v2194
    %v2243 = vpack.c.b16 %v2203, %v2199
    %v2244 = vpack.c.b16 %v2204, %v2200
    %v2245 = vpack.c.b16 %v2205, %v2201
    %v2246 = vpack.c.b16 %v2206, %v2202
    %v2247 = vpack.c.b16 %v2211, %v2207
    %v2248 = vpack.c.b16 %v2212, %v2208
    %v2249 = vpack.c.b16 %v2213, %v2209
    %v2250 = vpack.c.b16 %v2214, %v2210
    %v2251 = vpack.c.b16 %v2219, %v2215
    %v2252 = vpack.c.b16 %v2220, %v2216
    %v2253 = vpack.c.b16 %v2221, %v2217
    %v2254 = vpack.c.b16 %v2222, %v2218
    %2287 = vmatpush.bf16.msra.mxu0 %v2251
    %2288 = vmatpush.bf16.msra.mxu0 %v2247
    %2289 = vmatpush.bf16.msra.mxu0 %v2243
    %2290 = vmatpush.bf16.msra.mxu0 %v2239
    %2291 = vmatpush.bf16.msra.mxu0 %v2235
    %2292 = vmatpush.bf16.msra.mxu0 %v2231
    %2293 = vmatpush.bf16.msra.mxu0 %v2227
    %2294 = vmatpush.bf16.msra.mxu0 %v2223
    %2295 = vmatmul.bf16.gmra.mxu0 %v2081
    %v2296 = vpop.f32.mrf.mxu0
    %v2297 = vadd.f32 %v2119, %v2296
    %v2298 = vpop.f32.mrf.mxu0
    %v2299 = vadd.f32 %v2119, %v2298
    %2300 = vmatmul.bf16.gmra.mxu0 %v2082
    %v2301 = vpop.f32.mrf.mxu0
    %v2302 = vadd.f32 %v2119, %v2301
    %v2303 = vpop.f32.mrf.mxu0
    %v2304 = vadd.f32 %v2119, %v2303
    %2305 = vmatmul.bf16.gmra.mxu0 %v2083
    %v2306 = vpop.f32.mrf.mxu0
    %v2307 = vadd.f32 %v2119, %v2306
    %v2308 = vpop.f32.mrf.mxu0
    %v2309 = vadd.f32 %v2119, %v2308
    %2310 = vmatmul.bf16.gmra.mxu0 %v2084
    %v2311 = vpop.f32.mrf.mxu0
    %v2312 = vadd.f32 %v2119, %v2311
    %v2313 = vpop.f32.mrf.mxu0
    %v2314 = vadd.f32 %v2119, %v2313
    %2315 = vdwg.mxu0
    %2316 = vmatpush.bf16.msra.mxu0 %v2252
    %2317 = vmatpush.bf16.msra.mxu0 %v2248
    %2318 = vmatpush.bf16.msra.mxu0 %v2244
    %2319 = vmatpush.bf16.msra.mxu0 %v2240
    %2320 = vmatpush.bf16.msra.mxu0 %v2236
    %2321 = vmatpush.bf16.msra.mxu0 %v2232
    %2322 = vmatpush.bf16.msra.mxu0 %v2228
    %2323 = vmatpush.bf16.msra.mxu0 %v2224
    %2324 = vmatmul.bf16.gmra.mxu0 %v2081
    %v2325 = vpop.f32.mrf.mxu0
    %v2326 = vadd.f32 %v2120, %v2325
    %v2327 = vpop.f32.mrf.mxu0
    %v2328 = vadd.f32 %v2120, %v2327
    %2329 = vmatmul.bf16.gmra.mxu0 %v2082
    %v2330 = vpop.f32.mrf.mxu0
    %v2331 = vadd.f32 %v2120, %v2330
    %v2332 = vpop.f32.mrf.mxu0
    %v2333 = vadd.f32 %v2120, %v2332
    %2334 = vmatmul.bf16.gmra.mxu0 %v2083
    %v2335 = vpop.f32.mrf.mxu0
    %v2336 = vadd.f32 %v2120, %v2335
    %v2337 = vpop.f32.mrf.mxu0
    %v2338 = vadd.f32 %v2120, %v2337
    %2339 = vmatmul.bf16.gmra.mxu0 %v2084
    %v2340 = vpop.f32.mrf.mxu0
    %v2341 = vadd.f32 %v2120, %v2340
    %v2342 = vpop.f32.mrf.mxu0
    %v2343 = vadd.f32 %v2120, %v2342
    %2344 = vdwg.mxu0
    %2345 = vmatpush.bf16.msra.mxu0 %v2253
    %2346 = vmatpush.bf16.msra.mxu0 %v2249
    %2347 = vmatpush.bf16.msra.mxu0 %v2245
    %2348 = vmatpush.bf16.msra.mxu0 %v2241
    %2349 = vmatpush.bf16.msra.mxu0 %v2237
    %2350 = vmatpush.bf16.msra.mxu0 %v2233
    %2351 = vmatpush.bf16.msra.mxu0 %v2229
    %2352 = vmatpush.bf16.msra.mxu0 %v2225
    %2353 = vmatmul.bf16.gmra.mxu0 %v2081
    %v2354 = vpop.f32.mrf.mxu0
    %v2355 = vadd.f32 %v2121, %v2354
    %v2356 = vpop.f32.mrf.mxu0
    %v2357 = vadd.f32 %v2121, %v2356
    %2358 = vmatmul.bf16.gmra.mxu0 %v2082
    %v2359 = vpop.f32.mrf.mxu0
    %v2360 = vadd.f32 %v2121, %v2359
    %v2361 = vpop.f32.mrf.mxu0
    %v2362 = vadd.f32 %v2121, %v2361
    %2363 = vmatmul.bf16.gmra.mxu0 %v2083
    %v2364 = vpop.f32.mrf.mxu0
    %v2365 = vadd.f32 %v2121, %v2364
    %v2366 = vpop.f32.mrf.mxu0
    %v2367 = vadd.f32 %v2121, %v2366
    %2368 = vmatmul.bf16.gmra.mxu0 %v2084
    %v2369 = vpop.f32.mrf.mxu0
    %v2370 = vadd.f32 %v2121, %v2369
    %v2371 = vpop.f32.mrf.mxu0
    %v2372 = vadd.f32 %v2121, %v2371
    %2373 = vdwg.mxu0
    %2374 = vmatpush.bf16.msra.mxu0 %v2254
    %2375 = vmatpush.bf16.msra.mxu0 %v2250
    %2376 = vmatpush.bf16.msra.mxu0 %v2246
    %2377 = vmatpush.bf16.msra.mxu0 %v2242
    %2378 = vmatpush.bf16.msra.mxu0 %v2238
    %2379 = vmatpush.bf16.msra.mxu0 %v2234
    %2380 = vmatpush.bf16.msra.mxu0 %v2230
    %2381 = vmatpush.bf16.msra.mxu0 %v2226
    %2382 = vmatmul.bf16.gmra.mxu0 %v2081
    %v2383 = vpop.f32.mrf.mxu0
    %v2384 = vadd.f32 %v2122, %v2383
    %v2385 = vpop.f32.mrf.mxu0
    %v2386 = vadd.f32 %v2122, %v2385
    %2387 = vmatmul.bf16.gmra.mxu0 %v2082
    %v2388 = vpop.f32.mrf.mxu0
    %v2389 = vadd.f32 %v2122, %v2388
    %v2390 = vpop.f32.mrf.mxu0
    %v2391 = vadd.f32 %v2122, %v2390
    %2392 = vmatmul.bf16.gmra.mxu0 %v2083
    %v2393 = vpop.f32.mrf.mxu0
    %v2394 = vadd.f32 %v2122, %v2393
    %v2395 = vpop.f32.mrf.mxu0
    %v2396 = vadd.f32 %v2122, %v2395
    %2397 = vmatmul.bf16.gmra.mxu0 %v2084
    %v2398 = vpop.f32.mrf.mxu0
    %v2399 = vadd.f32 %v2122, %v2398
    %v2400 = vpop.f32.mrf.mxu0
    %v2401 = vadd.f32 %v2122, %v2400
    %2402 = vdwg.mxu0
    %2403 = vst [vmem:[#allocation2] sm:$0xff] %v2297
    %2404 = vst [vmem:[#allocation2 + $0x8] sm:$0xff] %v2326
    %2405 = vst [vmem:[#allocation2 + $0x10] sm:$0xff] %v2355
    %2406 = vst [vmem:[#allocation2 + $0x18] sm:$0xff] %v2384
    %2407 = vst [vmem:[#allocation2 + $0x20] sm:$0xff] %v2299
    %2408 = vst [vmem:[#allocation2 + $0x28] sm:$0xff] %v2328
    %2409 = vst [vmem:[#allocation2 + $0x30] sm:$0xff] %v2357
    %2410 = vst [vmem:[#allocation2 + $0x38] sm:$0xff] %v2386
    %2411 = vst [vmem:[#allocation2 + $0x40] sm:$0xff] %v2302
    %2412 = vst [vmem:[#allocation2 + $0x48] sm:$0xff] %v2331
    %2413 = vst [vmem:[#allocation2 + $0x50] sm:$0xff] %v2360
    %2414 = vst [vmem:[#allocation2 + $0x58] sm:$0xff] %v2389
    %2415 = vst [vmem:[#allocation2 + $0x60] sm:$0xff] %v2304
    %2416 = vst [vmem:[#allocation2 + $0x68] sm:$0xff] %v2333
    %2417 = vst [vmem:[#allocation2 + $0x70] sm:$0xff] %v2362
    %2418 = vst [vmem:[#allocation2 + $0x78] sm:$0xff] %v2391
    %2419 = vst [vmem:[#allocation2 + $0x80] sm:$0xff] %v2307
    %2420 = vst [vmem:[#allocation2 + $0x88] sm:$0xff] %v2336
    %2421 = vst [vmem:[#allocation2 + $0x90] sm:$0xff] %v2365
    %2422 = vst [vmem:[#allocation2 + $0x98] sm:$0xff] %v2394
    %2423 = vst [vmem:[#allocation2 + $0xa0] sm:$0xff] %v2309
    %2424 = vst [vmem:[#allocation2 + $0xa8] sm:$0xff] %v2338
    %2425 = vst [vmem:[#allocation2 + $0xb0] sm:$0xff] %v2367
    %2426 = vst [vmem:[#allocation2 + $0xb8] sm:$0xff] %v2396
    %2427 = vst [vmem:[#allocation2 + $0xc0] sm:$0xff] %v2312
    %2428 = vst [vmem:[#allocation2 + $0xc8] sm:$0xff] %v2341
    %2429 = vst [vmem:[#allocation2 + $0xd0] sm:$0xff] %v2370
    %2430 = vst [vmem:[#allocation2 + $0xd8] sm:$0xff] %v2399
    %2431 = vst [vmem:[#allocation2 + $0xe0] sm:$0xff] %v2314
    %2432 = vst [vmem:[#allocation2 + $0xe8] sm:$0xff] %v2343
    %2433 = vst [vmem:[#allocation2 + $0xf0] sm:$0xff] %v2372
    %2434 = vst [vmem:[#allocation2 + $0xf8] sm:$0xff] %v2401
    %v2435 = vld [vmem:[#allocation18] sm:$0xff]
    %v2436 = vld [vmem:[#allocation18 + $0x8] sm:$0xff]
    %v2437 = vld [vmem:[#allocation18 + $0x10] sm:$0xff]
    %v2438 = vld [vmem:[#allocation18 + $0x18] sm:$0xff]
    %v2439 = vld [vmem:[#allocation18 + $0x20] sm:$0xff]
    %v2440 = vld [vmem:[#allocation18 + $0x28] sm:$0xff]
    %v2441 = vld [vmem:[#allocation18 + $0x30] sm:$0xff]
    %v2442 = vld [vmem:[#allocation18 + $0x38] sm:$0xff]
    %v2443 = vld [vmem:[#allocation18 + $0x40] sm:$0xff]
    %v2444 = vld [vmem:[#allocation18 + $0x48] sm:$0xff]
    %v2445 = vld [vmem:[#allocation18 + $0x50] sm:$0xff]
    %v2446 = vld [vmem:[#allocation18 + $0x58] sm:$0xff]
    %v2447 = vld [vmem:[#allocation18 + $0x60] sm:$0xff]
    %v2448 = vld [vmem:[#allocation18 + $0x68] sm:$0xff]
    %v2449 = vld [vmem:[#allocation18 + $0x70] sm:$0xff]
    %v2450 = vld [vmem:[#allocation18 + $0x78] sm:$0xff]
    %v2451 = vld [vmem:[#allocation18 + $0x80] sm:$0xff]
    %v2452 = vld [vmem:[#allocation18 + $0x88] sm:$0xff]
    %v2453 = vld [vmem:[#allocation18 + $0x90] sm:$0xff]
    %v2454 = vld [vmem:[#allocation18 + $0x98] sm:$0xff]
    %v2455 = vld [vmem:[#allocation18 + $0xa0] sm:$0xff]
    %v2456 = vld [vmem:[#allocation18 + $0xa8] sm:$0xff]
    %v2457 = vld [vmem:[#allocation18 + $0xb0] sm:$0xff]
    %v2458 = vld [vmem:[#allocation18 + $0xb8] sm:$0xff]
    %v2459 = vld [vmem:[#allocation18 + $0xc0] sm:$0xff]
    %v2460 = vld [vmem:[#allocation18 + $0xc8] sm:$0xff]
    %v2461 = vld [vmem:[#allocation18 + $0xd0] sm:$0xff]
    %v2462 = vld [vmem:[#allocation18 + $0xd8] sm:$0xff]
    %v2463 = vld [vmem:[#allocation18 + $0xe0] sm:$0xff]
    %v2464 = vld [vmem:[#allocation18 + $0xe8] sm:$0xff]
    %v2465 = vld [vmem:[#allocation18 + $0xf0] sm:$0xff]
    %v2466 = vld [vmem:[#allocation18 + $0xf8] sm:$0xff]
    %v2467 = vld [vmem:[#allocation2] sm:$0xff]
    %v2468 = vld [vmem:[#allocation2 + $0x8] sm:$0xff]
    %v2469 = vld [vmem:[#allocation2 + $0x10] sm:$0xff]
    %v2470 = vld [vmem:[#allocation2 + $0x18] sm:$0xff]
    %v2471 = vpack.c.bf16 %v1990, %v1990
    %v2504 = vunpack.c.l.b16 %v2435
    %v2505 = vunpack.c.h.b16 %v2435
    %v2506 = vunpack.c.l.b16 %v2436
    %v2507 = vunpack.c.h.b16 %v2436
    %v2508 = vunpack.c.l.b16 %v2437
    %v2509 = vunpack.c.h.b16 %v2437
    %v2510 = vunpack.c.l.b16 %v2438
    %v2511 = vunpack.c.h.b16 %v2438
    %v2512 = vunpack.c.l.b16 %v2439
    %v2513 = vunpack.c.h.b16 %v2439
    %v2514 = vunpack.c.l.b16 %v2440
    %v2515 = vunpack.c.h.b16 %v2440
    %v2516 = vunpack.c.l.b16 %v2441
    %v2517 = vunpack.c.h.b16 %v2441
    %v2518 = vunpack.c.l.b16 %v2442
    %v2519 = vunpack.c.h.b16 %v2442
    %v2520 = vunpack.c.l.b16 %v2443
    %v2521 = vunpack.c.h.b16 %v2443
    %v2522 = vunpack.c.l.b16 %v2444
    %v2523 = vunpack.c.h.b16 %v2444
    %v2524 = vunpack.c.l.b16 %v2445
    %v2525 = vunpack.c.h.b16 %v2445
    %v2526 = vunpack.c.l.b16 %v2446
    %v2527 = vunpack.c.h.b16 %v2446
    %v2528 = vunpack.c.l.b16 %v2447
    %v2529 = vunpack.c.h.b16 %v2447
    %v2530 = vunpack.c.l.b16 %v2448
    %v2531 = vunpack.c.h.b16 %v2448
    %v2532 = vunpack.c.l.b16 %v2449
    %v2533 = vunpack.c.h.b16 %v2449
    %v2534 = vunpack.c.l.b16 %v2450
    %v2535 = vunpack.c.h.b16 %v2450
    %v2536 = vunpack.c.l.b16 %v2451
    %v2537 = vunpack.c.h.b16 %v2451
    %v2538 = vunpack.c.l.b16 %v2452
    %v2539 = vunpack.c.h.b16 %v2452
    %v2540 = vunpack.c.l.b16 %v2453
    %v2541 = vunpack.c.h.b16 %v2453
    %v2542 = vunpack.c.l.b16 %v2454
    %v2543 = vunpack.c.h.b16 %v2454
    %v2544 = vunpack.c.l.b16 %v2455
    %v2545 = vunpack.c.h.b16 %v2455
    %v2546 = vunpack.c.l.b16 %v2456
    %v2547 = vunpack.c.h.b16 %v2456
    %v2548 = vunpack.c.l.b16 %v2457
    %v2549 = vunpack.c.h.b16 %v2457
    %v2550 = vunpack.c.l.b16 %v2458
    %v2551 = vunpack.c.h.b16 %v2458
    %v2552 = vunpack.c.l.b16 %v2459
    %v2553 = vunpack.c.h.b16 %v2459
    %v2554 = vunpack.c.l.b16 %v2460
    %v2555 = vunpack.c.h.b16 %v2460
    %v2556 = vunpack.c.l.b16 %v2461
    %v2557 = vunpack.c.h.b16 %v2461
    %v2558 = vunpack.c.l.b16 %v2462
    %v2559 = vunpack.c.h.b16 %v2462
    %v2560 = vunpack.c.l.b16 %v2463
    %v2561 = vunpack.c.h.b16 %v2463
    %v2562 = vunpack.c.l.b16 %v2464
    %v2563 = vunpack.c.h.b16 %v2464
    %v2564 = vunpack.c.l.b16 %v2465
    %v2565 = vunpack.c.h.b16 %v2465
    %v2566 = vunpack.c.l.b16 %v2466
    %v2567 = vunpack.c.h.b16 %v2466
    %v2568 = vpack.c.b16 %v2508, %v2504
    %v2569 = vpack.c.b16 %v2509, %v2505
    %v2570 = vpack.c.b16 %v2510, %v2506
    %v2571 = vpack.c.b16 %v2511, %v2507
    %v2572 = vpack.c.b16 %v2516, %v2512
    %v2573 = vpack.c.b16 %v2517, %v2513
    %v2574 = vpack.c.b16 %v2518, %v2514
    %v2575 = vpack.c.b16 %v2519, %v2515
    %v2576 = vpack.c.b16 %v2524, %v2520
    %v2577 = vpack.c.b16 %v2525, %v2521
    %v2578 = vpack.c.b16 %v2526, %v2522
    %v2579 = vpack.c.b16 %v2527, %v2523
    %v2580 = vpack.c.b16 %v2532, %v2528
    %v2581 = vpack.c.b16 %v2533, %v2529
    %v2582 = vpack.c.b16 %v2534, %v2530
    %v2583 = vpack.c.b16 %v2535, %v2531
    %v2584 = vpack.c.b16 %v2540, %v2536
    %v2585 = vpack.c.b16 %v2541, %v2537
    %v2586 = vpack.c.b16 %v2542, %v2538
    %v2587 = vpack.c.b16 %v2543, %v2539
    %v2588 = vpack.c.b16 %v2548, %v2544
    %v2589 = vpack.c.b16 %v2549, %v2545
    %v2590 = vpack.c.b16 %v2550, %v2546
    %v2591 = vpack.c.b16 %v2551, %v2547
    %v2592 = vpack.c.b16 %v2556, %v2552
    %v2593 = vpack.c.b16 %v2557, %v2553
    %v2594 = vpack.c.b16 %v2558, %v2554
    %v2595 = vpack.c.b16 %v2559, %v2555
    %v2596 = vpack.c.b16 %v2564, %v2560
    %v2597 = vpack.c.b16 %v2565, %v2561
    %v2598 = vpack.c.b16 %v2566, %v2562
    %v2599 = vpack.c.b16 %v2567, %v2563
    %2632 = vmatpush.bf16.msra.mxu0 %v2596
    %2633 = vmatpush.bf16.msra.mxu0 %v2592
    %2634 = vmatpush.bf16.msra.mxu0 %v2588
    %2635 = vmatpush.bf16.msra.mxu0 %v2584
    %2636 = vmatpush.bf16.msra.mxu0 %v2580
    %2637 = vmatpush.bf16.msra.mxu0 %v2576
    %2638 = vmatpush.bf16.msra.mxu0 %v2572
    %2639 = vmatpush.bf16.msra.mxu0 %v2568
    %2640 = vmatmul.bf16.gmra.mxu0 %v2471
    %v2641 = vpop.f32.mrf.mxu0
    %v2642 = vadd.f32 0.0, %v2641
    %v2643 = vpop.f32.mrf.mxu0
    %2644 = vdwg.mxu0
    %2645 = vmatpush.bf16.msra.mxu0 %v2597
    %2646 = vmatpush.bf16.msra.mxu0 %v2593
    %2647 = vmatpush.bf16.msra.mxu0 %v2589
    %2648 = vmatpush.bf16.msra.mxu0 %v2585
    %2649 = vmatpush.bf16.msra.mxu0 %v2581
    %2650 = vmatpush.bf16.msra.mxu0 %v2577
    %2651 = vmatpush.bf16.msra.mxu0 %v2573
    %2652 = vmatpush.bf16.msra.mxu0 %v2569
    %2653 = vmatmul.bf16.gmra.mxu0 %v2471
    %v2654 = vpop.f32.mrf.mxu0
    %v2655 = vadd.f32 0.0, %v2654
    %v2656 = vpop.f32.mrf.mxu0
    %2657 = vdwg.mxu0
    %2658 = vmatpush.bf16.msra.mxu0 %v2598
    %2659 = vmatpush.bf16.msra.mxu0 %v2594
    %2660 = vmatpush.bf16.msra.mxu0 %v2590
    %2661 = vmatpush.bf16.msra.mxu0 %v2586
    %2662 = vmatpush.bf16.msra.mxu0 %v2582
    %2663 = vmatpush.bf16.msra.mxu0 %v2578
    %2664 = vmatpush.bf16.msra.mxu0 %v2574
    %2665 = vmatpush.bf16.msra.mxu0 %v2570
    %2666 = vmatmul.bf16.gmra.mxu0 %v2471
    %v2667 = vpop.f32.mrf.mxu0
    %v2668 = vadd.f32 0.0, %v2667
    %v2669 = vpop.f32.mrf.mxu0
    %2670 = vdwg.mxu0
    %2671 = vmatpush.bf16.msra.mxu0 %v2599
    %2672 = vmatpush.bf16.msra.mxu0 %v2595
    %2673 = vmatpush.bf16.msra.mxu0 %v2591
    %2674 = vmatpush.bf16.msra.mxu0 %v2587
    %2675 = vmatpush.bf16.msra.mxu0 %v2583
    %2676 = vmatpush.bf16.msra.mxu0 %v2579
    %2677 = vmatpush.bf16.msra.mxu0 %v2575
    %2678 = vmatpush.bf16.msra.mxu0 %v2571
    %2679 = vmatmul.bf16.gmra.mxu0 %v2471
    %v2680 = vpop.f32.mrf.mxu0
    %v2681 = vadd.f32 0.0, %v2680
    %v2682 = vpop.f32.mrf.mxu0
    %2683 = vdwg.mxu0
    %v2684 = vadd.f32 %v2467, %v2642
    %v2685 = vadd.f32 %v2468, %v2655
    %v2686 = vadd.f32 %v2469, %v2668
    %v2687 = vadd.f32 %v2470, %v2681
    %v2688 = vxor.u32 %v2684, 2147483648
    %v2689 = vmul.f32 %v2688, 1.442695
    %v2690 = vpow.pop %v2689
    %v2691 = vadd.f32 %v2690, 1.0
    %v2692 = vrcp.pop %v2691
    %v2693 = vmul.f32 %v2691, %v2692
    %v2694 = vsub.f32 1.0, %v2693
    %v2695 = vmul.f32 %v2692, %v2694
    %v2696 = vadd.f32 %v2692, %v2695
    %vm2697 = vweird.f32 %v2691
    %vm2698 = vweird.f32 %v2692
    %vm2699 = vmor %vm2697, %vm2698
    %v2700 = vsel %vm2699, %v2692, %v2696
    %v2701 = vand.u32 2147483647, %v2691
    %vm2702 = vcmp.eq.f32.partialorder %v2701, 8.507059e+37
    %v2703 = vand.u32 %v2691, 2147483648
    %v2704 = vor.u32 1.1754944e-38, %v2703
    %v2705 = vsel %vm2702, %v2704, %v2700
    %v2706 = vmul.f32 1.0, %v2705
    %v2707 = vxor.u32 %v2685, 2147483648
    %v2708 = vmul.f32 %v2707, 1.442695
    %v2709 = vpow.pop %v2708
    %v2710 = vadd.f32 %v2709, 1.0
    %v2711 = vrcp.pop %v2710
    %v2712 = vmul.f32 %v2710, %v2711
    %v2713 = vsub.f32 1.0, %v2712
    %v2714 = vmul.f32 %v2711, %v2713
    %v2715 = vadd.f32 %v2711, %v2714
    %vm2716 = vweird.f32 %v2710
    %vm2717 = vweird.f32 %v2711
    %vm2718 = vmor %vm2716, %vm2717
    %v2719 = vsel %vm2718, %v2711, %v2715
    %v2720 = vand.u32 2147483647, %v2710
    %vm2721 = vcmp.eq.f32.partialorder %v2720, 8.507059e+37
    %v2722 = vand.u32 %v2710, 2147483648
    %v2723 = vor.u32 1.1754944e-38, %v2722
    %v2724 = vsel %vm2721, %v2723, %v2719
    %v2725 = vmul.f32 1.0, %v2724
    %v2726 = vtanh.pop %v2686
    %v2727 = vxor.u32 %v2687, 2147483648
    %v2728 = vmul.f32 %v2727, 1.442695
    %v2729 = vpow.pop %v2728
    %v2730 = vadd.f32 %v2729, 1.0
    %v2731 = vrcp.pop %v2730
    %v2732 = vmul.f32 %v2730, %v2731
    %v2733 = vsub.f32 1.0, %v2732
    %v2734 = vmul.f32 %v2731, %v2733
    %v2735 = vadd.f32 %v2731, %v2734
    %vm2736 = vweird.f32 %v2730
    %vm2737 = vweird.f32 %v2731
    %vm2738 = vmor %vm2736, %vm2737
    %v2739 = vsel %vm2738, %v2731, %v2735
    %v2740 = vand.u32 2147483647, %v2730
    %vm2741 = vcmp.eq.f32.partialorder %v2740, 8.507059e+37
    %v2742 = vand.u32 %v2730, 2147483648
    %v2743 = vor.u32 1.1754944e-38, %v2742
    %v2744 = vsel %vm2741, %v2743, %v2739
    %v2745 = vmul.f32 1.0, %v2744
    %v2746 = vmul.f32 %v2725, %v1988
    %v2747 = vmul.f32 %v2706, %v2726
    %v2748 = vadd.f32 %v2746, %v2747
    %v2749 = vtanh.pop %v2748
    %v2750 = vmul.f32 %v2745, %v2749
    %2751 = vst [vmem:[#allocation3] sm:$0xff] %v2750
    %v2752 = vld [vmem:[%s1104] sm:$0xff]
    %v2753 = vld [vmem:[%s1104 + $0x8] sm:$0xff]
    %v2754 = vld [vmem:[%s1104 + $0x10] sm:$0xff]
    %v2755 = vld [vmem:[%s1104 + $0x18] sm:$0xff]
    %v2756 = vpack.c.bf16 %v2750, %v2750
    %2757 = vmatpush.bf16.msra.mxu0 %v2596
    %2758 = vmatpush.bf16.msra.mxu0 %v2592
    %2759 = vmatpush.bf16.msra.mxu0 %v2588
    %2760 = vmatpush.bf16.msra.mxu0 %v2584
    %2761 = vmatpush.bf16.msra.mxu0 %v2580
    %2762 = vmatpush.bf16.msra.mxu0 %v2576
    %2763 = vmatpush.bf16.msra.mxu0 %v2572
    %2764 = vmatpush.bf16.msra.mxu0 %v2568
    %2765 = vmatmul.bf16.gmra.mxu0 %v2756
    %v2766 = vpop.f32.mrf.mxu0
    %v2767 = vadd.f32 0.0, %v2766
    %v2768 = vpop.f32.mrf.mxu0
    %2769 = vdwg.mxu0
    %2770 = vmatpush.bf16.msra.mxu0 %v2597
    %2771 = vmatpush.bf16.msra.mxu0 %v2593
    %2772 = vmatpush.bf16.msra.mxu0 %v2589
    %2773 = vmatpush.bf16.msra.mxu0 %v2585
    %2774 = vmatpush.bf16.msra.mxu0 %v2581
    %2775 = vmatpush.bf16.msra.mxu0 %v2577
    %2776 = vmatpush.bf16.msra.mxu0 %v2573
    %2777 = vmatpush.bf16.msra.mxu0 %v2569
    %2778 = vmatmul.bf16.gmra.mxu0 %v2756
    %v2779 = vpop.f32.mrf.mxu0
    %v2780 = vadd.f32 0.0, %v2779
    %v2781 = vpop.f32.mrf.mxu0
    %2782 = vdwg.mxu0
    %2783 = vmatpush.bf16.msra.mxu0 %v2598
    %2784 = vmatpush.bf16.msra.mxu0 %v2594
    %2785 = vmatpush.bf16.msra.mxu0 %v2590
    %2786 = vmatpush.bf16.msra.mxu0 %v2586
    %2787 = vmatpush.bf16.msra.mxu0 %v2582
    %2788 = vmatpush.bf16.msra.mxu0 %v2578
    %2789 = vmatpush.bf16.msra.mxu0 %v2574
    %2790 = vmatpush.bf16.msra.mxu0 %v2570
    %2791 = vmatmul.bf16.gmra.mxu0 %v2756
    %v2792 = vpop.f32.mrf.mxu0
    %v2793 = vadd.f32 0.0, %v2792
    %v2794 = vpop.f32.mrf.mxu0
    %2795 = vdwg.mxu0
    %2796 = vmatpush.bf16.msra.mxu0 %v2599
    %2797 = vmatpush.bf16.msra.mxu0 %v2595
    %2798 = vmatpush.bf16.msra.mxu0 %v2591
    %2799 = vmatpush.bf16.msra.mxu0 %v2587
    %2800 = vmatpush.bf16.msra.mxu0 %v2583
    %2801 = vmatpush.bf16.msra.mxu0 %v2579
    %2802 = vmatpush.bf16.msra.mxu0 %v2575
    %2803 = vmatpush.bf16.msra.mxu0 %v2571
    %2804 = vmatmul.bf16.gmra.mxu0 %v2756
    %v2805 = vpop.f32.mrf.mxu0
    %v2806 = vadd.f32 0.0, %v2805
    %v2807 = vpop.f32.mrf.mxu0
    %2808 = vdwg.mxu0
    %v2809 = vadd.f32 %v2752, %v2767
    %v2810 = vadd.f32 %v2753, %v2780
    %v2811 = vadd.f32 %v2754, %v2793
    %v2812 = vadd.f32 %v2755, %v2806
    %v2813 = vxor.u32 %v2809, 2147483648
    %v2814 = vmul.f32 %v2813, 1.442695
    %v2815 = vpow.pop %v2814
    %v2816 = vadd.f32 %v2815, 1.0
    %v2817 = vrcp.pop %v2816
    %v2818 = vmul.f32 %v2816, %v2817
    %v2819 = vsub.f32 1.0, %v2818
    %v2820 = vmul.f32 %v2817, %v2819
    %v2821 = vadd.f32 %v2817, %v2820
    %vm2822 = vweird.f32 %v2816
    %vm2823 = vweird.f32 %v2817
    %vm2824 = vmor %vm2822, %vm2823
    %v2825 = vsel %vm2824, %v2817, %v2821
    %v2826 = vand.u32 2147483647, %v2816
    %vm2827 = vcmp.eq.f32.partialorder %v2826, 8.507059e+37
    %v2828 = vand.u32 %v2816, 2147483648
    %v2829 = vor.u32 1.1754944e-38, %v2828
    %v2830 = vsel %vm2827, %v2829, %v2825
    %v2831 = vmul.f32 1.0, %v2830
    %v2832 = vxor.u32 %v2810, 2147483648
    %v2833 = vmul.f32 %v2832, 1.442695
    %v2834 = vpow.pop %v2833
    %v2835 = vadd.f32 %v2834, 1.0
    %v2836 = vrcp.pop %v2835
    %v2837 = vmul.f32 %v2835, %v2836
    %v2838 = vsub.f32 1.0, %v2837
    %v2839 = vmul.f32 %v2836, %v2838
    %v2840 = vadd.f32 %v2836, %v2839
    %vm2841 = vweird.f32 %v2835
    %vm2842 = vweird.f32 %v2836
    %vm2843 = vmor %vm2841, %vm2842
    %v2844 = vsel %vm2843, %v2836, %v2840
    %v2845 = vand.u32 2147483647, %v2835
    %vm2846 = vcmp.eq.f32.partialorder %v2845, 8.507059e+37
    %v2847 = vand.u32 %v2835, 2147483648
    %v2848 = vor.u32 1.1754944e-38, %v2847
    %v2849 = vsel %vm2846, %v2848, %v2844
    %v2850 = vmul.f32 1.0, %v2849
    %v2851 = vtanh.pop %v2811
    %v2852 = vxor.u32 %v2812, 2147483648
    %v2853 = vmul.f32 %v2852, 1.442695
    %v2854 = vpow.pop %v2853
    %v2855 = vadd.f32 %v2854, 1.0
    %v2856 = vrcp.pop %v2855
    %v2857 = vmul.f32 %v2855, %v2856
    %v2858 = vsub.f32 1.0, %v2857
    %v2859 = vmul.f32 %v2856, %v2858
    %v2860 = vadd.f32 %v2856, %v2859
    %vm2861 = vweird.f32 %v2855
    %vm2862 = vweird.f32 %v2856
    %vm2863 = vmor %vm2861, %vm2862
    %v2864 = vsel %vm2863, %v2856, %v2860
    %v2865 = vand.u32 2147483647, %v2855
    %vm2866 = vcmp.eq.f32.partialorder %v2865, 8.507059e+37
    %v2867 = vand.u32 %v2855, 2147483648
    %v2868 = vor.u32 1.1754944e-38, %v2867
    %v2869 = vsel %vm2866, %v2868, %v2864
    %v2870 = vmul.f32 1.0, %v2869
    %v2871 = vmul.f32 %v2850, %v2748
    %v2872 = vmul.f32 %v2831, %v2851
    %v2873 = vadd.f32 %v2871, %v2872
    %v2874 = vtanh.pop %v2873
    %v2875 = vmul.f32 %v2870, %v2874
    %2876 = vst [vmem:[%s1229] sm:$0xff] %v2875
    %v2877 = vld [vmem:[%s1231] sm:$0xff]
    %v2878 = vld [vmem:[%s1231 + $0x8] sm:$0xff]
    %v2879 = vld [vmem:[%s1231 + $0x10] sm:$0xff]
    %v2880 = vld [vmem:[%s1231 + $0x18] sm:$0xff]
    %v2881 = vpack.c.bf16 %v2875, %v2875
    %2882 = vmatpush.bf16.msra.mxu0 %v2596
    %2883 = vmatpush.bf16.msra.mxu0 %v2592
    %2884 = vmatpush.bf16.msra.mxu0 %v2588
    %2885 = vmatpush.bf16.msra.mxu0 %v2584
    %2886 = vmatpush.bf16.msra.mxu0 %v2580
    %2887 = vmatpush.bf16.msra.mxu0 %v2576
    %2888 = vmatpush.bf16.msra.mxu0 %v2572
    %2889 = vmatpush.bf16.msra.mxu0 %v2568
    %2890 = vmatmul.bf16.gmra.mxu0 %v2881
    %v2891 = vpop.f32.mrf.mxu0
    %v2892 = vadd.f32 0.0, %v2891
    %v2893 = vpop.f32.mrf.mxu0
    %2894 = vdwg.mxu0
    %2895 = vmatpush.bf16.msra.mxu0 %v2597
    %2896 = vmatpush.bf16.msra.mxu0 %v2593
    %2897 = vmatpush.bf16.msra.mxu0 %v2589
    %2898 = vmatpush.bf16.msra.mxu0 %v2585
    %2899 = vmatpush.bf16.msra.mxu0 %v2581
    %2900 = vmatpush.bf16.msra.mxu0 %v2577
    %2901 = vmatpush.bf16.msra.mxu0 %v2573
    %2902 = vmatpush.bf16.msra.mxu0 %v2569
    %2903 = vmatmul.bf16.gmra.mxu0 %v2881
    %v2904 = vpop.f32.mrf.mxu0
    %v2905 = vadd.f32 0.0, %v2904
    %v2906 = vpop.f32.mrf.mxu0
    %2907 = vdwg.mxu0
    %2908 = vmatpush.bf16.msra.mxu0 %v2598
    %2909 = vmatpush.bf16.msra.mxu0 %v2594
    %2910 = vmatpush.bf16.msra.mxu0 %v2590
    %2911 = vmatpush.bf16.msra.mxu0 %v2586
    %2912 = vmatpush.bf16.msra.mxu0 %v2582
    %2913 = vmatpush.bf16.msra.mxu0 %v2578
    %2914 = vmatpush.bf16.msra.mxu0 %v2574
    %2915 = vmatpush.bf16.msra.mxu0 %v2570
    %2916 = vmatmul.bf16.gmra.mxu0 %v2881
    %v2917 = vpop.f32.mrf.mxu0
    %v2918 = vadd.f32 0.0, %v2917
    %v2919 = vpop.f32.mrf.mxu0
    %2920 = vdwg.mxu0
    %2921 = vmatpush.bf16.msra.mxu0 %v2599
    %2922 = vmatpush.bf16.msra.mxu0 %v2595
    %2923 = vmatpush.bf16.msra.mxu0 %v2591
    %2924 = vmatpush.bf16.msra.mxu0 %v2587
    %2925 = vmatpush.bf16.msra.mxu0 %v2583
    %2926 = vmatpush.bf16.msra.mxu0 %v2579
    %2927 = vmatpush.bf16.msra.mxu0 %v2575
    %2928 = vmatpush.bf16.msra.mxu0 %v2571
    %2929 = vmatmul.bf16.gmra.mxu0 %v2881
    %v2930 = vpop.f32.mrf.mxu0
    %v2931 = vadd.f32 0.0, %v2930
    %v2932 = vpop.f32.mrf.mxu0
    %2933 = vdwg.mxu0
    %v2934 = vadd.f32 %v2877, %v2892
    %v2935 = vadd.f32 %v2878, %v2905
    %v2936 = vadd.f32 %v2879, %v2918
    %v2937 = vadd.f32 %v2880, %v2931
    %v2938 = vxor.u32 %v2934, 2147483648
    %v2939 = vmul.f32 %v2938, 1.442695
    %v2940 = vpow.pop %v2939
    %v2941 = vadd.f32 %v2940, 1.0
    %v2942 = vrcp.pop %v2941
    %v2943 = vmul.f32 %v2941, %v2942
    %v2944 = vsub.f32 1.0, %v2943
    %v2945 = vmul.f32 %v2942, %v2944
    %v2946 = vadd.f32 %v2942, %v2945
    %vm2947 = vweird.f32 %v2941
    %vm2948 = vweird.f32 %v2942
    %vm2949 = vmor %vm2947, %vm2948
    %v2950 = vsel %vm2949, %v2942, %v2946
    %v2951 = vand.u32 2147483647, %v2941
    %vm2952 = vcmp.eq.f32.partialorder %v2951, 8.507059e+37
    %v2953 = vand.u32 %v2941, 2147483648
    %v2954 = vor.u32 1.1754944e-38, %v2953
    %v2955 = vsel %vm2952, %v2954, %v2950
    %v2956 = vmul.f32 1.0, %v2955
    %v2957 = vxor.u32 %v2935, 2147483648
    %v2958 = vmul.f32 %v2957, 1.442695
    %v2959 = vpow.pop %v2958
    %v2960 = vadd.f32 %v2959, 1.0
    %v2961 = vrcp.pop %v2960
    %v2962 = vmul.f32 %v2960, %v2961
    %v2963 = vsub.f32 1.0, %v2962
    %v2964 = vmul.f32 %v2961, %v2963
    %v2965 = vadd.f32 %v2961, %v2964
    %vm2966 = vweird.f32 %v2960
    %vm2967 = vweird.f32 %v2961
    %vm2968 = vmor %vm2966, %vm2967
    %v2969 = vsel %vm2968, %v2961, %v2965
    %v2970 = vand.u32 2147483647, %v2960
    %vm2971 = vcmp.eq.f32.partialorder %v2970, 8.507059e+37
    %v2972 = vand.u32 %v2960, 2147483648
    %v2973 = vor.u32 1.1754944e-38, %v2972
    %v2974 = vsel %vm2971, %v2973, %v2969
    %v2975 = vmul.f32 1.0, %v2974
    %v2976 = vtanh.pop %v2936
    %v2977 = vxor.u32 %v2937, 2147483648
    %v2978 = vmul.f32 %v2977, 1.442695
    %v2979 = vpow.pop %v2978
    %v2980 = vadd.f32 %v2979, 1.0
    %v2981 = vrcp.pop %v2980
    %v2982 = vmul.f32 %v2980, %v2981
    %v2983 = vsub.f32 1.0, %v2982
    %v2984 = vmul.f32 %v2981, %v2983
    %v2985 = vadd.f32 %v2981, %v2984
    %vm2986 = vweird.f32 %v2980
    %vm2987 = vweird.f32 %v2981
    %vm2988 = vmor %vm2986, %vm2987
    %v2989 = vsel %vm2988, %v2981, %v2985
    %v2990 = vand.u32 2147483647, %v2980
    %vm2991 = vcmp.eq.f32.partialorder %v2990, 8.507059e+37
    %v2992 = vand.u32 %v2980, 2147483648
    %v2993 = vor.u32 1.1754944e-38, %v2992
    %v2994 = vsel %vm2991, %v2993, %v2989
    %v2995 = vmul.f32 1.0, %v2994
    %v2996 = vmul.f32 %v2975, %v2873
    %v2997 = vmul.f32 %v2956, %v2976
    %v2998 = vadd.f32 %v2996, %v2997
    %v2999 = vtanh.pop %v2998
    %v3000 = vmul.f32 %v2995, %v2999
    %3001 = vst [vmem:[%s1356] sm:$0xff] %v3000
    %v3002 = vld [vmem:[%s1358] sm:$0xff]
    %v3003 = vld [vmem:[%s1358 + $0x8] sm:$0xff]
    %v3004 = vld [vmem:[%s1358 + $0x10] sm:$0xff]
    %v3005 = vld [vmem:[%s1358 + $0x18] sm:$0xff]
    %v3006 = vpack.c.bf16 %v3000, %v3000
    %3007 = vmatpush.bf16.msra.mxu0 %v2596
    %3008 = vmatpush.bf16.msra.mxu0 %v2592
    %3009 = vmatpush.bf16.msra.mxu0 %v2588
    %3010 = vmatpush.bf16.msra.mxu0 %v2584
    %3011 = vmatpush.bf16.msra.mxu0 %v2580
    %3012 = vmatpush.bf16.msra.mxu0 %v2576
    %3013 = vmatpush.bf16.msra.mxu0 %v2572
    %3014 = vmatpush.bf16.msra.mxu0 %v2568
    %3015 = vmatmul.bf16.gmra.mxu0 %v3006
    %v3016 = vpop.f32.mrf.mxu0
    %v3017 = vadd.f32 0.0, %v3016
    %v3018 = vpop.f32.mrf.mxu0
    %3019 = vdwg.mxu0
    %3020 = vmatpush.bf16.msra.mxu0 %v2597
    %3021 = vmatpush.bf16.msra.mxu0 %v2593
    %3022 = vmatpush.bf16.msra.mxu0 %v2589
    %3023 = vmatpush.bf16.msra.mxu0 %v2585
    %3024 = vmatpush.bf16.msra.mxu0 %v2581
    %3025 = vmatpush.bf16.msra.mxu0 %v2577
    %3026 = vmatpush.bf16.msra.mxu0 %v2573
    %3027 = vmatpush.bf16.msra.mxu0 %v2569
    %3028 = vmatmul.bf16.gmra.mxu0 %v3006
    %v3029 = vpop.f32.mrf.mxu0
    %v3030 = vadd.f32 0.0, %v3029
    %v3031 = vpop.f32.mrf.mxu0
    %3032 = vdwg.mxu0
    %3033 = vmatpush.bf16.msra.mxu0 %v2598
    %3034 = vmatpush.bf16.msra.mxu0 %v2594
    %3035 = vmatpush.bf16.msra.mxu0 %v2590
    %3036 = vmatpush.bf16.msra.mxu0 %v2586
    %3037 = vmatpush.bf16.msra.mxu0 %v2582
    %3038 = vmatpush.bf16.msra.mxu0 %v2578
    %3039 = vmatpush.bf16.msra.mxu0 %v2574
    %3040 = vmatpush.bf16.msra.mxu0 %v2570
    %3041 = vmatmul.bf16.gmra.mxu0 %v3006
    %v3042 = vpop.f32.mrf.mxu0
    %v3043 = vadd.f32 0.0, %v3042
    %v3044 = vpop.f32.mrf.mxu0
    %3045 = vdwg.mxu0
    %3046 = vmatpush.bf16.msra.mxu0 %v2599
    %3047 = vmatpush.bf16.msra.mxu0 %v2595
    %3048 = vmatpush.bf16.msra.mxu0 %v2591
    %3049 = vmatpush.bf16.msra.mxu0 %v2587
    %3050 = vmatpush.bf16.msra.mxu0 %v2583
    %3051 = vmatpush.bf16.msra.mxu0 %v2579
    %3052 = vmatpush.bf16.msra.mxu0 %v2575
    %3053 = vmatpush.bf16.msra.mxu0 %v2571
    %3054 = vmatmul.bf16.gmra.mxu0 %v3006
    %v3055 = vpop.f32.mrf.mxu0
    %v3056 = vadd.f32 0.0, %v3055
    %v3057 = vpop.f32.mrf.mxu0
    %3058 = vdwg.mxu0
    %v3059 = vadd.f32 %v3002, %v3017
    %v3060 = vadd.f32 %v3003, %v3030
    %v3061 = vadd.f32 %v3004, %v3043
    %v3062 = vadd.f32 %v3005, %v3056
    %v3063 = vxor.u32 %v3059, 2147483648
    %v3064 = vmul.f32 %v3063, 1.442695
    %v3065 = vpow.pop %v3064
    %v3066 = vadd.f32 %v3065, 1.0
    %v3067 = vrcp.pop %v3066
    %v3068 = vmul.f32 %v3066, %v3067
    %v3069 = vsub.f32 1.0, %v3068
    %v3070 = vmul.f32 %v3067, %v3069
    %v3071 = vadd.f32 %v3067, %v3070
    %vm3072 = vweird.f32 %v3066
    %vm3073 = vweird.f32 %v3067
    %vm3074 = vmor %vm3072, %vm3073
    %v3075 = vsel %vm3074, %v3067, %v3071
    %v3076 = vand.u32 2147483647, %v3066
    %vm3077 = vcmp.eq.f32.partialorder %v3076, 8.507059e+37
    %v3078 = vand.u32 %v3066, 2147483648
    %v3079 = vor.u32 1.1754944e-38, %v3078
    %v3080 = vsel %vm3077, %v3079, %v3075
    %v3081 = vmul.f32 1.0, %v3080
    %v3082 = vxor.u32 %v3060, 2147483648
    %v3083 = vmul.f32 %v3082, 1.442695
    %v3084 = vpow.pop %v3083
    %v3085 = vadd.f32 %v3084, 1.0
    %v3086 = vrcp.pop %v3085
    %v3087 = vmul.f32 %v3085, %v3086
    %v3088 = vsub.f32 1.0, %v3087
    %v3089 = vmul.f32 %v3086, %v3088
    %v3090 = vadd.f32 %v3086, %v3089
    %vm3091 = vweird.f32 %v3085
    %vm3092 = vweird.f32 %v3086
    %vm3093 = vmor %vm3091, %vm3092
    %v3094 = vsel %vm3093, %v3086, %v3090
    %v3095 = vand.u32 2147483647, %v3085
    %vm3096 = vcmp.eq.f32.partialorder %v3095, 8.507059e+37
    %v3097 = vand.u32 %v3085, 2147483648
    %v3098 = vor.u32 1.1754944e-38, %v3097
    %v3099 = vsel %vm3096, %v3098, %v3094
    %v3100 = vmul.f32 1.0, %v3099
    %v3101 = vtanh.pop %v3061
    %v3102 = vxor.u32 %v3062, 2147483648
    %v3103 = vmul.f32 %v3102, 1.442695
    %v3104 = vpow.pop %v3103
    %v3105 = vadd.f32 %v3104, 1.0
    %v3106 = vrcp.pop %v3105
    %v3107 = vmul.f32 %v3105, %v3106
    %v3108 = vsub.f32 1.0, %v3107
    %v3109 = vmul.f32 %v3106, %v3108
    %v3110 = vadd.f32 %v3106, %v3109
    %vm3111 = vweird.f32 %v3105
    %vm3112 = vweird.f32 %v3106
    %vm3113 = vmor %vm3111, %vm3112
    %v3114 = vsel %vm3113, %v3106, %v3110
    %v3115 = vand.u32 2147483647, %v3105
    %vm3116 = vcmp.eq.f32.partialorder %v3115, 8.507059e+37
    %v3117 = vand.u32 %v3105, 2147483648
    %v3118 = vor.u32 1.1754944e-38, %v3117
    %v3119 = vsel %vm3116, %v3118, %v3114
    %v3120 = vmul.f32 1.0, %v3119
    %v3121 = vmul.f32 %v3100, %v2998
    %v3122 = vmul.f32 %v3081, %v3101
    %v3123 = vadd.f32 %v3121, %v3122
    %v3124 = vtanh.pop %v3123
    %v3125 = vmul.f32 %v3120, %v3124
    %3126 = vst [vmem:[%s1483] sm:$0xff] %v3125
    %v3127 = vld [vmem:[%s1485] sm:$0xff]
    %v3128 = vld [vmem:[%s1485 + $0x8] sm:$0xff]
    %v3129 = vld [vmem:[%s1485 + $0x10] sm:$0xff]
    %v3130 = vld [vmem:[%s1485 + $0x18] sm:$0xff]
    %v3131 = vpack.c.bf16 %v3125, %v3125
    %3132 = vmatpush.bf16.msra.mxu0 %v2596
    %3133 = vmatpush.bf16.msra.mxu0 %v2592
    %3134 = vmatpush.bf16.msra.mxu0 %v2588
    %3135 = vmatpush.bf16.msra.mxu0 %v2584
    %3136 = vmatpush.bf16.msra.mxu0 %v2580
    %3137 = vmatpush.bf16.msra.mxu0 %v2576
    %3138 = vmatpush.bf16.msra.mxu0 %v2572
    %3139 = vmatpush.bf16.msra.mxu0 %v2568
    %3140 = vmatmul.bf16.gmra.mxu0 %v3131
    %v3141 = vpop.f32.mrf.mxu0
    %v3142 = vadd.f32 0.0, %v3141
    %v3143 = vpop.f32.mrf.mxu0
    %3144 = vdwg.mxu0
    %3145 = vmatpush.bf16.msra.mxu0 %v2597
    %3146 = vmatpush.bf16.msra.mxu0 %v2593
    %3147 = vmatpush.bf16.msra.mxu0 %v2589
    %3148 = vmatpush.bf16.msra.mxu0 %v2585
    %3149 = vmatpush.bf16.msra.mxu0 %v2581
    %3150 = vmatpush.bf16.msra.mxu0 %v2577
    %3151 = vmatpush.bf16.msra.mxu0 %v2573
    %3152 = vmatpush.bf16.msra.mxu0 %v2569
    %3153 = vmatmul.bf16.gmra.mxu0 %v3131
    %v3154 = vpop.f32.mrf.mxu0
    %v3155 = vadd.f32 0.0, %v3154
    %v3156 = vpop.f32.mrf.mxu0
    %3157 = vdwg.mxu0
    %3158 = vmatpush.bf16.msra.mxu0 %v2598
    %3159 = vmatpush.bf16.msra.mxu0 %v2594
    %3160 = vmatpush.bf16.msra.mxu0 %v2590
    %3161 = vmatpush.bf16.msra.mxu0 %v2586
    %3162 = vmatpush.bf16.msra.mxu0 %v2582
    %3163 = vmatpush.bf16.msra.mxu0 %v2578
    %3164 = vmatpush.bf16.msra.mxu0 %v2574
    %3165 = vmatpush.bf16.msra.mxu0 %v2570
    %3166 = vmatmul.bf16.gmra.mxu0 %v3131
    %v3167 = vpop.f32.mrf.mxu0
    %v3168 = vadd.f32 0.0, %v3167
    %v3169 = vpop.f32.mrf.mxu0
    %3170 = vdwg.mxu0
    %3171 = vmatpush.bf16.msra.mxu0 %v2599
    %3172 = vmatpush.bf16.msra.mxu0 %v2595
    %3173 = vmatpush.bf16.msra.mxu0 %v2591
    %3174 = vmatpush.bf16.msra.mxu0 %v2587
    %3175 = vmatpush.bf16.msra.mxu0 %v2583
    %3176 = vmatpush.bf16.msra.mxu0 %v2579
    %3177 = vmatpush.bf16.msra.mxu0 %v2575
    %3178 = vmatpush.bf16.msra.mxu0 %v2571
    %3179 = vmatmul.bf16.gmra.mxu0 %v3131
    %v3180 = vpop.f32.mrf.mxu0
    %v3181 = vadd.f32 0.0, %v3180
    %v3182 = vpop.f32.mrf.mxu0
    %3183 = vdwg.mxu0
    %v3184 = vadd.f32 %v3127, %v3142
    %v3185 = vadd.f32 %v3128, %v3155
    %v3186 = vadd.f32 %v3129, %v3168
    %v3187 = vadd.f32 %v3130, %v3181
    %v3188 = vxor.u32 %v3184, 2147483648
    %v3189 = vmul.f32 %v3188, 1.442695
    %v3190 = vpow.pop %v3189
    %v3191 = vadd.f32 %v3190, 1.0
    %v3192 = vrcp.pop %v3191
    %v3193 = vmul.f32 %v3191, %v3192
    %v3194 = vsub.f32 1.0, %v3193
    %v3195 = vmul.f32 %v3192, %v3194
    %v3196 = vadd.f32 %v3192, %v3195
    %vm3197 = vweird.f32 %v3191
    %vm3198 = vweird.f32 %v3192
    %vm3199 = vmor %vm3197, %vm3198
    %v3200 = vsel %vm3199, %v3192, %v3196
    %v3201 = vand.u32 2147483647, %v3191
    %vm3202 = vcmp.eq.f32.partialorder %v3201, 8.507059e+37
    %v3203 = vand.u32 %v3191, 2147483648
    %v3204 = vor.u32 1.1754944e-38, %v3203
    %v3205 = vsel %vm3202, %v3204, %v3200
    %v3206 = vmul.f32 1.0, %v3205
    %v3207 = vxor.u32 %v3185, 2147483648
    %v3208 = vmul.f32 %v3207, 1.442695
    %v3209 = vpow.pop %v3208
    %v3210 = vadd.f32 %v3209, 1.0
    %v3211 = vrcp.pop %v3210
    %v3212 = vmul.f32 %v3210, %v3211
    %v3213 = vsub.f32 1.0, %v3212
    %v3214 = vmul.f32 %v3211, %v3213
    %v3215 = vadd.f32 %v3211, %v3214
    %vm3216 = vweird.f32 %v3210
    %vm3217 = vweird.f32 %v3211
    %vm3218 = vmor %vm3216, %vm3217
    %v3219 = vsel %vm3218, %v3211, %v3215
    %v3220 = vand.u32 2147483647, %v3210
    %vm3221 = vcmp.eq.f32.partialorder %v3220, 8.507059e+37
    %v3222 = vand.u32 %v3210, 2147483648
    %v3223 = vor.u32 1.1754944e-38, %v3222
    %v3224 = vsel %vm3221, %v3223, %v3219
    %v3225 = vmul.f32 1.0, %v3224
    %v3226 = vtanh.pop %v3186
    %v3227 = vxor.u32 %v3187, 2147483648
    %v3228 = vmul.f32 %v3227, 1.442695
    %v3229 = vpow.pop %v3228
    %v3230 = vadd.f32 %v3229, 1.0
    %v3231 = vrcp.pop %v3230
    %v3232 = vmul.f32 %v3230, %v3231
    %v3233 = vsub.f32 1.0, %v3232
    %v3234 = vmul.f32 %v3231, %v3233
    %v3235 = vadd.f32 %v3231, %v3234
    %vm3236 = vweird.f32 %v3230
    %vm3237 = vweird.f32 %v3231
    %vm3238 = vmor %vm3236, %vm3237
    %v3239 = vsel %vm3238, %v3231, %v3235
    %v3240 = vand.u32 2147483647, %v3230
    %vm3241 = vcmp.eq.f32.partialorder %v3240, 8.507059e+37
    %v3242 = vand.u32 %v3230, 2147483648
    %v3243 = vor.u32 1.1754944e-38, %v3242
    %v3244 = vsel %vm3241, %v3243, %v3239
    %v3245 = vmul.f32 1.0, %v3244
    %v3246 = vmul.f32 %v3225, %v3123
    %v3247 = vmul.f32 %v3206, %v3226
    %v3248 = vadd.f32 %v3246, %v3247
    %v3249 = vtanh.pop %v3248
    %v3250 = vmul.f32 %v3245, %v3249
    %3251 = vst [vmem:[%s1610] sm:$0xff] %v3250
    %v3252 = vld [vmem:[%s1612] sm:$0xff]
    %v3253 = vld [vmem:[%s1612 + $0x8] sm:$0xff]
    %v3254 = vld [vmem:[%s1612 + $0x10] sm:$0xff]
    %v3255 = vld [vmem:[%s1612 + $0x18] sm:$0xff]
    %v3256 = vpack.c.bf16 %v3250, %v3250
    %3257 = vmatpush.bf16.msra.mxu0 %v2596
    %3258 = vmatpush.bf16.msra.mxu0 %v2592
    %3259 = vmatpush.bf16.msra.mxu0 %v2588
    %3260 = vmatpush.bf16.msra.mxu0 %v2584
    %3261 = vmatpush.bf16.msra.mxu0 %v2580
    %3262 = vmatpush.bf16.msra.mxu0 %v2576
    %3263 = vmatpush.bf16.msra.mxu0 %v2572
    %3264 = vmatpush.bf16.msra.mxu0 %v2568
    %3265 = vmatmul.bf16.gmra.mxu0 %v3256
    %v3266 = vpop.f32.mrf.mxu0
    %v3267 = vadd.f32 0.0, %v3266
    %v3268 = vpop.f32.mrf.mxu0
    %3269 = vdwg.mxu0
    %3270 = vmatpush.bf16.msra.mxu0 %v2597
    %3271 = vmatpush.bf16.msra.mxu0 %v2593
    %3272 = vmatpush.bf16.msra.mxu0 %v2589
    %3273 = vmatpush.bf16.msra.mxu0 %v2585
    %3274 = vmatpush.bf16.msra.mxu0 %v2581
    %3275 = vmatpush.bf16.msra.mxu0 %v2577
    %3276 = vmatpush.bf16.msra.mxu0 %v2573
    %3277 = vmatpush.bf16.msra.mxu0 %v2569
    %3278 = vmatmul.bf16.gmra.mxu0 %v3256
    %v3279 = vpop.f32.mrf.mxu0
    %v3280 = vadd.f32 0.0, %v3279
    %v3281 = vpop.f32.mrf.mxu0
    %3282 = vdwg.mxu0
    %3283 = vmatpush.bf16.msra.mxu0 %v2598
    %3284 = vmatpush.bf16.msra.mxu0 %v2594
    %3285 = vmatpush.bf16.msra.mxu0 %v2590
    %3286 = vmatpush.bf16.msra.mxu0 %v2586
    %3287 = vmatpush.bf16.msra.mxu0 %v2582
    %3288 = vmatpush.bf16.msra.mxu0 %v2578
    %3289 = vmatpush.bf16.msra.mxu0 %v2574
    %3290 = vmatpush.bf16.msra.mxu0 %v2570
    %3291 = vmatmul.bf16.gmra.mxu0 %v3256
    %v3292 = vpop.f32.mrf.mxu0
    %v3293 = vadd.f32 0.0, %v3292
    %v3294 = vpop.f32.mrf.mxu0
    %3295 = vdwg.mxu0
    %3296 = vmatpush.bf16.msra.mxu0 %v2599
    %3297 = vmatpush.bf16.msra.mxu0 %v2595
    %3298 = vmatpush.bf16.msra.mxu0 %v2591
    %3299 = vmatpush.bf16.msra.mxu0 %v2587
    %3300 = vmatpush.bf16.msra.mxu0 %v2583
    %3301 = vmatpush.bf16.msra.mxu0 %v2579
    %3302 = vmatpush.bf16.msra.mxu0 %v2575
    %3303 = vmatpush.bf16.msra.mxu0 %v2571
    %3304 = vmatmul.bf16.gmra.mxu0 %v3256
    %v3305 = vpop.f32.mrf.mxu0
    %v3306 = vadd.f32 0.0, %v3305
    %v3307 = vpop.f32.mrf.mxu0
    %3308 = vdwg.mxu0
    %v3309 = vadd.f32 %v3252, %v3267
    %v3310 = vadd.f32 %v3253, %v3280
    %v3311 = vadd.f32 %v3254, %v3293
    %v3312 = vadd.f32 %v3255, %v3306
    %v3313 = vxor.u32 %v3309, 2147483648
    %v3314 = vmul.f32 %v3313, 1.442695
    %v3315 = vpow.pop %v3314
    %v3316 = vadd.f32 %v3315, 1.0
    %v3317 = vrcp.pop %v3316
    %v3318 = vmul.f32 %v3316, %v3317
    %v3319 = vsub.f32 1.0, %v3318
    %v3320 = vmul.f32 %v3317, %v3319
    %v3321 = vadd.f32 %v3317, %v3320
    %vm3322 = vweird.f32 %v3316
    %vm3323 = vweird.f32 %v3317
    %vm3324 = vmor %vm3322, %vm3323
    %v3325 = vsel %vm3324, %v3317, %v3321
    %v3326 = vand.u32 2147483647, %v3316
    %vm3327 = vcmp.eq.f32.partialorder %v3326, 8.507059e+37
    %v3328 = vand.u32 %v3316, 2147483648
    %v3329 = vor.u32 1.1754944e-38, %v3328
    %v3330 = vsel %vm3327, %v3329, %v3325
    %v3331 = vmul.f32 1.0, %v3330
    %v3332 = vxor.u32 %v3310, 2147483648
    %v3333 = vmul.f32 %v3332, 1.442695
    %v3334 = vpow.pop %v3333
    %v3335 = vadd.f32 %v3334, 1.0
    %v3336 = vrcp.pop %v3335
    %v3337 = vmul.f32 %v3335, %v3336
    %v3338 = vsub.f32 1.0, %v3337
    %v3339 = vmul.f32 %v3336, %v3338
    %v3340 = vadd.f32 %v3336, %v3339
    %vm3341 = vweird.f32 %v3335
    %vm3342 = vweird.f32 %v3336
    %vm3343 = vmor %vm3341, %vm3342
    %v3344 = vsel %vm3343, %v3336, %v3340
    %v3345 = vand.u32 2147483647, %v3335
    %vm3346 = vcmp.eq.f32.partialorder %v3345, 8.507059e+37
    %v3347 = vand.u32 %v3335, 2147483648
    %v3348 = vor.u32 1.1754944e-38, %v3347
    %v3349 = vsel %vm3346, %v3348, %v3344
    %v3350 = vmul.f32 1.0, %v3349
    %v3351 = vtanh.pop %v3311
    %v3352 = vxor.u32 %v3312, 2147483648
    %v3353 = vmul.f32 %v3352, 1.442695
    %v3354 = vpow.pop %v3353
    %v3355 = vadd.f32 %v3354, 1.0
    %v3356 = vrcp.pop %v3355
    %v3357 = vmul.f32 %v3355, %v3356
    %v3358 = vsub.f32 1.0, %v3357
    %v3359 = vmul.f32 %v3356, %v3358
    %v3360 = vadd.f32 %v3356, %v3359
    %vm3361 = vweird.f32 %v3355
    %vm3362 = vweird.f32 %v3356
    %vm3363 = vmor %vm3361, %vm3362
    %v3364 = vsel %vm3363, %v3356, %v3360
    %v3365 = vand.u32 2147483647, %v3355
    %vm3366 = vcmp.eq.f32.partialorder %v3365, 8.507059e+37
    %v3367 = vand.u32 %v3355, 2147483648
    %v3368 = vor.u32 1.1754944e-38, %v3367
    %v3369 = vsel %vm3366, %v3368, %v3364
    %v3370 = vmul.f32 1.0, %v3369
    %v3371 = vmul.f32 %v3350, %v3248
    %v3372 = vmul.f32 %v3331, %v3351
    %v3373 = vadd.f32 %v3371, %v3372
    %v3374 = vtanh.pop %v3373
    %v3375 = vmul.f32 %v3370, %v3374
    %3376 = vst [vmem:[%s1737] sm:$0xff] %v3375
    %v3377 = vld [vmem:[%s1739] sm:$0xff]
    %v3378 = vld [vmem:[%s1739 + $0x8] sm:$0xff]
    %v3379 = vld [vmem:[%s1739 + $0x10] sm:$0xff]
    %v3380 = vld [vmem:[%s1739 + $0x18] sm:$0xff]
    %v3381 = vpack.c.bf16 %v3375, %v3375
    %3382 = vmatpush.bf16.msra.mxu0 %v2596
    %3383 = vmatpush.bf16.msra.mxu0 %v2592
    %3384 = vmatpush.bf16.msra.mxu0 %v2588
    %3385 = vmatpush.bf16.msra.mxu0 %v2584
    %3386 = vmatpush.bf16.msra.mxu0 %v2580
    %3387 = vmatpush.bf16.msra.mxu0 %v2576
    %3388 = vmatpush.bf16.msra.mxu0 %v2572
    %3389 = vmatpush.bf16.msra.mxu0 %v2568
    %3390 = vmatmul.bf16.gmra.mxu0 %v3381
    %v3391 = vpop.f32.mrf.mxu0
    %v3392 = vadd.f32 0.0, %v3391
    %v3393 = vpop.f32.mrf.mxu0
    %3394 = vdwg.mxu0
    %3395 = vmatpush.bf16.msra.mxu0 %v2597
    %3396 = vmatpush.bf16.msra.mxu0 %v2593
    %3397 = vmatpush.bf16.msra.mxu0 %v2589
    %3398 = vmatpush.bf16.msra.mxu0 %v2585
    %3399 = vmatpush.bf16.msra.mxu0 %v2581
    %3400 = vmatpush.bf16.msra.mxu0 %v2577
    %3401 = vmatpush.bf16.msra.mxu0 %v2573
    %3402 = vmatpush.bf16.msra.mxu0 %v2569
    %3403 = vmatmul.bf16.gmra.mxu0 %v3381
    %v3404 = vpop.f32.mrf.mxu0
    %v3405 = vadd.f32 0.0, %v3404
    %v3406 = vpop.f32.mrf.mxu0
    %3407 = vdwg.mxu0
    %3408 = vmatpush.bf16.msra.mxu0 %v2598
    %3409 = vmatpush.bf16.msra.mxu0 %v2594
    %3410 = vmatpush.bf16.msra.mxu0 %v2590
    %3411 = vmatpush.bf16.msra.mxu0 %v2586
    %3412 = vmatpush.bf16.msra.mxu0 %v2582
    %3413 = vmatpush.bf16.msra.mxu0 %v2578
    %3414 = vmatpush.bf16.msra.mxu0 %v2574
    %3415 = vmatpush.bf16.msra.mxu0 %v2570
    %3416 = vmatmul.bf16.gmra.mxu0 %v3381
    %v3417 = vpop.f32.mrf.mxu0
    %v3418 = vadd.f32 0.0, %v3417
    %v3419 = vpop.f32.mrf.mxu0
    %3420 = vdwg.mxu0
    %3421 = vmatpush.bf16.msra.mxu0 %v2599
    %3422 = vmatpush.bf16.msra.mxu0 %v2595
    %3423 = vmatpush.bf16.msra.mxu0 %v2591
    %3424 = vmatpush.bf16.msra.mxu0 %v2587
    %3425 = vmatpush.bf16.msra.mxu0 %v2583
    %3426 = vmatpush.bf16.msra.mxu0 %v2579
    %3427 = vmatpush.bf16.msra.mxu0 %v2575
    %3428 = vmatpush.bf16.msra.mxu0 %v2571
    %3429 = vmatmul.bf16.gmra.mxu0 %v3381
    %v3430 = vpop.f32.mrf.mxu0
    %v3431 = vadd.f32 0.0, %v3430
    %v3432 = vpop.f32.mrf.mxu0
    %3433 = vdwg.mxu0
    %v3434 = vadd.f32 %v3377, %v3392
    %v3435 = vadd.f32 %v3378, %v3405
    %v3436 = vadd.f32 %v3379, %v3418
    %v3437 = vadd.f32 %v3380, %v3431
    %v3438 = vxor.u32 %v3434, 2147483648
    %v3439 = vmul.f32 %v3438, 1.442695
    %v3440 = vpow.pop %v3439
    %v3441 = vadd.f32 %v3440, 1.0
    %v3442 = vrcp.pop %v3441
    %v3443 = vmul.f32 %v3441, %v3442
    %v3444 = vsub.f32 1.0, %v3443
    %v3445 = vmul.f32 %v3442, %v3444
    %v3446 = vadd.f32 %v3442, %v3445
    %vm3447 = vweird.f32 %v3441
    %vm3448 = vweird.f32 %v3442
    %vm3449 = vmor %vm3447, %vm3448
    %v3450 = vsel %vm3449, %v3442, %v3446
    %v3451 = vand.u32 2147483647, %v3441
    %vm3452 = vcmp.eq.f32.partialorder %v3451, 8.507059e+37
    %v3453 = vand.u32 %v3441, 2147483648
    %v3454 = vor.u32 1.1754944e-38, %v3453
    %v3455 = vsel %vm3452, %v3454, %v3450
    %v3456 = vmul.f32 1.0, %v3455
    %v3457 = vxor.u32 %v3435, 2147483648
    %v3458 = vmul.f32 %v3457, 1.442695
    %v3459 = vpow.pop %v3458
    %v3460 = vadd.f32 %v3459, 1.0
    %v3461 = vrcp.pop %v3460
    %v3462 = vmul.f32 %v3460, %v3461
    %v3463 = vsub.f32 1.0, %v3462
    %v3464 = vmul.f32 %v3461, %v3463
    %v3465 = vadd.f32 %v3461, %v3464
    %vm3466 = vweird.f32 %v3460
    %vm3467 = vweird.f32 %v3461
    %vm3468 = vmor %vm3466, %vm3467
    %v3469 = vsel %vm3468, %v3461, %v3465
    %v3470 = vand.u32 2147483647, %v3460
    %vm3471 = vcmp.eq.f32.partialorder %v3470, 8.507059e+37
    %v3472 = vand.u32 %v3460, 2147483648
    %v3473 = vor.u32 1.1754944e-38, %v3472
    %v3474 = vsel %vm3471, %v3473, %v3469
    %v3475 = vmul.f32 1.0, %v3474
    %v3476 = vtanh.pop %v3436
    %v3477 = vxor.u32 %v3437, 2147483648
    %v3478 = vmul.f32 %v3477, 1.442695
    %v3479 = vpow.pop %v3478
    %v3480 = vadd.f32 %v3479, 1.0
    %v3481 = vrcp.pop %v3480
    %v3482 = vmul.f32 %v3480, %v3481
    %v3483 = vsub.f32 1.0, %v3482
    %v3484 = vmul.f32 %v3481, %v3483
    %v3485 = vadd.f32 %v3481, %v3484
    %vm3486 = vweird.f32 %v3480
    %vm3487 = vweird.f32 %v3481
    %vm3488 = vmor %vm3486, %vm3487
    %v3489 = vsel %vm3488, %v3481, %v3485
    %v3490 = vand.u32 2147483647, %v3480
    %vm3491 = vcmp.eq.f32.partialorder %v3490, 8.507059e+37
    %v3492 = vand.u32 %v3480, 2147483648
    %v3493 = vor.u32 1.1754944e-38, %v3492
    %v3494 = vsel %vm3491, %v3493, %v3489
    %v3495 = vmul.f32 1.0, %v3494
    %v3496 = vmul.f32 %v3475, %v3373
    %v3497 = vmul.f32 %v3456, %v3476
    %v3498 = vadd.f32 %v3496, %v3497
    %v3499 = vtanh.pop %v3498
    %v3500 = vmul.f32 %v3495, %v3499
    %3501 = vst [vmem:[%s1864] sm:$0xff] %v3500
    %v3502 = vld [vmem:[%s1866] sm:$0xff]
    %v3503 = vld [vmem:[%s1866 + $0x8] sm:$0xff]
    %v3504 = vld [vmem:[%s1866 + $0x10] sm:$0xff]
    %v3505 = vld [vmem:[%s1866 + $0x18] sm:$0xff]
    %v3506 = vpack.c.bf16 %v3500, %v3500
    %3507 = vmatpush.bf16.msra.mxu0 %v2596
    %3508 = vmatpush.bf16.msra.mxu0 %v2592
    %3509 = vmatpush.bf16.msra.mxu0 %v2588
    %3510 = vmatpush.bf16.msra.mxu0 %v2584
    %3511 = vmatpush.bf16.msra.mxu0 %v2580
    %3512 = vmatpush.bf16.msra.mxu0 %v2576
    %3513 = vmatpush.bf16.msra.mxu0 %v2572
    %3514 = vmatpush.bf16.msra.mxu0 %v2568
    %3515 = vmatmul.bf16.gmra.mxu0 %v3506
    %v3516 = vpop.f32.mrf.mxu0
    %v3517 = vadd.f32 0.0, %v3516
    %v3518 = vpop.f32.mrf.mxu0
    %3519 = vdwg.mxu0
    %3520 = vmatpush.bf16.msra.mxu0 %v2597
    %3521 = vmatpush.bf16.msra.mxu0 %v2593
    %3522 = vmatpush.bf16.msra.mxu0 %v2589
    %3523 = vmatpush.bf16.msra.mxu0 %v2585
    %3524 = vmatpush.bf16.msra.mxu0 %v2581
    %3525 = vmatpush.bf16.msra.mxu0 %v2577
    %3526 = vmatpush.bf16.msra.mxu0 %v2573
    %3527 = vmatpush.bf16.msra.mxu0 %v2569
    %3528 = vmatmul.bf16.gmra.mxu0 %v3506
    %v3529 = vpop.f32.mrf.mxu0
    %v3530 = vadd.f32 0.0, %v3529
    %v3531 = vpop.f32.mrf.mxu0
    %3532 = vdwg.mxu0
    %3533 = vmatpush.bf16.msra.mxu0 %v2598
    %3534 = vmatpush.bf16.msra.mxu0 %v2594
    %3535 = vmatpush.bf16.msra.mxu0 %v2590
    %3536 = vmatpush.bf16.msra.mxu0 %v2586
    %3537 = vmatpush.bf16.msra.mxu0 %v2582
    %3538 = vmatpush.bf16.msra.mxu0 %v2578
    %3539 = vmatpush.bf16.msra.mxu0 %v2574
    %3540 = vmatpush.bf16.msra.mxu0 %v2570
    %3541 = vmatmul.bf16.gmra.mxu0 %v3506
    %v3542 = vpop.f32.mrf.mxu0
    %v3543 = vadd.f32 0.0, %v3542
    %v3544 = vpop.f32.mrf.mxu0
    %3545 = vdwg.mxu0
    %3546 = vmatpush.bf16.msra.mxu0 %v2599
    %3547 = vmatpush.bf16.msra.mxu0 %v2595
    %3548 = vmatpush.bf16.msra.mxu0 %v2591
    %3549 = vmatpush.bf16.msra.mxu0 %v2587
    %3550 = vmatpush.bf16.msra.mxu0 %v2583
    %3551 = vmatpush.bf16.msra.mxu0 %v2579
    %3552 = vmatpush.bf16.msra.mxu0 %v2575
    %3553 = vmatpush.bf16.msra.mxu0 %v2571
    %3554 = vmatmul.bf16.gmra.mxu0 %v3506
    %v3555 = vpop.f32.mrf.mxu0
    %v3556 = vadd.f32 0.0, %v3555
    %v3557 = vpop.f32.mrf.mxu0
    %3558 = vdwg.mxu0
    %v3559 = vadd.f32 %v3502, %v3517
    %v3560 = vadd.f32 %v3503, %v3530
    %v3561 = vadd.f32 %v3504, %v3543
    %v3562 = vadd.f32 %v3505, %v3556
    %v3563 = vxor.u32 %v3559, 2147483648
    %v3564 = vmul.f32 %v3563, 1.442695
    %v3565 = vpow.pop %v3564
    %v3566 = vadd.f32 %v3565, 1.0
    %v3567 = vrcp.pop %v3566
    %v3568 = vmul.f32 %v3566, %v3567
    %v3569 = vsub.f32 1.0, %v3568
    %v3570 = vmul.f32 %v3567, %v3569
    %v3571 = vadd.f32 %v3567, %v3570
    %vm3572 = vweird.f32 %v3566
    %vm3573 = vweird.f32 %v3567
    %vm3574 = vmor %vm3572, %vm3573
    %v3575 = vsel %vm3574, %v3567, %v3571
    %v3576 = vand.u32 2147483647, %v3566
    %vm3577 = vcmp.eq.f32.partialorder %v3576, 8.507059e+37
    %v3578 = vand.u32 %v3566, 2147483648
    %v3579 = vor.u32 1.1754944e-38, %v3578
    %v3580 = vsel %vm3577, %v3579, %v3575
    %v3581 = vmul.f32 1.0, %v3580
    %v3582 = vxor.u32 %v3560, 2147483648
    %v3583 = vmul.f32 %v3582, 1.442695
    %v3584 = vpow.pop %v3583
    %v3585 = vadd.f32 %v3584, 1.0
    %v3586 = vrcp.pop %v3585
    %v3587 = vmul.f32 %v3585, %v3586
    %v3588 = vsub.f32 1.0, %v3587
    %v3589 = vmul.f32 %v3586, %v3588
    %v3590 = vadd.f32 %v3586, %v3589
    %vm3591 = vweird.f32 %v3585
    %vm3592 = vweird.f32 %v3586
    %vm3593 = vmor %vm3591, %vm3592
    %v3594 = vsel %vm3593, %v3586, %v3590
    %v3595 = vand.u32 2147483647, %v3585
    %vm3596 = vcmp.eq.f32.partialorder %v3595, 8.507059e+37
    %v3597 = vand.u32 %v3585, 2147483648
    %v3598 = vor.u32 1.1754944e-38, %v3597
    %v3599 = vsel %vm3596, %v3598, %v3594
    %v3600 = vmul.f32 1.0, %v3599
    %v3601 = vtanh.pop %v3561
    %v3602 = vxor.u32 %v3562, 2147483648
    %v3603 = vmul.f32 %v3602, 1.442695
    %v3604 = vpow.pop %v3603
    %v3605 = vadd.f32 %v3604, 1.0
    %v3606 = vrcp.pop %v3605
    %v3607 = vmul.f32 %v3605, %v3606
    %v3608 = vsub.f32 1.0, %v3607
    %v3609 = vmul.f32 %v3606, %v3608
    %v3610 = vadd.f32 %v3606, %v3609
    %vm3611 = vweird.f32 %v3605
    %vm3612 = vweird.f32 %v3606
    %vm3613 = vmor %vm3611, %vm3612
    %v3614 = vsel %vm3613, %v3606, %v3610
    %v3615 = vand.u32 2147483647, %v3605
    %vm3616 = vcmp.eq.f32.partialorder %v3615, 8.507059e+37
    %v3617 = vand.u32 %v3605, 2147483648
    %v3618 = vor.u32 1.1754944e-38, %v3617
    %v3619 = vsel %vm3616, %v3618, %v3614
    %v3620 = vmul.f32 1.0, %v3619
    %v3621 = vmul.f32 %v3600, %v3498
    %v3622 = vmul.f32 %v3581, %v3601
    %v3623 = vadd.f32 %v3621, %v3622
    %v3624 = vtanh.pop %v3623
    %v3625 = vmul.f32 %v3620, %v3624
    %3626 = vst [vmem:[%s1991] sm:$0xff] %v3625
    %v3627 = vld [vmem:[#allocation3] sm:$0xff]
    %v3628 = vld [vmem:[#allocation3 + $0x8] sm:$0xff]
    %v3629 = vld [vmem:[#allocation3 + $0x10] sm:$0xff]
    %v3630 = vld [vmem:[#allocation3 + $0x18] sm:$0xff]
    %v3631 = vld [vmem:[#allocation3 + $0x20] sm:$0xff]
    %v3632 = vld [vmem:[#allocation3 + $0x28] sm:$0xff]
    %v3633 = vld [vmem:[#allocation3 + $0x30] sm:$0xff]
    %v3634 = vld [vmem:[#allocation3 + $0x38] sm:$0xff]
    %v3635 = vmul.f32 %v3627, %v200
    %v3636 = vmul.f32 %v3628, %v200
    %v3637 = vmul.f32 %v3629, %v200
    %v3638 = vmul.f32 %v3630, %v200
    %v3639 = vmul.f32 %v3631, %v200
    %v3640 = vmul.f32 %v3632, %v200
    %v3641 = vmul.f32 %v3633, %v200
    %v3642 = vmul.f32 %v3634, %v200
    %v3643 = vadd.f32 %v3635, %v3636
    %v3644 = vadd.f32 %v3643, %v3637
    %v3645 = vadd.f32 %v3644, %v3638
    %v3646 = vadd.f32 %v3645, %v3639
    %v3647 = vadd.f32 %v3646, %v3640
    %v3648 = vadd.f32 %v3647, %v3641
    %v3649 = vadd.f32 %v3648, %v3642
    %v3650 = vrot.slane %v3649, 4
    %v3651 = vadd.f32 %v3649, %v3650
    %v3652 = vrot.slane %v3651, 2
    %v3653 = vadd.f32 %v3651, %v3652
    %v3654 = vrot.slane %v3653, 1
    %v3655 = vadd.f32 %v3653, %v3654
    %v3656 = vmul.f32 %v3635, %v3635
    %v3657 = vmul.f32 %v3636, %v3636
    %v3658 = vmul.f32 %v3637, %v3637
    %v3659 = vmul.f32 %v3638, %v3638
    %v3660 = vmul.f32 %v3639, %v3639
    %v3661 = vmul.f32 %v3640, %v3640
    %v3662 = vmul.f32 %v3641, %v3641
    %v3663 = vmul.f32 %v3642, %v3642
    %v3664 = vadd.f32 %v3656, %v3657
    %v3665 = vadd.f32 %v3664, %v3658
    %v3666 = vadd.f32 %v3665, %v3659
    %v3667 = vadd.f32 %v3666, %v3660
    %v3668 = vadd.f32 %v3667, %v3661
    %v3669 = vadd.f32 %v3668, %v3662
    %v3670 = vadd.f32 %v3669, %v3663
    %v3671 = vrot.slane %v3670, 4
    %v3672 = vadd.f32 %v3670, %v3671
    %v3673 = vrot.slane %v3672, 2
    %v3674 = vadd.f32 %v3672, %v3673
    %v3675 = vrot.slane %v3674, 1
    %v3676 = vadd.f32 %v3674, %v3675
    %v3677 = vmul.f32 %v3655, 0.0625
    %v3678 = vmul.f32 %v3676, 0.0625
    %v3679 = vmul.f32 %v3677, %v3677
    %v3680 = vsub.f32 %v3678, %v3679
    %v3681 = vld [vmem:[#allocation10 + $0x2] sm:$0x1]
    %v3682 = vld [vmem:[#allocation12 + $0x2] sm:$0x1]
    %v3683 = vadd.f32 %v3680, 1e-05
    %v3684 = vrsqrt.pop %v3683
    %v3685 = vmul.f32 %v3684, %v3683
    %v3686 = vmul.f32 %v3685, %v3684
    %v3687 = vmul.f32 0.5, %v3686
    %v3688 = vsub.f32 1.5, %v3687
    %v3689 = vmul.f32 %v3684, %v3688
    %vm3690 = vweird.f32 %v3683
    %vm3691 = vweird.f32 %v3684
    %vm3692 = vmor %vm3690, %vm3691
    %v3693 = vsel %vm3692, %v3684, %v3689
    %v3694 = vmul.f32 %v3681, %v3693
    %v3695 = vmul.f32 %v3677, %v3694
    %v3696 = vsub.f32 %v3682, %v3695
    %v3697 = vperm.slane %v3694, 0
    %v3698 = vmul.f32 %v3634, %v3697
    %v3699 = vperm.slane %v3696, 0
    %v3700 = vadd.f32 %v3698, %v3699
    %v3701 = vpack.c.bf16 %v3700, %v3700
    %v3702 = vld [vmem:[#allocation19] sm:$0xf]
    %v3703 = vld [vmem:[#allocation19 + $0x4] sm:$0xf]
    %v3704 = vld [vmem:[#allocation19 + $0x8] sm:$0xf]
    %v3705 = vld [vmem:[#allocation19 + $0xc] sm:$0xf]
    %v3706 = vld [vmem:[#allocation19 + $0x10] sm:$0xf]
    %v3707 = vld [vmem:[#allocation19 + $0x14] sm:$0xf]
    %v3708 = vld [vmem:[#allocation19 + $0x18] sm:$0xf]
    %v3709 = vld [vmem:[#allocation19 + $0x1c] sm:$0xf]
    %v3710 = vld [vmem:[#allocation19 + $0x20] sm:$0xf]
    %v3711 = vld [vmem:[#allocation19 + $0x24] sm:$0xf]
    %v3712 = vld [vmem:[#allocation19 + $0x28] sm:$0xf]
    %v3713 = vld [vmem:[#allocation19 + $0x2c] sm:$0xf]
    %v3714 = vld [vmem:[#allocation19 + $0x30] sm:$0xf]
    %v3715 = vld [vmem:[#allocation19 + $0x34] sm:$0xf]
    %v3716 = vld [vmem:[#allocation19 + $0x38] sm:$0xf]
    %v3717 = vld [vmem:[#allocation19 + $0x3c] sm:$0xf]
    %v3718 = vld [vmem:[%s12] sm:$0x1]
    %v3720 = vperm.slane %v3718, 0
    %v3738 = vunpack.c.l.b16 %v3702
    %v3739 = vunpack.c.l.b16 %v3703
    %v3740 = vunpack.c.l.b16 %v3704
    %v3741 = vunpack.c.l.b16 %v3705
    %v3742 = vunpack.c.l.b16 %v3706
    %v3743 = vunpack.c.l.b16 %v3707
    %v3744 = vunpack.c.l.b16 %v3708
    %v3745 = vunpack.c.l.b16 %v3709
    %v3746 = vunpack.c.l.b16 %v3710
    %v3747 = vunpack.c.l.b16 %v3711
    %v3748 = vunpack.c.l.b16 %v3712
    %v3749 = vunpack.c.l.b16 %v3713
    %v3750 = vunpack.c.l.b16 %v3714
    %v3751 = vunpack.c.l.b16 %v3715
    %v3752 = vunpack.c.l.b16 %v3716
    %v3753 = vunpack.c.l.b16 %v3717
    %v3754 = vpack.c.b16 %v3739, %v3738
    %v3755 = vpack.c.b16 %v3741, %v3740
    %v3756 = vpack.c.b16 %v3743, %v3742
    %v3757 = vpack.c.b16 %v3745, %v3744
    %v3758 = vpack.c.b16 %v3747, %v3746
    %v3759 = vpack.c.b16 %v3749, %v3748
    %v3760 = vpack.c.b16 %v3751, %v3750
    %v3761 = vpack.c.b16 %v3753, %v3752
    %3770 = vmatpush.bf16.msra.mxu0 %v3761
    %3771 = vmatpush.bf16.msra.mxu0 %v3760
    %3772 = vmatpush.bf16.msra.mxu0 %v3759
    %3773 = vmatpush.bf16.msra.mxu0 %v3758
    %3774 = vmatpush.bf16.msra.mxu0 %v3757
    %3775 = vmatpush.bf16.msra.mxu0 %v3756
    %3776 = vmatpush.bf16.msra.mxu0 %v3755
    %3777 = vmatpush.bf16.msra.mxu0 %v3754
    %3778 = vmatmul.bf16.gmra.mxu0 %v3701
    %v3779 = vpop.f32.mrf.mxu0
    %v3780 = vadd.f32 %v3720, %v3779
    %v3781 = vpop.f32.mrf.mxu0
    %3782 = vdwg.mxu0
    %3783 = vst [vmem:[#allocation21] sm:$0xff] %v3780
    // Predicated region
    $region94: #{tpu_custom_call.1} parent=1 // pred_check
      _
    $region95: #{tpu_custom_call.1} parent=1 // pred_check_branch
      %3785 = sbr.rel (0) target = $region97
    $region96: #{tpu_custom_call.1} parent=1 // pred_region
      %3787 = vsyncadd [#allocation6], 0
      %s3789 = sshll.u32 [#allocation21], 4
      %s3790 = int_to_ptr.vmem [resolvable:$true] %s3789
      %s3791 = sshll.u32 %s13, 4
      %s3792 = int_to_ptr.hbm [resolvable:$true] %s3791
      %3794 = dma.vmem_to_hbm [thread:$0]  %s3790, 128, %s3792, [#allocation6]
    $region97: #{tpu_custom_call.1} parent=1 // pred_fallthru
      _
    // Predicated region
    $region98: #{tpu_custom_call.1} parent=1 // pred_check
      _
    $region99: #{tpu_custom_call.1} parent=1 // pred_check_branch
      %3796 = sbr.rel (0) target = $region101
    $region100: #{tpu_custom_call.1} parent=1 // pred_region
      %3798 = dma.done [#allocation6], 128
    $region101: #{tpu_custom_call.1} parent=1 // pred_fallthru
      _
    %3799 = vsyncpa [#allocation5], 1
    %3800 = vsyncpa [#allocation8], 1
    %3801 = vsyncpa [#allocation11], 1
    %3802 = vsyncpa [#allocation14], 1
    %3803 = vsyncpa [#allocation17], 1
    %3804 = vsyncpa [#allocation20], 1
    %3805 = vsyncpa [#allocation6], 1

</llo_original>
